<compile_context>
chip_gen: v7x
topology: tpu7x:2x2x1
jax: 0.10.0
libtpu: 0.0.40
codegen_flags: <defaults>
</compile_context>

<pallas_src>
import jax
import jax.numpy as jnp
from jax.experimental import pallas as pl
from jax.experimental.pallas import tpu as pltpu

_NOUT = 26          # real number of logits (head 2 | mid 7 | low 5 | all 12)
_NOUT_PAD = 128     # lane-dense padded logits width


# --------------------------------------------------------------------------- #
# Kernel
# --------------------------------------------------------------------------- #
def _spp_feature(x):
    """SPP((1,2)) pooled feature of one NHWC block (H, W even).

    x: [bb, H, W, C] float32 -> [bb, 5*C] ordered [pool1x1 | q00 | q01 | q10 | q11].
    Reduce the aligned H halves first, then split the tiny [bb, W, C]
    remainders along W (sublane axis) -> minimal unaligned sublane work.
    """
    H, W = x.shape[1], x.shape[2]
    h2, w2 = H // 2, W // 2
    top = jnp.sum(x[:, :h2], axis=1)      # [bb, W, C]
    bot = jnp.sum(x[:, h2:], axis=1)      # [bb, W, C]
    q00 = jnp.sum(top[:, :w2], axis=1)    # [bb, C]
    q01 = jnp.sum(top[:, w2:], axis=1)
    q10 = jnp.sum(bot[:, :w2], axis=1)
    q11 = jnp.sum(bot[:, w2:], axis=1)
    inv_q = 1.0 / float(h2 * w2)
    inv_t = 1.0 / float(H * W)
    pool1 = (q00 + q01 + q10 + q11) * inv_t
    return jnp.concatenate(
        [pool1, q00 * inv_q, q01 * inv_q, q10 * inv_q, q11 * inv_q], axis=-1)


def _fused_kernel(p1_ref, p2_ref, p3_ref,
                  wh_ref, wm_ref, wl_ref, wa_ref, b_ref, o_ref):
    """All four SPP+Linear branches fused; writes [bb, 128] lane-dense logits."""
    x1 = p1_ref[...].astype(jnp.float32)   # [bb, 24, W1, C] (head window only)
    x2 = p2_ref[...].astype(jnp.float32)   # [bb, 24, W2, C]
    x3 = p3_ref[...].astype(jnp.float32)   # [bb, H3, W3, C]

    feat_head = _spp_feature(x1)            # p1[:, :24]  (delivered by BlockSpec)
    feat_mid = _spp_feature(x2[:, 4:20])    # p2[:, 4:20]
    feat_low = _spp_feature(x2[:, 16:])     # p2[:, 16:]
    feat_all = _spp_feature(x3)             # p3 full

    acc = jnp.dot(feat_head, wh_ref[...], preferred_element_type=jnp.float32)
    acc = acc + jnp.dot(feat_mid, wm_ref[...], preferred_element_type=jnp.float32)
    acc = acc + jnp.dot(feat_low, wl_ref[...], preferred_element_type=jnp.float32)
    acc = acc + jnp.dot(feat_all, wa_ref[...], preferred_element_type=jnp.float32)
    o_ref[...] = acc + b_ref[...]           # bias folded into the accumulator


def _fused_forward(p1, p2, p3, w_head, w_mid, w_low, w_all, bias_row):
    """Fused forward: NCHW pyramid (p1, p2, p3) -> [B, 26] logits."""
    B, C, H1, W1 = p1.shape
    _, _, H2, W2 = p2.shape
    _, _, H3, W3 = p3.shape
    assert C == 256 and p2.shape[1] == C and p3.shape[1] == C
    assert H1 >= 24 and H2 == 24 and H3 % 2 == 0
    assert W1 % 2 == 0 and W2 % 2 == 0 and W3 % 2 == 0

    # NCHW -> NHWC exactly once per level (C=256 -> lane axis); the H-window
    # slicing is done in the kernel / BlockSpec, never materialized in HBM.
    x1 = jnp.transpose(p1, (0, 2, 3, 1))
    x2 = jnp.transpose(p2, (0, 2, 3, 1))
    x3 = jnp.transpose(p3, (0, 2, 3, 1))

    bb = 8 if B % 8 == 0 else B           # batch tile; "parallel" grid axis
    nb = B // bb

    logits_pad = pl.pallas_call(
        _fused_kernel,
        out_shape=jax.ShapeDtypeStruct((B, _NOUT_PAD), jnp.float32),
        grid=(nb,),
        in_specs=[
            # head window = first 24 rows of p1 -> only that H block is DMA'd
            pl.BlockSpec((bb, 24, W1, C), lambda b: (b, 0, 0, 0)),
            pl.BlockSpec((bb, H2, W2, C), lambda b: (b, 0, 0, 0)),
            pl.BlockSpec((bb, H3, W3, C), lambda b: (b, 0, 0, 0)),
            pl.BlockSpec((5 * C, _NOUT_PAD), lambda b: (0, 0)),
            pl.BlockSpec((5 * C, _NOUT_PAD), lambda b: (0, 0)),
            pl.BlockSpec((5 * C, _NOUT_PAD), lambda b: (0, 0)),
            pl.BlockSpec((5 * C, _NOUT_PAD), lambda b: (0, 0)),
            pl.BlockSpec((1, _NOUT_PAD), lambda b: (0, 0)),
        ],
        out_specs=pl.BlockSpec((bb, _NOUT_PAD), lambda b: (b, 0)),
        compiler_params=pltpu.CompilerParams(
            dimension_semantics=("parallel",),
            vmem_limit_bytes=32 * 1024 * 1024),
    )(x1, x2, x3, w_head, w_mid, w_low, w_all, bias_row)

    return logits_pad[:, :_NOUT]


# --------------------------------------------------------------------------- #
# Parameter packing (done once, in __init__)
# --------------------------------------------------------------------------- #
def _pack_weight(w_torch, col_off, n_pad=_NOUT_PAD):
    """PyTorch Linear weight [N, 5*C] -> kernel slab [5*C, n_pad].

    Columns are permuted so the kernel's feature order
    [pool1x1(c) | q00(c) | q01(c) | q10(c) | q11(c)] matches PyTorch's
    flatten order [pool1x1(c) | pool2x2 flattened as c*4 + i*2 + j], then
    transposed and zero-padded so this branch's logits land at `col_off`.
    """
    N, K = w_torch.shape
    C = K // 5
    w2 = w_torch[:, C:].reshape(N, C, 2, 2)                  # [N, c, i, j]
    w2 = jnp.transpose(w2, (0, 2, 3, 1)).reshape(N, 4 * C)   # (2i+j)*C + c
    w_perm = jnp.concatenate([w_torch[:, :C], w2], axis=1)   # [N, 5*C]
    slab = jnp.zeros((K, n_pad), jnp.float32)
    return slab.at[:, col_off:col_off + N].set(jnp.transpose(w_perm))


def _init_linear(key, out_features, in_features):
    """Deterministic synthetic params matching nn.Linear's uniform bound."""
    kw, kb = jax.random.split(key)
    bound = 1.0 / (in_features ** 0.5)
    w = jax.random.uniform(kw, (out_features, in_features), jnp.float32, -bound, bound)
    b = jax.random.uniform(kb, (out_features,), jnp.float32, -bound, bound)
    return w, b


class LinearClassifierPallas:
    """Pallas port of LinearClassifier (nattr == 26 configuration, bn=False)."""

    def __init__(self, nattr, c_in, key, bn=False, pool='avg', scale=1):
        assert nattr == 26, "forward only defines heads for nattr == 26"
        del c_in, bn, pool, scale
        k_all, k_mid, k_head, k_low = jax.random.split(key, 4)
        self.w_all, self.b_all = _init_linear(k_all, 12, 1280)
        self.w_mid, self.b_mid = _init_linear(k_mid, 7, 1280)
        self.w_head, self.b_head = _init_linear(k_head, 2, 1280)
        self.w_low, self.b_low = _init_linear(k_low, 5, 1280)

        # Output column offsets follow torch.cat([head, mid, low, all], dim=1).
        self.wk_head = _pack_weight(self.w_head, 0)
        self.wk_mid = _pack_weight(self.w_mid, 2)
        self.wk_low = _pack_weight(self.w_low, 9)
        self.wk_all = _pack_weight(self.w_all, 14)

        bias_row = jnp.zeros((1, _NOUT_PAD), jnp.float32)
        bias_row = bias_row.at[0, 0:2].set(self.b_head)
        bias_row = bias_row.at[0, 2:9].set(self.b_mid)
        bias_row = bias_row.at[0, 9:14].set(self.b_low)
        bias_row = bias_row.at[0, 14:26].set(self.b_all)
        self.bias_row = bias_row

        self._fwd = jax.jit(_fused_forward)

    def forward(self, feature, label=None):
        p1, p2, p3 = feature
        # TODO(synk): PLEs / sparse modules are undefined in the given source -> identity.
        x_cls = self._fwd(p1, p2, p3, self.wk_head, self.wk_mid, self.wk_low,
                          self.wk_all, self.bias_row)
        return [x_cls], feature

    # plain-JAX reference of the same math (SPP + Linear) for validation
    def _ref_branch(self, x_nchw, weight, bias):
        B, C, H, W = x_nchw.shape
        pool1 = jnp.mean(x_nchw, axis=(2, 3))                                  # [B, C]
        pool2 = jnp.mean(x_nchw.reshape(B, C, 2, H // 2, 2, W // 2), axis=(3, 5))
        feat = jnp.concatenate([pool1, pool2.reshape(B, -1)], axis=1)          # [B, 1280]
        return feat @ weight.T + bias

    def reference(self, feature):
        p1, p2, p3 = feature
        return jnp.concatenate([
            self._ref_branch(p1[:, :, :24, :], self.w_head, self.b_head),
            self._ref_branch(p2[:, :, 4:20, :], self.w_mid, self.b_mid),
            self._ref_branch(p2[:, :, 16:, :], self.w_low, self.b_low),
            self._ref_branch(p3, self.w_all, self.b_all),
        ], axis=1)


if __name__ == "__main__":
    key = jax.random.PRNGKey(0)
    k1, k2, k3, kp = jax.random.split(key, 4)
    B, C = 2, 256
    # FPN-style pyramid consistent with block()'s H slicing (p1:H=48, p2:H=24, p3:H=12)
    p1 = jax.random.normal(k1, (B, C, 48, 16), jnp.float32)
    p2 = jax.random.normal(k2, (B, C, 24, 8), jnp.float32)
    p3 = jax.random.normal(k3, (B, C, 12, 4), jnp.float32)

    clf = LinearClassifierPallas(nattr=26, c_in=C, key=kp)
    (logits_list, feats) = clf.forward((p1, p2, p3))
    x_cls = jax.block_until_ready(logits_list[0])

    assert x_cls.shape == (B, 26), x_cls.shape
    ref = clf.reference((p1, p2, p3))
    assert jnp.allclose(x_cls, ref, atol=1e-3, rtol=1e-3), \
        float(jnp.max(jnp.abs(x_cls - ref)))
    print("KERNEL_OK")
</pallas_src>

<mosaic_0001>
module attributes {stable_mosaic.version = 11 : i64} {
  func.func @_fused_kernel(%arg0: i32, %arg1: memref<2x24x16x256xf32, #tpu.memory_space<vmem>>, %arg2: memref<2x24x8x256xf32, #tpu.memory_space<vmem>>, %arg3: memref<2x12x4x256xf32, #tpu.memory_space<vmem>>, %arg4: memref<1280x128xf32, #tpu.memory_space<vmem>>, %arg5: memref<1280x128xf32, #tpu.memory_space<vmem>>, %arg6: memref<1280x128xf32, #tpu.memory_space<vmem>>, %arg7: memref<1280x128xf32, #tpu.memory_space<vmem>>, %arg8: memref<1x128xf32, #tpu.memory_space<vmem>>, %arg9: memref<2x128xf32, #tpu.memory_space<vmem>>) attributes {dimension_semantics = [#tpu.dimension_semantics<parallel>], iteration_bounds = array<i64: 1>, scalar_prefetch = 0 : i64, scratch_operands = 0 : i64, tpu.core_type = #tpu.core_type<tc>, window_params = [{transform_indices = @transform_0, window_bounds = array<i64: 2, 24, 16, 256>}, {transform_indices = @transform_1, window_bounds = array<i64: 2, 24, 8, 256>}, {transform_indices = @transform_2, window_bounds = array<i64: 2, 12, 4, 256>}, {pipeline_mode = #tpu.pipeline_mode<synchronous>, transform_indices = @transform_3, window_bounds = array<i64: 1280, 128>}, {pipeline_mode = #tpu.pipeline_mode<synchronous>, transform_indices = @transform_4, window_bounds = array<i64: 1280, 128>}, {pipeline_mode = #tpu.pipeline_mode<synchronous>, transform_indices = @transform_5, window_bounds = array<i64: 1280, 128>}, {pipeline_mode = #tpu.pipeline_mode<synchronous>, transform_indices = @transform_6, window_bounds = array<i64: 1280, 128>}, {pipeline_mode = #tpu.pipeline_mode<synchronous>, transform_indices = @transform_7, window_bounds = array<i64: 1, 128>}, {transform_indices = @transform_8, window_bounds = array<i64: 2, 128>}]} {
    %c0 = arith.constant 0 : index
    %c0_0 = arith.constant 0 : index
    %c0_1 = arith.constant 0 : index
    %c0_2 = arith.constant 0 : index
    %0 = vector.load %arg1[%c0, %c0_0, %c0_1, %c0_2] : memref<2x24x16x256xf32, #tpu.memory_space<vmem>>, vector<2x24x16x256xf32>
    %c0_3 = arith.constant 0 : index
    %c0_4 = arith.constant 0 : index
    %c0_5 = arith.constant 0 : index
    %c0_6 = arith.constant 0 : index
    %1 = vector.load %arg2[%c0_3, %c0_4, %c0_5, %c0_6] : memref<2x24x8x256xf32, #tpu.memory_space<vmem>>, vector<2x24x8x256xf32>
    %c0_7 = arith.constant 0 : index
    %c0_8 = arith.constant 0 : index
    %c0_9 = arith.constant 0 : index
    %c0_10 = arith.constant 0 : index
    %2 = vector.load %arg3[%c0_7, %c0_8, %c0_9, %c0_10] : memref<2x12x4x256xf32, #tpu.memory_space<vmem>>, vector<2x12x4x256xf32>
    %3 = vector.extract_strided_slice %0 {offsets = [0, 0, 0, 0], sizes = [2, 12, 16, 256], strides = [1, 1, 1, 1]} : vector<2x24x16x256xf32> to vector<2x12x16x256xf32>
    %cst = arith.constant dense<0.000000e+00> : vector<2x16x256xf32>
    %4 = vector.multi_reduction <add>, %3, %cst [1] : vector<2x12x16x256xf32> to vector<2x16x256xf32>
    %5 = vector.extract_strided_slice %0 {offsets = [0, 12, 0, 0], sizes = [2, 12, 16, 256], strides = [1, 1, 1, 1]} : vector<2x24x16x256xf32> to vector<2x12x16x256xf32>
    %cst_11 = arith.constant dense<0.000000e+00> : vector<2x16x256xf32>
    %6 = vector.multi_reduction <add>, %5, %cst_11 [1] : vector<2x12x16x256xf32> to vector<2x16x256xf32>
    %7 = vector.extract_strided_slice %4 {offsets = [0, 0, 0], sizes = [2, 8, 256], strides = [1, 1, 1]} : vector<2x16x256xf32> to vector<2x8x256xf32>
    %cst_12 = arith.constant dense<0.000000e+00> : vector<2x256xf32>
    %8 = vector.multi_reduction <add>, %7, %cst_12 [1] : vector<2x8x256xf32> to vector<2x256xf32>
    %9 = vector.extract_strided_slice %4 {offsets = [0, 8, 0], sizes = [2, 8, 256], strides = [1, 1, 1]} : vector<2x16x256xf32> to vector<2x8x256xf32>
    %cst_13 = arith.constant dense<0.000000e+00> : vector<2x256xf32>
    %10 = vector.multi_reduction <add>, %9, %cst_13 [1] : vector<2x8x256xf32> to vector<2x256xf32>
    %11 = vector.extract_strided_slice %6 {offsets = [0, 0, 0], sizes = [2, 8, 256], strides = [1, 1, 1]} : vector<2x16x256xf32> to vector<2x8x256xf32>
    %cst_14 = arith.constant dense<0.000000e+00> : vector<2x256xf32>
    %12 = vector.multi_reduction <add>, %11, %cst_14 [1] : vector<2x8x256xf32> to vector<2x256xf32>
    %13 = vector.extract_strided_slice %6 {offsets = [0, 8, 0], sizes = [2, 8, 256], strides = [1, 1, 1]} : vector<2x16x256xf32> to vector<2x8x256xf32>
    %cst_15 = arith.constant dense<0.000000e+00> : vector<2x256xf32>
    %14 = vector.multi_reduction <add>, %13, %cst_15 [1] : vector<2x8x256xf32> to vector<2x256xf32>
    %15 = arith.addf %8, %10 : vector<2x256xf32>
    %16 = arith.addf %15, %12 : vector<2x256xf32>
    %17 = arith.addf %16, %14 : vector<2x256xf32>
    %cst_16 = arith.constant 0.00260416674 : f32
    %18 = vector.broadcast %cst_16 : f32 to vector<2x256xf32>
    %19 = arith.mulf %17, %18 : vector<2x256xf32>
    %cst_17 = arith.constant 0.010416667 : f32
    %20 = vector.broadcast %cst_17 : f32 to vector<2x256xf32>
    %21 = arith.mulf %8, %20 : vector<2x256xf32>
    %cst_18 = arith.constant 0.010416667 : f32
    %22 = vector.broadcast %cst_18 : f32 to vector<2x256xf32>
    %23 = arith.mulf %10, %22 : vector<2x256xf32>
    %cst_19 = arith.constant 0.010416667 : f32
    %24 = vector.broadcast %cst_19 : f32 to vector<2x256xf32>
    %25 = arith.mulf %12, %24 : vector<2x256xf32>
    %cst_20 = arith.constant 0.010416667 : f32
    %26 = vector.broadcast %cst_20 : f32 to vector<2x256xf32>
    %27 = arith.mulf %14, %26 : vector<2x256xf32>
    %28 = tpu.concatenate %19, %21, %23, %25, %27 in 1 : vector<2x256xf32>, vector<2x256xf32>, vector<2x256xf32>, vector<2x256xf32>, vector<2x256xf32> -> vector<2x1280xf32>
    %29 = vector.extract_strided_slice %1 {offsets = [0, 4, 0, 0], sizes = [2, 16, 8, 256], strides = [1, 1, 1, 1]} : vector<2x24x8x256xf32> to vector<2x16x8x256xf32>
    %30 = vector.extract_strided_slice %29 {offsets = [0, 0, 0, 0], sizes = [2, 8, 8, 256], strides = [1, 1, 1, 1]} : vector<2x16x8x256xf32> to vector<2x8x8x256xf32>
    %cst_21 = arith.constant dense<0.000000e+00> : vector<2x8x256xf32>
    %31 = vector.multi_reduction <add>, %30, %cst_21 [1] : vector<2x8x8x256xf32> to vector<2x8x256xf32>
    %32 = vector.extract_strided_slice %29 {offsets = [0, 8, 0, 0], sizes = [2, 8, 8, 256], strides = [1, 1, 1, 1]} : vector<2x16x8x256xf32> to vector<2x8x8x256xf32>
    %cst_22 = arith.constant dense<0.000000e+00> : vector<2x8x256xf32>
    %33 = vector.multi_reduction <add>, %32, %cst_22 [1] : vector<2x8x8x256xf32> to vector<2x8x256xf32>
    %34 = vector.extract_strided_slice %31 {offsets = [0, 0, 0], sizes = [2, 4, 256], strides = [1, 1, 1]} : vector<2x8x256xf32> to vector<2x4x256xf32>
    %cst_23 = arith.constant dense<0.000000e+00> : vector<2x256xf32>
    %35 = vector.multi_reduction <add>, %34, %cst_23 [1] : vector<2x4x256xf32> to vector<2x256xf32>
    %36 = vector.extract_strided_slice %31 {offsets = [0, 4, 0], sizes = [2, 4, 256], strides = [1, 1, 1]} : vector<2x8x256xf32> to vector<2x4x256xf32>
    %cst_24 = arith.constant dense<0.000000e+00> : vector<2x256xf32>
    %37 = vector.multi_reduction <add>, %36, %cst_24 [1] : vector<2x4x256xf32> to vector<2x256xf32>
    %38 = vector.extract_strided_slice %33 {offsets = [0, 0, 0], sizes = [2, 4, 256], strides = [1, 1, 1]} : vector<2x8x256xf32> to vector<2x4x256xf32>
    %cst_25 = arith.constant dense<0.000000e+00> : vector<2x256xf32>
    %39 = vector.multi_reduction <add>, %38, %cst_25 [1] : vector<2x4x256xf32> to vector<2x256xf32>
    %40 = vector.extract_strided_slice %33 {offsets = [0, 4, 0], sizes = [2, 4, 256], strides = [1, 1, 1]} : vector<2x8x256xf32> to vector<2x4x256xf32>
    %cst_26 = arith.constant dense<0.000000e+00> : vector<2x256xf32>
    %41 = vector.multi_reduction <add>, %40, %cst_26 [1] : vector<2x4x256xf32> to vector<2x256xf32>
    %42 = arith.addf %35, %37 : vector<2x256xf32>
    %43 = arith.addf %42, %39 : vector<2x256xf32>
    %44 = arith.addf %43, %41 : vector<2x256xf32>
    %cst_27 = arith.constant 7.812500e-03 : f32
    %45 = vector.broadcast %cst_27 : f32 to vector<2x256xf32>
    %46 = arith.mulf %44, %45 : vector<2x256xf32>
    %cst_28 = arith.constant 3.125000e-02 : f32
    %47 = vector.broadcast %cst_28 : f32 to vector<2x256xf32>
    %48 = arith.mulf %35, %47 : vector<2x256xf32>
    %cst_29 = arith.constant 3.125000e-02 : f32
    %49 = vector.broadcast %cst_29 : f32 to vector<2x256xf32>
    %50 = arith.mulf %37, %49 : vector<2x256xf32>
    %cst_30 = arith.constant 3.125000e-02 : f32
    %51 = vector.broadcast %cst_30 : f32 to vector<2x256xf32>
    %52 = arith.mulf %39, %51 : vector<2x256xf32>
    %cst_31 = arith.constant 3.125000e-02 : f32
    %53 = vector.broadcast %cst_31 : f32 to vector<2x256xf32>
    %54 = arith.mulf %41, %53 : vector<2x256xf32>
    %55 = tpu.concatenate %46, %48, %50, %52, %54 in 1 : vector<2x256xf32>, vector<2x256xf32>, vector<2x256xf32>, vector<2x256xf32>, vector<2x256xf32> -> vector<2x1280xf32>
    %56 = vector.extract_strided_slice %1 {offsets = [0, 16, 0, 0], sizes = [2, 8, 8, 256], strides = [1, 1, 1, 1]} : vector<2x24x8x256xf32> to vector<2x8x8x256xf32>
    %57 = vector.extract_strided_slice %56 {offsets = [0, 0, 0, 0], sizes = [2, 4, 8, 256], strides = [1, 1, 1, 1]} : vector<2x8x8x256xf32> to vector<2x4x8x256xf32>
    %cst_32 = arith.constant dense<0.000000e+00> : vector<2x8x256xf32>
    %58 = vector.multi_reduction <add>, %57, %cst_32 [1] : vector<2x4x8x256xf32> to vector<2x8x256xf32>
    %59 = vector.extract_strided_slice %56 {offsets = [0, 4, 0, 0], sizes = [2, 4, 8, 256], strides = [1, 1, 1, 1]} : vector<2x8x8x256xf32> to vector<2x4x8x256xf32>
    %cst_33 = arith.constant dense<0.000000e+00> : vector<2x8x256xf32>
    %60 = vector.multi_reduction <add>, %59, %cst_33 [1] : vector<2x4x8x256xf32> to vector<2x8x256xf32>
    %61 = vector.extract_strided_slice %58 {offsets = [0, 0, 0], sizes = [2, 4, 256], strides = [1, 1, 1]} : vector<2x8x256xf32> to vector<2x4x256xf32>
    %cst_34 = arith.constant dense<0.000000e+00> : vector<2x256xf32>
    %62 = vector.multi_reduction <add>, %61, %cst_34 [1] : vector<2x4x256xf32> to vector<2x256xf32>
    %63 = vector.extract_strided_slice %58 {offsets = [0, 4, 0], sizes = [2, 4, 256], strides = [1, 1, 1]} : vector<2x8x256xf32> to vector<2x4x256xf32>
    %cst_35 = arith.constant dense<0.000000e+00> : vector<2x256xf32>
    %64 = vector.multi_reduction <add>, %63, %cst_35 [1] : vector<2x4x256xf32> to vector<2x256xf32>
    %65 = vector.extract_strided_slice %60 {offsets = [0, 0, 0], sizes = [2, 4, 256], strides = [1, 1, 1]} : vector<2x8x256xf32> to vector<2x4x256xf32>
    %cst_36 = arith.constant dense<0.000000e+00> : vector<2x256xf32>
    %66 = vector.multi_reduction <add>, %65, %cst_36 [1] : vector<2x4x256xf32> to vector<2x256xf32>
    %67 = vector.extract_strided_slice %60 {offsets = [0, 4, 0], sizes = [2, 4, 256], strides = [1, 1, 1]} : vector<2x8x256xf32> to vector<2x4x256xf32>
    %cst_37 = arith.constant dense<0.000000e+00> : vector<2x256xf32>
    %68 = vector.multi_reduction <add>, %67, %cst_37 [1] : vector<2x4x256xf32> to vector<2x256xf32>
    %69 = arith.addf %62, %64 : vector<2x256xf32>
    %70 = arith.addf %69, %66 : vector<2x256xf32>
    %71 = arith.addf %70, %68 : vector<2x256xf32>
    %cst_38 = arith.constant 1.562500e-02 : f32
    %72 = vector.broadcast %cst_38 : f32 to vector<2x256xf32>
    %73 = arith.mulf %71, %72 : vector<2x256xf32>
    %cst_39 = arith.constant 6.250000e-02 : f32
    %74 = vector.broadcast %cst_39 : f32 to vector<2x256xf32>
    %75 = arith.mulf %62, %74 : vector<2x256xf32>
    %cst_40 = arith.constant 6.250000e-02 : f32
    %76 = vector.broadcast %cst_40 : f32 to vector<2x256xf32>
    %77 = arith.mulf %64, %76 : vector<2x256xf32>
    %cst_41 = arith.constant 6.250000e-02 : f32
    %78 = vector.broadcast %cst_41 : f32 to vector<2x256xf32>
    %79 = arith.mulf %66, %78 : vector<2x256xf32>
    %cst_42 = arith.constant 6.250000e-02 : f32
    %80 = vector.broadcast %cst_42 : f32 to vector<2x256xf32>
    %81 = arith.mulf %68, %80 : vector<2x256xf32>
    %82 = tpu.concatenate %73, %75, %77, %79, %81 in 1 : vector<2x256xf32>, vector<2x256xf32>, vector<2x256xf32>, vector<2x256xf32>, vector<2x256xf32> -> vector<2x1280xf32>
    %83 = vector.extract_strided_slice %2 {offsets = [0, 0, 0, 0], sizes = [2, 6, 4, 256], strides = [1, 1, 1, 1]} : vector<2x12x4x256xf32> to vector<2x6x4x256xf32>
    %cst_43 = arith.constant dense<0.000000e+00> : vector<2x4x256xf32>
    %84 = vector.multi_reduction <add>, %83, %cst_43 [1] : vector<2x6x4x256xf32> to vector<2x4x256xf32>
    %85 = vector.extract_strided_slice %2 {offsets = [0, 6, 0, 0], sizes = [2, 6, 4, 256], strides = [1, 1, 1, 1]} : vector<2x12x4x256xf32> to vector<2x6x4x256xf32>
    %cst_44 = arith.constant dense<0.000000e+00> : vector<2x4x256xf32>
    %86 = vector.multi_reduction <add>, %85, %cst_44 [1] : vector<2x6x4x256xf32> to vector<2x4x256xf32>
    %87 = vector.extract_strided_slice %84 {offsets = [0, 0, 0], sizes = [2, 2, 256], strides = [1, 1, 1]} : vector<2x4x256xf32> to vector<2x2x256xf32>
    %cst_45 = arith.constant dense<0.000000e+00> : vector<2x256xf32>
    %88 = vector.multi_reduction <add>, %87, %cst_45 [1] : vector<2x2x256xf32> to vector<2x256xf32>
    %89 = vector.extract_strided_slice %84 {offsets = [0, 2, 0], sizes = [2, 2, 256], strides = [1, 1, 1]} : vector<2x4x256xf32> to vector<2x2x256xf32>
    %cst_46 = arith.constant dense<0.000000e+00> : vector<2x256xf32>
    %90 = vector.multi_reduction <add>, %89, %cst_46 [1] : vector<2x2x256xf32> to vector<2x256xf32>
    %91 = vector.extract_strided_slice %86 {offsets = [0, 0, 0], sizes = [2, 2, 256], strides = [1, 1, 1]} : vector<2x4x256xf32> to vector<2x2x256xf32>
    %cst_47 = arith.constant dense<0.000000e+00> : vector<2x256xf32>
    %92 = vector.multi_reduction <add>, %91, %cst_47 [1] : vector<2x2x256xf32> to vector<2x256xf32>
    %93 = vector.extract_strided_slice %86 {offsets = [0, 2, 0], sizes = [2, 2, 256], strides = [1, 1, 1]} : vector<2x4x256xf32> to vector<2x2x256xf32>
    %cst_48 = arith.constant dense<0.000000e+00> : vector<2x256xf32>
    %94 = vector.multi_reduction <add>, %93, %cst_48 [1] : vector<2x2x256xf32> to vector<2x256xf32>
    %95 = arith.addf %88, %90 : vector<2x256xf32>
    %96 = arith.addf %95, %92 : vector<2x256xf32>
    %97 = arith.addf %96, %94 : vector<2x256xf32>
    %cst_49 = arith.constant 0.020833334 : f32
    %98 = vector.broadcast %cst_49 : f32 to vector<2x256xf32>
    %99 = arith.mulf %97, %98 : vector<2x256xf32>
    %cst_50 = arith.constant 0.0833333358 : f32
    %100 = vector.broadcast %cst_50 : f32 to vector<2x256xf32>
    %101 = arith.mulf %88, %100 : vector<2x256xf32>
    %cst_51 = arith.constant 0.0833333358 : f32
    %102 = vector.broadcast %cst_51 : f32 to vector<2x256xf32>
    %103 = arith.mulf %90, %102 : vector<2x256xf32>
    %cst_52 = arith.constant 0.0833333358 : f32
    %104 = vector.broadcast %cst_52 : f32 to vector<2x256xf32>
    %105 = arith.mulf %92, %104 : vector<2x256xf32>
    %cst_53 = arith.constant 0.0833333358 : f32
    %106 = vector.broadcast %cst_53 : f32 to vector<2x256xf32>
    %107 = arith.mulf %94, %106 : vector<2x256xf32>
    %108 = tpu.concatenate %99, %101, %103, %105, %107 in 1 : vector<2x256xf32>, vector<2x256xf32>, vector<2x256xf32>, vector<2x256xf32>, vector<2x256xf32> -> vector<2x1280xf32>
    %c0_54 = arith.constant 0 : index
    %c0_55 = arith.constant 0 : index
    %109 = vector.load %arg4[%c0_54, %c0_55] : memref<1280x128xf32, #tpu.memory_space<vmem>>, vector<1280x128xf32>
    %cst_56 = arith.constant dense<0.000000e+00> : vector<2x128xf32>
    %110 = tpu.matmul %28, %109, %cst_56 {dimension_numbers = #tpu.dot_dimension_numbers<[1], [0], [0], [1], [0, 0, 1, 1], [], []>} : vector<2x1280xf32>, vector<1280x128xf32>, vector<2x128xf32> -> vector<2x128xf32>
    %c0_57 = arith.constant 0 : index
    %c0_58 = arith.constant 0 : index
    %111 = vector.load %arg5[%c0_57, %c0_58] : memref<1280x128xf32, #tpu.memory_space<vmem>>, vector<1280x128xf32>
    %cst_59 = arith.constant dense<0.000000e+00> : vector<2x128xf32>
    %112 = tpu.matmul %55, %111, %cst_59 {dimension_numbers = #tpu.dot_dimension_numbers<[1], [0], [0], [1], [0, 0, 1, 1], [], []>} : vector<2x1280xf32>, vector<1280x128xf32>, vector<2x128xf32> -> vector<2x128xf32>
    %113 = arith.addf %110, %112 : vector<2x128xf32>
    %c0_60 = arith.constant 0 : index
    %c0_61 = arith.constant 0 : index
    %114 = vector.load %arg6[%c0_60, %c0_61] : memref<1280x128xf32, #tpu.memory_space<vmem>>, vector<1280x128xf32>
    %cst_62 = arith.constant dense<0.000000e+00> : vector<2x128xf32>
    %115 = tpu.matmul %82, %114, %cst_62 {dimension_numbers = #tpu.dot_dimension_numbers<[1], [0], [0], [1], [0, 0, 1, 1], [], []>} : vector<2x1280xf32>, vector<1280x128xf32>, vector<2x128xf32> -> vector<2x128xf32>
    %116 = arith.addf %113, %115 : vector<2x128xf32>
    %c0_63 = arith.constant 0 : index
    %c0_64 = arith.constant 0 : index
    %117 = vector.load %arg7[%c0_63, %c0_64] : memref<1280x128xf32, #tpu.memory_space<vmem>>, vector<1280x128xf32>
    %cst_65 = arith.constant dense<0.000000e+00> : vector<2x128xf32>
    %118 = tpu.matmul %108, %117, %cst_65 {dimension_numbers = #tpu.dot_dimension_numbers<[1], [0], [0], [1], [0, 0, 1, 1], [], []>} : vector<2x1280xf32>, vector<1280x128xf32>, vector<2x128xf32> -> vector<2x128xf32>
    %119 = arith.addf %116, %118 : vector<2x128xf32>
    %c0_66 = arith.constant 0 : index
    %c0_67 = arith.constant 0 : index
    %120 = vector.load %arg8[%c0_66, %c0_67] : memref<1x128xf32, #tpu.memory_space<vmem>>, vector<1x128xf32>
    %121 = vector.broadcast %120 : vector<1x128xf32> to vector<2x128xf32>
    %122 = arith.addf %119, %121 : vector<2x128xf32>
    %c0_68 = arith.constant 0 : index
    %c0_69 = arith.constant 0 : index
    %123 = vector.load %arg9[%c0_68, %c0_69] : memref<2x128xf32, #tpu.memory_space<vmem>>, vector<2x128xf32>
    tpu.vector_store %arg9[%c0_68, %c0_69], %122 {strides = array<i32>} : memref<2x128xf32, #tpu.memory_space<vmem>>, vector<2x128xf32>,
    return
  }
  func.func @transform_0(%arg0: i32) -> (i32, i32, i32, i32) {
    %c0_i32 = arith.constant 0 : i32
    %c0_i32_0 = arith.constant 0 : i32
    %c0_i32_1 = arith.constant 0 : i32
    %c0_i32_2 = arith.constant 0 : i32
    return %arg0, %c0_i32, %c0_i32_0, %c0_i32_1 : i32, i32, i32, i32
  }
  func.func @transform_1(%arg0: i32) -> (i32, i32, i32, i32) {
    %c0_i32 = arith.constant 0 : i32
    %c0_i32_0 = arith.constant 0 : i32
    %c0_i32_1 = arith.constant 0 : i32
    %c0_i32_2 = arith.constant 0 : i32
    return %arg0, %c0_i32, %c0_i32_0, %c0_i32_1 : i32, i32, i32, i32
  }
  func.func @transform_2(%arg0: i32) -> (i32, i32, i32, i32) {
    %c0_i32 = arith.constant 0 : i32
    %c0_i32_0 = arith.constant 0 : i32
    %c0_i32_1 = arith.constant 0 : i32
    %c0_i32_2 = arith.constant 0 : i32
    return %arg0, %c0_i32, %c0_i32_0, %c0_i32_1 : i32, i32, i32, i32
  }
  func.func @transform_3(%arg0: i32) -> (i32, i32) {
    %c0_i32 = arith.constant 0 : i32
    %c0_i32_0 = arith.constant 0 : i32
    %c0_i32_1 = arith.constant 0 : i32
    return %c0_i32, %c0_i32_0 : i32, i32
  }
  func.func @transform_4(%arg0: i32) -> (i32, i32) {
    %c0_i32 = arith.constant 0 : i32
    %c0_i32_0 = arith.constant 0 : i32
    %c0_i32_1 = arith.constant 0 : i32
    return %c0_i32, %c0_i32_0 : i32, i32
  }
  func.func @transform_5(%arg0: i32) -> (i32, i32) {
    %c0_i32 = arith.constant 0 : i32
    %c0_i32_0 = arith.constant 0 : i32
    %c0_i32_1 = arith.constant 0 : i32
    return %c0_i32, %c0_i32_0 : i32, i32
  }
  func.func @transform_6(%arg0: i32) -> (i32, i32) {
    %c0_i32 = arith.constant 0 : i32
    %c0_i32_0 = arith.constant 0 : i32
    %c0_i32_1 = arith.constant 0 : i32
    return %c0_i32, %c0_i32_0 : i32, i32
  }
  func.func @transform_7(%arg0: i32) -> (i32, i32) {
    %c0_i32 = arith.constant 0 : i32
    %c0_i32_0 = arith.constant 0 : i32
    %c0_i32_1 = arith.constant 0 : i32
    return %c0_i32, %c0_i32_0 : i32, i32
  }
  func.func @transform_8(%arg0: i32) -> (i32, i32) {
    %c0_i32 = arith.constant 0 : i32
    %c0_i32_0 = arith.constant 0 : i32
    return %arg0, %c0_i32 : i32, i32
  }
}

</mosaic_0001>

<llo_original>
// kernel: _fused_forward.1
$region0: #{_fused_forward.1}
  #allocation0 [shape = 'u32[]', space=smem, size = 0x4, offset = 0x4, fixed_abs, tag = 'smem constant byte address 0x4 - core index']
  #allocation1 [shape = 'u32[144,128]{1,0:T(1,128)}', space=vmem, size = 0x12000, scoped, tag = 'internal scratch']
  #allocation17 [shape = 's32[]', space=sflag, size = 0x4, offset = 0, fixed_abs, tag = 'sflag constant byte address 0x0 - dummy sync flag']
  %s0 = inlined_call_operand.hbm [shape: f32[2,48,16,256], index: 0, kind: input, shape index: {}]
  %s1 = inlined_call_operand.hbm [shape: f32[2,24,8,256], index: 1, kind: input, shape index: {}]
  %s2 = inlined_call_operand.hbm [shape: f32[2,12,4,256], index: 2, kind: input, shape index: {}]
  %s3 = inlined_call_operand.hbm [shape: f32[1280,128], index: 3, kind: input, shape index: {}]
  %s4 = inlined_call_operand.hbm [shape: f32[1280,128], index: 4, kind: input, shape index: {}]
  %s5 = inlined_call_operand.hbm [shape: f32[1280,128], index: 5, kind: input, shape index: {}]
  %s6 = inlined_call_operand.hbm [shape: f32[1280,128], index: 6, kind: input, shape index: {}]
  %s7 = inlined_call_operand.hbm [shape: f32[1,128], index: 7, kind: input, shape index: {}]
  %s8 = inlined_call_operand.hbm [shape: f32[2,128], index: 8, kind: output, shape index: {}]
  %s9 = sld [smem:[#allocation0]]
  $region74: #{_fused_forward.1} parent=0
    _
  %s11 = ssub.s32 1, %s9
  %s12 = scalar_select 0, %s11, %s9
  $region1: #{_fused_forward.1} parent=0
    #allocation2 [shape = 'u8[786432]{0}', space=vmem, size = 0xc0000, scoped, tag = 'input window, operand 0, single buffered']
    #allocation3 [shape = 's32[1]{0}', space=sflag, size = 0x4, scoped, tag = 'scoped memory for _fused_forward.1']
    #allocation4 [shape = 's32[1]{0}', space=sflag, size = 0x4, scoped, tag = 'scoped memory for _fused_forward.1']
    #allocation5 [shape = 'u8[393216]{0}', space=vmem, size = 0x60000, scoped, tag = 'input window, operand 1, single buffered']
    #allocation6 [shape = 's32[1]{0}', space=sflag, size = 0x4, scoped, tag = 'scoped memory for _fused_forward.1']
    #allocation7 [shape = 'u8[98304]{0}', space=vmem, size = 0x18000, scoped, tag = 'input window, operand 2, single buffered']
    #allocation8 [shape = 'u8[655360]{0}', space=vmem, size = 0xa0000, scoped, tag = 'input window, operand 3, single buffered']
    #allocation9 [shape = 's32[1]{0}', space=sflag, size = 0x4, scoped, tag = 'scoped memory for _fused_forward.1']
    #allocation10 [shape = 'u8[655360]{0}', space=vmem, size = 0xa0000, scoped, tag = 'input window, operand 4, single buffered']
    #allocation11 [shape = 'u8[655360]{0}', space=vmem, size = 0xa0000, scoped, tag = 'input window, operand 5, single buffered']
    #allocation12 [shape = 's32[1]{0}', space=sflag, size = 0x4, scoped, tag = 'scoped memory for _fused_forward.1']
    #allocation13 [shape = 'u8[655360]{0}', space=vmem, size = 0xa0000, scoped, tag = 'input window, operand 6, single buffered']
    #allocation14 [shape = 'u8[512]{0}', space=vmem, size = 0x400, scoped, tag = 'input window, operand 7, single buffered']
    #allocation15 [shape = 's32[1]{0}', space=sflag, size = 0x4, scoped, tag = 'scoped memory for _fused_forward.1']
    #allocation16 [shape = 'u8[1024]{0}', space=vmem, size = 0x400, scoped, tag = 'output window, operand 0, single buffered']
    %13 = vsyncpa [#allocation3], 0
    %14 = vsyncpa [#allocation6], 0
    %15 = vsyncpa [#allocation9], 0
    %16 = vsyncpa [#allocation12], 0
    %17 = vsyncpa [#allocation15], 0
    %18 = vsyncpa [#allocation4], 0
    // Predicated region
    $region2: #{_fused_forward.1} parent=1 // pred_check
      _
    $region3: #{_fused_forward.1} parent=1 // pred_check_branch
      %20 = sbr.rel (0) target = $region5
    $region4: #{_fused_forward.1} parent=1 // pred_region
      #allocation18 [shape = 'u32[6]{0}', space=smem, size = 0x18, scoped, tag = 'DMA stride descriptor']
      %s22 = ssub.s32 24576, 24576
      %23 = vsyncadd [#allocation3], %s22
      %s25 = sshll.u32 1, 14
      %s26 = sxor.u32 4294967295, %s25
      %s28 = sld [smem:[#allocation0]]
      %s29 = sadd.s32 2, %s28
      %s31 = sshll.u32 7, 26
      %s32 = sxor.u32 4294967295, %s31
      %s33 = sand.u32 0, %s32
      %s34 = sshll.u32 %s29, 26
      %s35 = sor.u32 %s33, %s34
      %s36 = sshll.u32 [#allocation2], 4
      %s37 = int_to_ptr.vmem [resolvable:$true] %s36
      %43 = sst [smem:[#allocation18]] 24576
      %s44 = scalar_lea.smem [#allocation18], 1
      %45 = sst [smem:[%s44]] 12288
      %s46 = scalar_lea.smem [#allocation18], 2
      %47 = sst [smem:[%s46]] 48
      %s48 = scalar_lea.smem [#allocation18], 3
      %49 = sst [smem:[%s48]] 256
      %s50 = scalar_lea.smem [#allocation18], 4
      %51 = sst [smem:[%s50]] 256
      %s52 = scalar_lea.smem [#allocation18], 5
      %53 = sst [smem:[%s52]] 16
      %55 = dma.general %s0, 24576, %s37, [#allocation3], [#allocation17], [#allocation18], %s35, 0
    $region5: #{_fused_forward.1} parent=1 // pred_fallthru
      _
    // Predicated region
    $region6: #{_fused_forward.1} parent=1 // pred_check
      _
    $region7: #{_fused_forward.1} parent=1 // pred_check_branch
      %57 = sbr.rel (0) target = $region9
    $region8: #{_fused_forward.1} parent=1 // pred_region
      %s59 = ssub.s32 12288, 12288
      %60 = vsyncadd [#allocation6], %s59
      %s61 = sshll.u32 [#allocation5], 4
      %s62 = int_to_ptr.vmem [resolvable:$true] %s61
      %67 = dma.hbm_to_vmem [thread:$0]  %s1, 12288, %s62, [#allocation6], 256, 256, 16
    $region9: #{_fused_forward.1} parent=1 // pred_fallthru
      _
    // Predicated region
    $region10: #{_fused_forward.1} parent=1 // pred_check
      _
    $region11: #{_fused_forward.1} parent=1 // pred_check_branch
      %69 = sbr.rel (0) target = $region13
    $region12: #{_fused_forward.1} parent=1 // pred_region
      %s71 = ssub.s32 3072, 3072
      %72 = vsyncadd [#allocation6], %s71
      %s73 = sshll.u32 [#allocation7], 4
      %s74 = int_to_ptr.vmem [resolvable:$true] %s73
      %79 = dma.hbm_to_vmem [thread:$0]  %s2, 3072, %s74, [#allocation6], 128, 128, 8
    $region13: #{_fused_forward.1} parent=1 // pred_fallthru
      _
    // Predicated region
    $region14: #{_fused_forward.1} parent=1 // pred_check
      _
    $region15: #{_fused_forward.1} parent=1 // pred_check_branch
      %81 = sbr.rel (0) target = $region17
    $region16: #{_fused_forward.1} parent=1 // pred_region
      %s83 = ssub.s32 20480, 20480
      %84 = vsyncadd [#allocation9], %s83
      %s85 = sshll.u32 [#allocation8], 4
      %s86 = int_to_ptr.vmem [resolvable:$true] %s85
      %91 = dma.hbm_to_vmem [thread:$0]  %s3, 20480, %s86, [#allocation9], 128, 128, 8
    $region17: #{_fused_forward.1} parent=1 // pred_fallthru
      _
    // Predicated region
    $region18: #{_fused_forward.1} parent=1 // pred_check
      _
    $region19: #{_fused_forward.1} parent=1 // pred_check_branch
      %93 = sbr.rel (0) target = $region21
    $region20: #{_fused_forward.1} parent=1 // pred_region
      %s95 = ssub.s32 20480, 20480
      %96 = vsyncadd [#allocation9], %s95
      %s97 = sshll.u32 [#allocation10], 4
      %s98 = int_to_ptr.vmem [resolvable:$true] %s97
      %103 = dma.hbm_to_vmem [thread:$0]  %s4, 20480, %s98, [#allocation9], 128, 128, 8
    $region21: #{_fused_forward.1} parent=1 // pred_fallthru
      _
    // Predicated region
    $region22: #{_fused_forward.1} parent=1 // pred_check
      _
    $region23: #{_fused_forward.1} parent=1 // pred_check_branch
      %105 = sbr.rel (0) target = $region25
    $region24: #{_fused_forward.1} parent=1 // pred_region
      %s107 = ssub.s32 20480, 20480
      %108 = vsyncadd [#allocation12], %s107
      %s109 = sshll.u32 [#allocation11], 4
      %s110 = int_to_ptr.vmem [resolvable:$true] %s109
      %115 = dma.hbm_to_vmem [thread:$0]  %s5, 20480, %s110, [#allocation12], 128, 128, 8
    $region25: #{_fused_forward.1} parent=1 // pred_fallthru
      _
    // Predicated region
    $region26: #{_fused_forward.1} parent=1 // pred_check
      _
    $region27: #{_fused_forward.1} parent=1 // pred_check_branch
      %117 = sbr.rel (0) target = $region29
    $region28: #{_fused_forward.1} parent=1 // pred_region
      %s119 = ssub.s32 20480, 20480
      %120 = vsyncadd [#allocation12], %s119
      %s121 = sshll.u32 [#allocation13], 4
      %s122 = int_to_ptr.vmem [resolvable:$true] %s121
      %127 = dma.hbm_to_vmem [thread:$0]  %s6, 20480, %s122, [#allocation12], 128, 128, 8
    $region29: #{_fused_forward.1} parent=1 // pred_fallthru
      _
    // Predicated region
    $region30: #{_fused_forward.1} parent=1 // pred_check
      _
    $region31: #{_fused_forward.1} parent=1 // pred_check_branch
      %129 = sbr.rel (0) target = $region33
    $region32: #{_fused_forward.1} parent=1 // pred_region
      %s131 = ssub.s32 16, 16
      %132 = vsyncadd [#allocation15], %s131
      %s134 = sshll.u32 [#allocation14], 4
      %s135 = int_to_ptr.vmem [resolvable:$true] %s134
      %137 = dma.hbm_to_vmem [thread:$0]  %s7, 16, %s135, [#allocation15]
    $region33: #{_fused_forward.1} parent=1 // pred_fallthru
      _
    // Predicated region
    $region34: #{_fused_forward.1} parent=1 // pred_check
      _
    $region35: #{_fused_forward.1} parent=1 // pred_check_branch
      %139 = sbr.rel (0) target = $region37
    $region36: #{_fused_forward.1} parent=1 // pred_region
      %140 = dma.done [#allocation3], 24576
    $region37: #{_fused_forward.1} parent=1 // pred_fallthru
      _
    // Predicated region
    $region38: #{_fused_forward.1} parent=1 // pred_check
      _
    $region39: #{_fused_forward.1} parent=1 // pred_check_branch
      %142 = sbr.rel (0) target = $region41
    $region40: #{_fused_forward.1} parent=1 // pred_region
      %143 = dma.done [#allocation6], 12288
    $region41: #{_fused_forward.1} parent=1 // pred_fallthru
      _
    // Predicated region
    $region42: #{_fused_forward.1} parent=1 // pred_check
      _
    $region43: #{_fused_forward.1} parent=1 // pred_check_branch
      %145 = sbr.rel (0) target = $region45
    $region44: #{_fused_forward.1} parent=1 // pred_region
      %146 = dma.done [#allocation6], 3072
    $region45: #{_fused_forward.1} parent=1 // pred_fallthru
      _
    // Predicated region
    $region46: #{_fused_forward.1} parent=1 // pred_check
      _
    $region47: #{_fused_forward.1} parent=1 // pred_check_branch
      %148 = sbr.rel (0) target = $region49
    $region48: #{_fused_forward.1} parent=1 // pred_region
      %149 = dma.done [#allocation9], 20480
    $region49: #{_fused_forward.1} parent=1 // pred_fallthru
      _
    // Predicated region
    $region50: #{_fused_forward.1} parent=1 // pred_check
      _
    $region51: #{_fused_forward.1} parent=1 // pred_check_branch
      %151 = sbr.rel (0) target = $region53
    $region52: #{_fused_forward.1} parent=1 // pred_region
      %152 = dma.done [#allocation9], 20480
    $region53: #{_fused_forward.1} parent=1 // pred_fallthru
      _
    // Predicated region
    $region54: #{_fused_forward.1} parent=1 // pred_check
      _
    $region55: #{_fused_forward.1} parent=1 // pred_check_branch
      %154 = sbr.rel (0) target = $region57
    $region56: #{_fused_forward.1} parent=1 // pred_region
      %155 = dma.done [#allocation12], 20480
    $region57: #{_fused_forward.1} parent=1 // pred_fallthru
      _
    // Predicated region
    $region58: #{_fused_forward.1} parent=1 // pred_check
      _
    $region59: #{_fused_forward.1} parent=1 // pred_check_branch
      %157 = sbr.rel (0) target = $region61
    $region60: #{_fused_forward.1} parent=1 // pred_region
      %158 = dma.done [#allocation12], 20480
    $region61: #{_fused_forward.1} parent=1 // pred_fallthru
      _
    // Predicated region
    $region62: #{_fused_forward.1} parent=1 // pred_check
      _
    $region63: #{_fused_forward.1} parent=1 // pred_check_branch
      %160 = sbr.rel (0) target = $region65
    $region64: #{_fused_forward.1} parent=1 // pred_region
      %161 = dma.done [#allocation15], 16
    $region65: #{_fused_forward.1} parent=1 // pred_fallthru
      _
    %v162 = vld [vmem:[#allocation2] sm:$0xff]
    %v163 = vld [vmem:[#allocation2 + $0x8] sm:$0xff]
    %v164 = vld [vmem:[#allocation2 + $0x10] sm:$0xff]
    %v165 = vld [vmem:[#allocation2 + $0x18] sm:$0xff]
    %v166 = vld [vmem:[#allocation2 + $0x20] sm:$0xff]
    %v167 = vld [vmem:[#allocation2 + $0x28] sm:$0xff]
    %v168 = vld [vmem:[#allocation2 + $0x30] sm:$0xff]
    %v169 = vld [vmem:[#allocation2 + $0x38] sm:$0xff]
    %v170 = vld [vmem:[#allocation2 + $0x40] sm:$0xff]
    %v171 = vld [vmem:[#allocation2 + $0x48] sm:$0xff]
    %v172 = vld [vmem:[#allocation2 + $0x50] sm:$0xff]
    %v173 = vld [vmem:[#allocation2 + $0x58] sm:$0xff]
    %v174 = vld [vmem:[#allocation2 + $0x60] sm:$0xff]
    %v175 = vld [vmem:[#allocation2 + $0x68] sm:$0xff]
    %v176 = vld [vmem:[#allocation2 + $0x70] sm:$0xff]
    %v177 = vld [vmem:[#allocation2 + $0x78] sm:$0xff]
    %v178 = vld [vmem:[#allocation2 + $0x80] sm:$0xff]
    %v179 = vld [vmem:[#allocation2 + $0x88] sm:$0xff]
    %v180 = vld [vmem:[#allocation2 + $0x90] sm:$0xff]
    %v181 = vld [vmem:[#allocation2 + $0x98] sm:$0xff]
    %v182 = vld [vmem:[#allocation2 + $0xa0] sm:$0xff]
    %v183 = vld [vmem:[#allocation2 + $0xa8] sm:$0xff]
    %v184 = vld [vmem:[#allocation2 + $0xb0] sm:$0xff]
    %v185 = vld [vmem:[#allocation2 + $0xb8] sm:$0xff]
    %v186 = vld [vmem:[#allocation2 + $0xc0] sm:$0xff]
    %v187 = vld [vmem:[#allocation2 + $0xc8] sm:$0xff]
    %v188 = vld [vmem:[#allocation2 + $0xd0] sm:$0xff]
    %v189 = vld [vmem:[#allocation2 + $0xd8] sm:$0xff]
    %v190 = vld [vmem:[#allocation2 + $0xe0] sm:$0xff]
    %v191 = vld [vmem:[#allocation2 + $0xe8] sm:$0xff]
    %v192 = vld [vmem:[#allocation2 + $0xf0] sm:$0xff]
    %v193 = vld [vmem:[#allocation2 + $0xf8] sm:$0xff]
    %v194 = vld [vmem:[#allocation2 + $0x100] sm:$0xff]
    %v195 = vld [vmem:[#allocation2 + $0x108] sm:$0xff]
    %v196 = vld [vmem:[#allocation2 + $0x110] sm:$0xff]
    %v197 = vld [vmem:[#allocation2 + $0x118] sm:$0xff]
    %v198 = vld [vmem:[#allocation2 + $0x120] sm:$0xff]
    %v199 = vld [vmem:[#allocation2 + $0x128] sm:$0xff]
    %v200 = vld [vmem:[#allocation2 + $0x130] sm:$0xff]
    %v201 = vld [vmem:[#allocation2 + $0x138] sm:$0xff]
    %v202 = vld [vmem:[#allocation2 + $0x140] sm:$0xff]
    %v203 = vld [vmem:[#allocation2 + $0x148] sm:$0xff]
    %v204 = vld [vmem:[#allocation2 + $0x150] sm:$0xff]
    %v205 = vld [vmem:[#allocation2 + $0x158] sm:$0xff]
    %v206 = vld [vmem:[#allocation2 + $0x160] sm:$0xff]
    %v207 = vld [vmem:[#allocation2 + $0x168] sm:$0xff]
    %v208 = vld [vmem:[#allocation2 + $0x170] sm:$0xff]
    %v209 = vld [vmem:[#allocation2 + $0x178] sm:$0xff]
    %v210 = vld [vmem:[#allocation2 + $0x180] sm:$0xff]
    %v211 = vld [vmem:[#allocation2 + $0x188] sm:$0xff]
    %v212 = vld [vmem:[#allocation2 + $0x190] sm:$0xff]
    %v213 = vld [vmem:[#allocation2 + $0x198] sm:$0xff]
    %v214 = vld [vmem:[#allocation2 + $0x1a0] sm:$0xff]
    %v215 = vld [vmem:[#allocation2 + $0x1a8] sm:$0xff]
    %v216 = vld [vmem:[#allocation2 + $0x1b0] sm:$0xff]
    %v217 = vld [vmem:[#allocation2 + $0x1b8] sm:$0xff]
    %v218 = vld [vmem:[#allocation2 + $0x1c0] sm:$0xff]
    %v219 = vld [vmem:[#allocation2 + $0x1c8] sm:$0xff]
    %v220 = vld [vmem:[#allocation2 + $0x1d0] sm:$0xff]
    %v221 = vld [vmem:[#allocation2 + $0x1d8] sm:$0xff]
    %v222 = vld [vmem:[#allocation2 + $0x1e0] sm:$0xff]
    %v223 = vld [vmem:[#allocation2 + $0x1e8] sm:$0xff]
    %v224 = vld [vmem:[#allocation2 + $0x1f0] sm:$0xff]
    %v225 = vld [vmem:[#allocation2 + $0x1f8] sm:$0xff]
    %v226 = vld [vmem:[#allocation2 + $0x200] sm:$0xff]
    %v227 = vld [vmem:[#allocation2 + $0x208] sm:$0xff]
    %v228 = vld [vmem:[#allocation2 + $0x210] sm:$0xff]
    %v229 = vld [vmem:[#allocation2 + $0x218] sm:$0xff]
    %v230 = vld [vmem:[#allocation2 + $0x220] sm:$0xff]
    %v231 = vld [vmem:[#allocation2 + $0x228] sm:$0xff]
    %v232 = vld [vmem:[#allocation2 + $0x230] sm:$0xff]
    %v233 = vld [vmem:[#allocation2 + $0x238] sm:$0xff]
    %v234 = vld [vmem:[#allocation2 + $0x240] sm:$0xff]
    %v235 = vld [vmem:[#allocation2 + $0x248] sm:$0xff]
    %v236 = vld [vmem:[#allocation2 + $0x250] sm:$0xff]
    %v237 = vld [vmem:[#allocation2 + $0x258] sm:$0xff]
    %v238 = vld [vmem:[#allocation2 + $0x260] sm:$0xff]
    %v239 = vld [vmem:[#allocation2 + $0x268] sm:$0xff]
    %v240 = vld [vmem:[#allocation2 + $0x270] sm:$0xff]
    %v241 = vld [vmem:[#allocation2 + $0x278] sm:$0xff]
    %v242 = vld [vmem:[#allocation2 + $0x280] sm:$0xff]
    %v243 = vld [vmem:[#allocation2 + $0x288] sm:$0xff]
    %v244 = vld [vmem:[#allocation2 + $0x290] sm:$0xff]
    %v245 = vld [vmem:[#allocation2 + $0x298] sm:$0xff]
    %v246 = vld [vmem:[#allocation2 + $0x2a0] sm:$0xff]
    %v247 = vld [vmem:[#allocation2 + $0x2a8] sm:$0xff]
    %v248 = vld [vmem:[#allocation2 + $0x2b0] sm:$0xff]
    %v249 = vld [vmem:[#allocation2 + $0x2b8] sm:$0xff]
    %v250 = vld [vmem:[#allocation2 + $0x2c0] sm:$0xff]
    %v251 = vld [vmem:[#allocation2 + $0x2c8] sm:$0xff]
    %v252 = vld [vmem:[#allocation2 + $0x2d0] sm:$0xff]
    %v253 = vld [vmem:[#allocation2 + $0x2d8] sm:$0xff]
    %v254 = vld [vmem:[#allocation2 + $0x2e0] sm:$0xff]
    %v255 = vld [vmem:[#allocation2 + $0x2e8] sm:$0xff]
    %v256 = vld [vmem:[#allocation2 + $0x2f0] sm:$0xff]
    %v257 = vld [vmem:[#allocation2 + $0x2f8] sm:$0xff]
    %v258 = vld [vmem:[#allocation2 + $0x300] sm:$0xff]
    %v259 = vld [vmem:[#allocation2 + $0x308] sm:$0xff]
    %v260 = vld [vmem:[#allocation2 + $0x310] sm:$0xff]
    %v261 = vld [vmem:[#allocation2 + $0x318] sm:$0xff]
    %v262 = vld [vmem:[#allocation2 + $0x320] sm:$0xff]
    %v263 = vld [vmem:[#allocation2 + $0x328] sm:$0xff]
    %v264 = vld [vmem:[#allocation2 + $0x330] sm:$0xff]
    %v265 = vld [vmem:[#allocation2 + $0x338] sm:$0xff]
    %v266 = vld [vmem:[#allocation2 + $0x340] sm:$0xff]
    %v267 = vld [vmem:[#allocation2 + $0x348] sm:$0xff]
    %v268 = vld [vmem:[#allocation2 + $0x350] sm:$0xff]
    %v269 = vld [vmem:[#allocation2 + $0x358] sm:$0xff]
    %v270 = vld [vmem:[#allocation2 + $0x360] sm:$0xff]
    %v271 = vld [vmem:[#allocation2 + $0x368] sm:$0xff]
    %v272 = vld [vmem:[#allocation2 + $0x370] sm:$0xff]
    %v273 = vld [vmem:[#allocation2 + $0x378] sm:$0xff]
    %v274 = vld [vmem:[#allocation2 + $0x380] sm:$0xff]
    %v275 = vld [vmem:[#allocation2 + $0x388] sm:$0xff]
    %v276 = vld [vmem:[#allocation2 + $0x390] sm:$0xff]
    %v277 = vld [vmem:[#allocation2 + $0x398] sm:$0xff]
    %v278 = vld [vmem:[#allocation2 + $0x3a0] sm:$0xff]
    %v279 = vld [vmem:[#allocation2 + $0x3a8] sm:$0xff]
    %v280 = vld [vmem:[#allocation2 + $0x3b0] sm:$0xff]
    %v281 = vld [vmem:[#allocation2 + $0x3b8] sm:$0xff]
    %v282 = vld [vmem:[#allocation2 + $0x3c0] sm:$0xff]
    %v283 = vld [vmem:[#allocation2 + $0x3c8] sm:$0xff]
    %v284 = vld [vmem:[#allocation2 + $0x3d0] sm:$0xff]
    %v285 = vld [vmem:[#allocation2 + $0x3d8] sm:$0xff]
    %v286 = vld [vmem:[#allocation2 + $0x3e0] sm:$0xff]
    %v287 = vld [vmem:[#allocation2 + $0x3e8] sm:$0xff]
    %v288 = vld [vmem:[#allocation2 + $0x3f0] sm:$0xff]
    %v289 = vld [vmem:[#allocation2 + $0x3f8] sm:$0xff]
    %v290 = vld [vmem:[#allocation2 + $0x400] sm:$0xff]
    %v291 = vld [vmem:[#allocation2 + $0x408] sm:$0xff]
    %v292 = vld [vmem:[#allocation2 + $0x410] sm:$0xff]
    %v293 = vld [vmem:[#allocation2 + $0x418] sm:$0xff]
    %v294 = vld [vmem:[#allocation2 + $0x420] sm:$0xff]
    %v295 = vld [vmem:[#allocation2 + $0x428] sm:$0xff]
    %v296 = vld [vmem:[#allocation2 + $0x430] sm:$0xff]
    %v297 = vld [vmem:[#allocation2 + $0x438] sm:$0xff]
    %v298 = vld [vmem:[#allocation2 + $0x440] sm:$0xff]
    %v299 = vld [vmem:[#allocation2 + $0x448] sm:$0xff]
    %v300 = vld [vmem:[#allocation2 + $0x450] sm:$0xff]
    %v301 = vld [vmem:[#allocation2 + $0x458] sm:$0xff]
    %v302 = vld [vmem:[#allocation2 + $0x460] sm:$0xff]
    %v303 = vld [vmem:[#allocation2 + $0x468] sm:$0xff]
    %v304 = vld [vmem:[#allocation2 + $0x470] sm:$0xff]
    %v305 = vld [vmem:[#allocation2 + $0x478] sm:$0xff]
    %v306 = vld [vmem:[#allocation2 + $0x480] sm:$0xff]
    %v307 = vld [vmem:[#allocation2 + $0x488] sm:$0xff]
    %v308 = vld [vmem:[#allocation2 + $0x490] sm:$0xff]
    %v309 = vld [vmem:[#allocation2 + $0x498] sm:$0xff]
    %v310 = vld [vmem:[#allocation2 + $0x4a0] sm:$0xff]
    %v311 = vld [vmem:[#allocation2 + $0x4a8] sm:$0xff]
    %v312 = vld [vmem:[#allocation2 + $0x4b0] sm:$0xff]
    %v313 = vld [vmem:[#allocation2 + $0x4b8] sm:$0xff]
    %v314 = vld [vmem:[#allocation2 + $0x4c0] sm:$0xff]
    %v315 = vld [vmem:[#allocation2 + $0x4c8] sm:$0xff]
    %v316 = vld [vmem:[#allocation2 + $0x4d0] sm:$0xff]
    %v317 = vld [vmem:[#allocation2 + $0x4d8] sm:$0xff]
    %v318 = vld [vmem:[#allocation2 + $0x4e0] sm:$0xff]
    %v319 = vld [vmem:[#allocation2 + $0x4e8] sm:$0xff]
    %v320 = vld [vmem:[#allocation2 + $0x4f0] sm:$0xff]
    %v321 = vld [vmem:[#allocation2 + $0x4f8] sm:$0xff]
    %v322 = vld [vmem:[#allocation2 + $0x500] sm:$0xff]
    %v323 = vld [vmem:[#allocation2 + $0x508] sm:$0xff]
    %v324 = vld [vmem:[#allocation2 + $0x510] sm:$0xff]
    %v325 = vld [vmem:[#allocation2 + $0x518] sm:$0xff]
    %v326 = vld [vmem:[#allocation2 + $0x520] sm:$0xff]
    %v327 = vld [vmem:[#allocation2 + $0x528] sm:$0xff]
    %v328 = vld [vmem:[#allocation2 + $0x530] sm:$0xff]
    %v329 = vld [vmem:[#allocation2 + $0x538] sm:$0xff]
    %v330 = vld [vmem:[#allocation2 + $0x540] sm:$0xff]
    %v331 = vld [vmem:[#allocation2 + $0x548] sm:$0xff]
    %v332 = vld [vmem:[#allocation2 + $0x550] sm:$0xff]
    %v333 = vld [vmem:[#allocation2 + $0x558] sm:$0xff]
    %v334 = vld [vmem:[#allocation2 + $0x560] sm:$0xff]
    %v335 = vld [vmem:[#allocation2 + $0x568] sm:$0xff]
    %v336 = vld [vmem:[#allocation2 + $0x570] sm:$0xff]
    %v337 = vld [vmem:[#allocation2 + $0x578] sm:$0xff]
    %v338 = vld [vmem:[#allocation2 + $0x580] sm:$0xff]
    %v339 = vld [vmem:[#allocation2 + $0x588] sm:$0xff]
    %v340 = vld [vmem:[#allocation2 + $0x590] sm:$0xff]
    %v341 = vld [vmem:[#allocation2 + $0x598] sm:$0xff]
    %v342 = vld [vmem:[#allocation2 + $0x5a0] sm:$0xff]
    %v343 = vld [vmem:[#allocation2 + $0x5a8] sm:$0xff]
    %v344 = vld [vmem:[#allocation2 + $0x5b0] sm:$0xff]
    %v345 = vld [vmem:[#allocation2 + $0x5b8] sm:$0xff]
    %v346 = vld [vmem:[#allocation2 + $0x5c0] sm:$0xff]
    %v347 = vld [vmem:[#allocation2 + $0x5c8] sm:$0xff]
    %v348 = vld [vmem:[#allocation2 + $0x5d0] sm:$0xff]
    %v349 = vld [vmem:[#allocation2 + $0x5d8] sm:$0xff]
    %v350 = vld [vmem:[#allocation2 + $0x5e0] sm:$0xff]
    %v351 = vld [vmem:[#allocation2 + $0x5e8] sm:$0xff]
    %v352 = vld [vmem:[#allocation2 + $0x5f0] sm:$0xff]
    %v353 = vld [vmem:[#allocation2 + $0x5f8] sm:$0xff]
    %v354 = vld [vmem:[#allocation5 + $0x40] sm:$0xff]
    %v355 = vld [vmem:[#allocation5 + $0x48] sm:$0xff]
    %v356 = vld [vmem:[#allocation5 + $0x50] sm:$0xff]
    %v357 = vld [vmem:[#allocation5 + $0x58] sm:$0xff]
    %v358 = vld [vmem:[#allocation5 + $0x60] sm:$0xff]
    %v359 = vld [vmem:[#allocation5 + $0x68] sm:$0xff]
    %v360 = vld [vmem:[#allocation5 + $0x70] sm:$0xff]
    %v361 = vld [vmem:[#allocation5 + $0x78] sm:$0xff]
    %v362 = vld [vmem:[#allocation5 + $0x80] sm:$0xff]
    %v363 = vld [vmem:[#allocation5 + $0x88] sm:$0xff]
    %v364 = vld [vmem:[#allocation5 + $0x90] sm:$0xff]
    %v365 = vld [vmem:[#allocation5 + $0x98] sm:$0xff]
    %v366 = vld [vmem:[#allocation5 + $0xa0] sm:$0xff]
    %v367 = vld [vmem:[#allocation5 + $0xa8] sm:$0xff]
    %v368 = vld [vmem:[#allocation5 + $0xb0] sm:$0xff]
    %v369 = vld [vmem:[#allocation5 + $0xb8] sm:$0xff]
    %v370 = vld [vmem:[#allocation5 + $0xc0] sm:$0xff]
    %v371 = vld [vmem:[#allocation5 + $0xc8] sm:$0xff]
    %v372 = vld [vmem:[#allocation5 + $0xd0] sm:$0xff]
    %v373 = vld [vmem:[#allocation5 + $0xd8] sm:$0xff]
    %v374 = vld [vmem:[#allocation5 + $0xe0] sm:$0xff]
    %v375 = vld [vmem:[#allocation5 + $0xe8] sm:$0xff]
    %v376 = vld [vmem:[#allocation5 + $0xf0] sm:$0xff]
    %v377 = vld [vmem:[#allocation5 + $0xf8] sm:$0xff]
    %v378 = vld [vmem:[#allocation5 + $0x100] sm:$0xff]
    %v379 = vld [vmem:[#allocation5 + $0x108] sm:$0xff]
    %v380 = vld [vmem:[#allocation5 + $0x110] sm:$0xff]
    %v381 = vld [vmem:[#allocation5 + $0x118] sm:$0xff]
    %v382 = vld [vmem:[#allocation5 + $0x120] sm:$0xff]
    %v383 = vld [vmem:[#allocation5 + $0x128] sm:$0xff]
    %v384 = vld [vmem:[#allocation5 + $0x130] sm:$0xff]
    %v385 = vld [vmem:[#allocation5 + $0x138] sm:$0xff]
    %v386 = vld [vmem:[#allocation5 + $0x140] sm:$0xff]
    %v387 = vld [vmem:[#allocation5 + $0x148] sm:$0xff]
    %v388 = vld [vmem:[#allocation5 + $0x150] sm:$0xff]
    %v389 = vld [vmem:[#allocation5 + $0x158] sm:$0xff]
    %v390 = vld [vmem:[#allocation5 + $0x160] sm:$0xff]
    %v391 = vld [vmem:[#allocation5 + $0x168] sm:$0xff]
    %v392 = vld [vmem:[#allocation5 + $0x170] sm:$0xff]
    %v393 = vld [vmem:[#allocation5 + $0x178] sm:$0xff]
    %v394 = vld [vmem:[#allocation5 + $0x1c0] sm:$0xff]
    %v395 = vld [vmem:[#allocation5 + $0x1c8] sm:$0xff]
    %v396 = vld [vmem:[#allocation5 + $0x1d0] sm:$0xff]
    %v397 = vld [vmem:[#allocation5 + $0x1d8] sm:$0xff]
    %v398 = vld [vmem:[#allocation5 + $0x1e0] sm:$0xff]
    %v399 = vld [vmem:[#allocation5 + $0x1e8] sm:$0xff]
    %v400 = vld [vmem:[#allocation5 + $0x1f0] sm:$0xff]
    %v401 = vld [vmem:[#allocation5 + $0x1f8] sm:$0xff]
    %v402 = vld [vmem:[#allocation5 + $0x200] sm:$0xff]
    %v403 = vld [vmem:[#allocation5 + $0x208] sm:$0xff]
    %v404 = vld [vmem:[#allocation5 + $0x210] sm:$0xff]
    %v405 = vld [vmem:[#allocation5 + $0x218] sm:$0xff]
    %v406 = vld [vmem:[#allocation5 + $0x220] sm:$0xff]
    %v407 = vld [vmem:[#allocation5 + $0x228] sm:$0xff]
    %v408 = vld [vmem:[#allocation5 + $0x230] sm:$0xff]
    %v409 = vld [vmem:[#allocation5 + $0x238] sm:$0xff]
    %v410 = vld [vmem:[#allocation5 + $0x240] sm:$0xff]
    %v411 = vld [vmem:[#allocation5 + $0x248] sm:$0xff]
    %v412 = vld [vmem:[#allocation5 + $0x250] sm:$0xff]
    %v413 = vld [vmem:[#allocation5 + $0x258] sm:$0xff]
    %v414 = vld [vmem:[#allocation5 + $0x260] sm:$0xff]
    %v415 = vld [vmem:[#allocation5 + $0x268] sm:$0xff]
    %v416 = vld [vmem:[#allocation5 + $0x270] sm:$0xff]
    %v417 = vld [vmem:[#allocation5 + $0x278] sm:$0xff]
    %v418 = vld [vmem:[#allocation5 + $0x280] sm:$0xff]
    %v419 = vld [vmem:[#allocation5 + $0x288] sm:$0xff]
    %v420 = vld [vmem:[#allocation5 + $0x290] sm:$0xff]
    %v421 = vld [vmem:[#allocation5 + $0x298] sm:$0xff]
    %v422 = vld [vmem:[#allocation5 + $0x2a0] sm:$0xff]
    %v423 = vld [vmem:[#allocation5 + $0x2a8] sm:$0xff]
    %v424 = vld [vmem:[#allocation5 + $0x2b0] sm:$0xff]
    %v425 = vld [vmem:[#allocation5 + $0x2b8] sm:$0xff]
    %v426 = vld [vmem:[#allocation5 + $0x2c0] sm:$0xff]
    %v427 = vld [vmem:[#allocation5 + $0x2c8] sm:$0xff]
    %v428 = vld [vmem:[#allocation5 + $0x2d0] sm:$0xff]
    %v429 = vld [vmem:[#allocation5 + $0x2d8] sm:$0xff]
    %v430 = vld [vmem:[#allocation5 + $0x2e0] sm:$0xff]
    %v431 = vld [vmem:[#allocation5 + $0x2e8] sm:$0xff]
    %v432 = vld [vmem:[#allocation5 + $0x2f0] sm:$0xff]
    %v433 = vld [vmem:[#allocation5 + $0x2f8] sm:$0xff]
    %v434 = vld [vmem:[#allocation7] sm:$0xff]
    %v435 = vld [vmem:[#allocation7 + $0x8] sm:$0xff]
    %v436 = vld [vmem:[#allocation7 + $0x10] sm:$0xff]
    %v437 = vld [vmem:[#allocation7 + $0x18] sm:$0xff]
    %v438 = vld [vmem:[#allocation7 + $0x20] sm:$0xff]
    %v439 = vld [vmem:[#allocation7 + $0x28] sm:$0xff]
    %v440 = vld [vmem:[#allocation7 + $0x30] sm:$0xff]
    %v441 = vld [vmem:[#allocation7 + $0x38] sm:$0xff]
    %v442 = vld [vmem:[#allocation7 + $0x40] sm:$0xff]
    %v443 = vld [vmem:[#allocation7 + $0x48] sm:$0xff]
    %v444 = vld [vmem:[#allocation7 + $0x50] sm:$0xff]
    %v445 = vld [vmem:[#allocation7 + $0x58] sm:$0xff]
    %v446 = vld [vmem:[#allocation7 + $0x60] sm:$0xff]
    %v447 = vld [vmem:[#allocation7 + $0x68] sm:$0xff]
    %v448 = vld [vmem:[#allocation7 + $0x70] sm:$0xff]
    %v449 = vld [vmem:[#allocation7 + $0x78] sm:$0xff]
    %v450 = vld [vmem:[#allocation7 + $0x80] sm:$0xff]
    %v451 = vld [vmem:[#allocation7 + $0x88] sm:$0xff]
    %v452 = vld [vmem:[#allocation7 + $0x90] sm:$0xff]
    %v453 = vld [vmem:[#allocation7 + $0x98] sm:$0xff]
    %v454 = vld [vmem:[#allocation7 + $0xa0] sm:$0xff]
    %v455 = vld [vmem:[#allocation7 + $0xa8] sm:$0xff]
    %v456 = vld [vmem:[#allocation7 + $0xb0] sm:$0xff]
    %v457 = vld [vmem:[#allocation7 + $0xb8] sm:$0xff]
    %v458 = vadd.f32 %v162, %v166
    %v459 = vadd.f32 %v458, %v170
    %v460 = vadd.f32 %v459, %v174
    %v461 = vadd.f32 %v460, %v178
    %v462 = vadd.f32 %v461, %v182
    %v463 = vadd.f32 %v462, %v186
    %v464 = vadd.f32 %v463, %v190
    %v465 = vadd.f32 %v464, %v194
    %v466 = vadd.f32 %v465, %v198
    %v467 = vadd.f32 %v466, %v202
    %v468 = vadd.f32 %v467, %v206
    %v469 = vadd.f32 %v163, %v167
    %v470 = vadd.f32 %v469, %v171
    %v471 = vadd.f32 %v470, %v175
    %v472 = vadd.f32 %v471, %v179
    %v473 = vadd.f32 %v472, %v183
    %v474 = vadd.f32 %v473, %v187
    %v475 = vadd.f32 %v474, %v191
    %v476 = vadd.f32 %v475, %v195
    %v477 = vadd.f32 %v476, %v199
    %v478 = vadd.f32 %v477, %v203
    %v479 = vadd.f32 %v478, %v207
    %v480 = vadd.f32 %v164, %v168
    %v481 = vadd.f32 %v480, %v172
    %v482 = vadd.f32 %v481, %v176
    %v483 = vadd.f32 %v482, %v180
    %v484 = vadd.f32 %v483, %v184
    %v485 = vadd.f32 %v484, %v188
    %v486 = vadd.f32 %v485, %v192
    %v487 = vadd.f32 %v486, %v196
    %v488 = vadd.f32 %v487, %v200
    %v489 = vadd.f32 %v488, %v204
    %v490 = vadd.f32 %v489, %v208
    %v491 = vadd.f32 %v165, %v169
    %v492 = vadd.f32 %v491, %v173
    %v493 = vadd.f32 %v492, %v177
    %v494 = vadd.f32 %v493, %v181
    %v495 = vadd.f32 %v494, %v185
    %v496 = vadd.f32 %v495, %v189
    %v497 = vadd.f32 %v496, %v193
    %v498 = vadd.f32 %v497, %v197
    %v499 = vadd.f32 %v498, %v201
    %v500 = vadd.f32 %v499, %v205
    %v501 = vadd.f32 %v500, %v209
    %v502 = vadd.f32 %v258, %v262
    %v503 = vadd.f32 %v502, %v266
    %v504 = vadd.f32 %v503, %v270
    %v505 = vadd.f32 %v504, %v274
    %v506 = vadd.f32 %v505, %v278
    %v507 = vadd.f32 %v506, %v282
    %v508 = vadd.f32 %v507, %v286
    %v509 = vadd.f32 %v508, %v290
    %v510 = vadd.f32 %v509, %v294
    %v511 = vadd.f32 %v510, %v298
    %v512 = vadd.f32 %v511, %v302
    %v513 = vadd.f32 %v259, %v263
    %v514 = vadd.f32 %v513, %v267
    %v515 = vadd.f32 %v514, %v271
    %v516 = vadd.f32 %v515, %v275
    %v517 = vadd.f32 %v516, %v279
    %v518 = vadd.f32 %v517, %v283
    %v519 = vadd.f32 %v518, %v287
    %v520 = vadd.f32 %v519, %v291
    %v521 = vadd.f32 %v520, %v295
    %v522 = vadd.f32 %v521, %v299
    %v523 = vadd.f32 %v522, %v303
    %v524 = vadd.f32 %v260, %v264
    %v525 = vadd.f32 %v524, %v268
    %v526 = vadd.f32 %v525, %v272
    %v527 = vadd.f32 %v526, %v276
    %v528 = vadd.f32 %v527, %v280
    %v529 = vadd.f32 %v528, %v284
    %v530 = vadd.f32 %v529, %v288
    %v531 = vadd.f32 %v530, %v292
    %v532 = vadd.f32 %v531, %v296
    %v533 = vadd.f32 %v532, %v300
    %v534 = vadd.f32 %v533, %v304
    %v535 = vadd.f32 %v261, %v265
    %v536 = vadd.f32 %v535, %v269
    %v537 = vadd.f32 %v536, %v273
    %v538 = vadd.f32 %v537, %v277
    %v539 = vadd.f32 %v538, %v281
    %v540 = vadd.f32 %v539, %v285
    %v541 = vadd.f32 %v540, %v289
    %v542 = vadd.f32 %v541, %v293
    %v543 = vadd.f32 %v542, %v297
    %v544 = vadd.f32 %v543, %v301
    %v545 = vadd.f32 %v544, %v305
    %v546 = vadd.f32 %v210, %v214
    %v547 = vadd.f32 %v546, %v218
    %v548 = vadd.f32 %v547, %v222
    %v549 = vadd.f32 %v548, %v226
    %v550 = vadd.f32 %v549, %v230
    %v551 = vadd.f32 %v550, %v234
    %v552 = vadd.f32 %v551, %v238
    %v553 = vadd.f32 %v552, %v242
    %v554 = vadd.f32 %v553, %v246
    %v555 = vadd.f32 %v554, %v250
    %v556 = vadd.f32 %v555, %v254
    %v557 = vadd.f32 %v211, %v215
    %v558 = vadd.f32 %v557, %v219
    %v559 = vadd.f32 %v558, %v223
    %v560 = vadd.f32 %v559, %v227
    %v561 = vadd.f32 %v560, %v231
    %v562 = vadd.f32 %v561, %v235
    %v563 = vadd.f32 %v562, %v239
    %v564 = vadd.f32 %v563, %v243
    %v565 = vadd.f32 %v564, %v247
    %v566 = vadd.f32 %v565, %v251
    %v567 = vadd.f32 %v566, %v255
    %v568 = vadd.f32 %v212, %v216
    %v569 = vadd.f32 %v568, %v220
    %v570 = vadd.f32 %v569, %v224
    %v571 = vadd.f32 %v570, %v228
    %v572 = vadd.f32 %v571, %v232
    %v573 = vadd.f32 %v572, %v236
    %v574 = vadd.f32 %v573, %v240
    %v575 = vadd.f32 %v574, %v244
    %v576 = vadd.f32 %v575, %v248
    %v577 = vadd.f32 %v576, %v252
    %v578 = vadd.f32 %v577, %v256
    %v579 = vadd.f32 %v213, %v217
    %v580 = vadd.f32 %v579, %v221
    %v581 = vadd.f32 %v580, %v225
    %v582 = vadd.f32 %v581, %v229
    %v583 = vadd.f32 %v582, %v233
    %v584 = vadd.f32 %v583, %v237
    %v585 = vadd.f32 %v584, %v241
    %v586 = vadd.f32 %v585, %v245
    %v587 = vadd.f32 %v586, %v249
    %v588 = vadd.f32 %v587, %v253
    %v589 = vadd.f32 %v588, %v257
    %v590 = vadd.f32 %v306, %v310
    %v591 = vadd.f32 %v590, %v314
    %v592 = vadd.f32 %v591, %v318
    %v593 = vadd.f32 %v592, %v322
    %v594 = vadd.f32 %v593, %v326
    %v595 = vadd.f32 %v594, %v330
    %v596 = vadd.f32 %v595, %v334
    %v597 = vadd.f32 %v596, %v338
    %v598 = vadd.f32 %v597, %v342
    %v599 = vadd.f32 %v598, %v346
    %v600 = vadd.f32 %v599, %v350
    %v601 = vadd.f32 %v307, %v311
    %v602 = vadd.f32 %v601, %v315
    %v603 = vadd.f32 %v602, %v319
    %v604 = vadd.f32 %v603, %v323
    %v605 = vadd.f32 %v604, %v327
    %v606 = vadd.f32 %v605, %v331
    %v607 = vadd.f32 %v606, %v335
    %v608 = vadd.f32 %v607, %v339
    %v609 = vadd.f32 %v608, %v343
    %v610 = vadd.f32 %v609, %v347
    %v611 = vadd.f32 %v610, %v351
    %v612 = vadd.f32 %v308, %v312
    %v613 = vadd.f32 %v612, %v316
    %v614 = vadd.f32 %v613, %v320
    %v615 = vadd.f32 %v614, %v324
    %v616 = vadd.f32 %v615, %v328
    %v617 = vadd.f32 %v616, %v332
    %v618 = vadd.f32 %v617, %v336
    %v619 = vadd.f32 %v618, %v340
    %v620 = vadd.f32 %v619, %v344
    %v621 = vadd.f32 %v620, %v348
    %v622 = vadd.f32 %v621, %v352
    %v623 = vadd.f32 %v309, %v313
    %v624 = vadd.f32 %v623, %v317
    %v625 = vadd.f32 %v624, %v321
    %v626 = vadd.f32 %v625, %v325
    %v627 = vadd.f32 %v626, %v329
    %v628 = vadd.f32 %v627, %v333
    %v629 = vadd.f32 %v628, %v337
    %v630 = vadd.f32 %v629, %v341
    %v631 = vadd.f32 %v630, %v345
    %v632 = vadd.f32 %v631, %v349
    %v633 = vadd.f32 %v632, %v353
    %v634 = vrot.slane %v468, 4
    %v635 = vadd.f32 %v468, %v634
    %v636 = vrot.slane %v635, 2
    %v637 = vadd.f32 %v635, %v636
    %v638 = vrot.slane %v637, 1
    %v639 = vadd.f32 %v637, %v638
    %v640 = vrot.slane %v479, 4
    %v641 = vadd.f32 %v479, %v640
    %v642 = vrot.slane %v641, 2
    %v643 = vadd.f32 %v641, %v642
    %v644 = vrot.slane %v643, 1
    %v645 = vadd.f32 %v643, %v644
    %v646 = vrot.slane %v512, 4
    %v647 = vadd.f32 %v512, %v646
    %v648 = vrot.slane %v647, 2
    %v649 = vadd.f32 %v647, %v648
    %v650 = vrot.slane %v649, 1
    %v651 = vadd.f32 %v649, %v650
    %v652 = vrot.slane %v523, 4
    %v653 = vadd.f32 %v523, %v652
    %v654 = vrot.slane %v653, 2
    %v655 = vadd.f32 %v653, %v654
    %v656 = vrot.slane %v655, 1
    %v657 = vadd.f32 %v655, %v656
    %v658 = vrot.slane %v490, 4
    %v659 = vadd.f32 %v490, %v658
    %v660 = vrot.slane %v659, 2
    %v661 = vadd.f32 %v659, %v660
    %v662 = vrot.slane %v661, 1
    %v663 = vadd.f32 %v661, %v662
    %v664 = vrot.slane %v501, 4
    %v665 = vadd.f32 %v501, %v664
    %v666 = vrot.slane %v665, 2
    %v667 = vadd.f32 %v665, %v666
    %v668 = vrot.slane %v667, 1
    %v669 = vadd.f32 %v667, %v668
    %v670 = vrot.slane %v534, 4
    %v671 = vadd.f32 %v534, %v670
    %v672 = vrot.slane %v671, 2
    %v673 = vadd.f32 %v671, %v672
    %v674 = vrot.slane %v673, 1
    %v675 = vadd.f32 %v673, %v674
    %v676 = vrot.slane %v545, 4
    %v677 = vadd.f32 %v545, %v676
    %v678 = vrot.slane %v677, 2
    %v679 = vadd.f32 %v677, %v678
    %v680 = vrot.slane %v679, 1
    %v681 = vadd.f32 %v679, %v680
    %v682 = vrot.slane %v556, 4
    %v683 = vadd.f32 %v556, %v682
    %v684 = vrot.slane %v683, 2
    %v685 = vadd.f32 %v683, %v684
    %v686 = vrot.slane %v685, 1
    %v687 = vadd.f32 %v685, %v686
    %v688 = vrot.slane %v567, 4
    %v689 = vadd.f32 %v567, %v688
    %v690 = vrot.slane %v689, 2
    %v691 = vadd.f32 %v689, %v690
    %v692 = vrot.slane %v691, 1
    %v693 = vadd.f32 %v691, %v692
    %v694 = vrot.slane %v600, 4
    %v695 = vadd.f32 %v600, %v694
    %v696 = vrot.slane %v695, 2
    %v697 = vadd.f32 %v695, %v696
    %v698 = vrot.slane %v697, 1
    %v699 = vadd.f32 %v697, %v698
    %v700 = vrot.slane %v611, 4
    %v701 = vadd.f32 %v611, %v700
    %v702 = vrot.slane %v701, 2
    %v703 = vadd.f32 %v701, %v702
    %v704 = vrot.slane %v703, 1
    %v705 = vadd.f32 %v703, %v704
    %v706 = vrot.slane %v578, 4
    %v707 = vadd.f32 %v578, %v706
    %v708 = vrot.slane %v707, 2
    %v709 = vadd.f32 %v707, %v708
    %v710 = vrot.slane %v709, 1
    %v711 = vadd.f32 %v709, %v710
    %v712 = vrot.slane %v589, 4
    %v713 = vadd.f32 %v589, %v712
    %v714 = vrot.slane %v713, 2
    %v715 = vadd.f32 %v713, %v714
    %v716 = vrot.slane %v715, 1
    %v717 = vadd.f32 %v715, %v716
    %v718 = vrot.slane %v622, 4
    %v719 = vadd.f32 %v622, %v718
    %v720 = vrot.slane %v719, 2
    %v721 = vadd.f32 %v719, %v720
    %v722 = vrot.slane %v721, 1
    %v723 = vadd.f32 %v721, %v722
    %v724 = vrot.slane %v633, 4
    %v725 = vadd.f32 %v633, %v724
    %v726 = vrot.slane %v725, 2
    %v727 = vadd.f32 %v725, %v726
    %v728 = vrot.slane %v727, 1
    %v729 = vadd.f32 %v727, %v728
    %v730 = vadd.f32 %v639, %v663
    %v731 = vadd.f32 %v645, %v669
    %v732 = vadd.f32 %v651, %v675
    %v733 = vadd.f32 %v657, %v681
    %v734 = vadd.f32 %v730, %v687
    %v735 = vadd.f32 %v731, %v693
    %v736 = vadd.f32 %v732, %v699
    %v737 = vadd.f32 %v733, %v705
    %v738 = vadd.f32 %v734, %v711
    %v739 = vadd.f32 %v735, %v717
    %v740 = vadd.f32 %v736, %v723
    %v741 = vadd.f32 %v737, %v729
    %v742 = vmul.f32 %v738, 0.0026041667
    %v743 = vmul.f32 %v739, 0.0026041667
    %v744 = vmul.f32 %v740, 0.0026041667
    %v745 = vmul.f32 %v741, 0.0026041667
    %v746 = vmul.f32 %v639, 0.010416667
    %v747 = vmul.f32 %v645, 0.010416667
    %v748 = vmul.f32 %v651, 0.010416667
    %v749 = vmul.f32 %v657, 0.010416667
    %v750 = vmul.f32 %v663, 0.010416667
    %v751 = vmul.f32 %v669, 0.010416667
    %v752 = vmul.f32 %v675, 0.010416667
    %v753 = vmul.f32 %v681, 0.010416667
    %v754 = vmul.f32 %v687, 0.010416667
    %v755 = vmul.f32 %v693, 0.010416667
    %v756 = vmul.f32 %v699, 0.010416667
    %v757 = vmul.f32 %v705, 0.010416667
    %v758 = vmul.f32 %v711, 0.010416667
    %v759 = vmul.f32 %v717, 0.010416667
    %v760 = vmul.f32 %v723, 0.010416667
    %v761 = vmul.f32 %v729, 0.010416667
    %vm766 = vcmask 1041409
    %v767 = vsel %vm766, %v744, %v742
    %v768 = vsel %vm766, %v745, %v743
    %v775 = vsel %vm766, %v748, %v746
    %v776 = vsel %vm766, %v749, %v747
    %v783 = vsel %vm766, %v752, %v750
    %v784 = vsel %vm766, %v753, %v751
    %v791 = vsel %vm766, %v756, %v754
    %v792 = vsel %vm766, %v757, %v755
    %v799 = vsel %vm766, %v760, %v758
    %v800 = vsel %vm766, %v761, %v759
    %v803 = vadd.f32 %v354, %v356
    %v804 = vadd.f32 %v803, %v358
    %v805 = vadd.f32 %v804, %v360
    %v806 = vadd.f32 %v805, %v362
    %v807 = vadd.f32 %v806, %v364
    %v808 = vadd.f32 %v807, %v366
    %v809 = vadd.f32 %v808, %v368
    %v810 = vadd.f32 %v355, %v357
    %v811 = vadd.f32 %v810, %v359
    %v812 = vadd.f32 %v811, %v361
    %v813 = vadd.f32 %v812, %v363
    %v814 = vadd.f32 %v813, %v365
    %v815 = vadd.f32 %v814, %v367
    %v816 = vadd.f32 %v815, %v369
    %v817 = vadd.f32 %v394, %v396
    %v818 = vadd.f32 %v817, %v398
    %v819 = vadd.f32 %v818, %v400
    %v820 = vadd.f32 %v819, %v402
    %v821 = vadd.f32 %v820, %v404
    %v822 = vadd.f32 %v821, %v406
    %v823 = vadd.f32 %v822, %v408
    %v824 = vadd.f32 %v395, %v397
    %v825 = vadd.f32 %v824, %v399
    %v826 = vadd.f32 %v825, %v401
    %v827 = vadd.f32 %v826, %v403
    %v828 = vadd.f32 %v827, %v405
    %v829 = vadd.f32 %v828, %v407
    %v830 = vadd.f32 %v829, %v409
    %v831 = vadd.f32 %v370, %v372
    %v832 = vadd.f32 %v831, %v374
    %v833 = vadd.f32 %v832, %v376
    %v834 = vadd.f32 %v833, %v378
    %v835 = vadd.f32 %v834, %v380
    %v836 = vadd.f32 %v835, %v382
    %v837 = vadd.f32 %v836, %v384
    %v838 = vadd.f32 %v371, %v373
    %v839 = vadd.f32 %v838, %v375
    %v840 = vadd.f32 %v839, %v377
    %v841 = vadd.f32 %v840, %v379
    %v842 = vadd.f32 %v841, %v381
    %v843 = vadd.f32 %v842, %v383
    %v844 = vadd.f32 %v843, %v385
    %v845 = vadd.f32 %v410, %v412
    %v846 = vadd.f32 %v845, %v414
    %v847 = vadd.f32 %v846, %v416
    %v848 = vadd.f32 %v847, %v418
    %v849 = vadd.f32 %v848, %v420
    %v850 = vadd.f32 %v849, %v422
    %v851 = vadd.f32 %v850, %v424
    %v852 = vadd.f32 %v411, %v413
    %v853 = vadd.f32 %v852, %v415
    %v854 = vadd.f32 %v853, %v417
    %v855 = vadd.f32 %v854, %v419
    %v856 = vadd.f32 %v855, %v421
    %v857 = vadd.f32 %v856, %v423
    %v858 = vadd.f32 %v857, %v425
    %vm859 = vcmask 1043456
    %v860 = vsel %vm859, %v809, 0.0
    %v861 = vrot.slane %v860, 4
    %v862 = vadd.f32 %v860, %v861
    %v863 = vrot.slane %v862, 2
    %v864 = vadd.f32 %v862, %v863
    %v865 = vrot.slane %v864, 1
    %v866 = vadd.f32 %v864, %v865
    %v867 = vsel %vm859, %v816, 0.0
    %v868 = vrot.slane %v867, 4
    %v869 = vadd.f32 %v867, %v868
    %v870 = vrot.slane %v869, 2
    %v871 = vadd.f32 %v869, %v870
    %v872 = vrot.slane %v871, 1
    %v873 = vadd.f32 %v871, %v872
    %v874 = vsel %vm859, %v823, 0.0
    %v875 = vrot.slane %v874, 4
    %v876 = vadd.f32 %v874, %v875
    %v877 = vrot.slane %v876, 2
    %v878 = vadd.f32 %v876, %v877
    %v879 = vrot.slane %v878, 1
    %v880 = vadd.f32 %v878, %v879
    %v881 = vsel %vm859, %v830, 0.0
    %v882 = vrot.slane %v881, 4
    %v883 = vadd.f32 %v881, %v882
    %v884 = vrot.slane %v883, 2
    %v885 = vadd.f32 %v883, %v884
    %v886 = vrot.slane %v885, 1
    %v887 = vadd.f32 %v885, %v886
    %v892 = vrot.slane %v809, 4
    %v893 = vrot.slane %v816, 4
    %v894 = vrot.slane %v823, 4
    %v895 = vrot.slane %v830, 4
    %v900 = vsel %vm859, %v892, 0.0
    %v901 = vrot.slane %v900, 4
    %v902 = vadd.f32 %v900, %v901
    %v903 = vrot.slane %v902, 2
    %v904 = vadd.f32 %v902, %v903
    %v905 = vrot.slane %v904, 1
    %v906 = vadd.f32 %v904, %v905
    %v907 = vsel %vm859, %v893, 0.0
    %v908 = vrot.slane %v907, 4
    %v909 = vadd.f32 %v907, %v908
    %v910 = vrot.slane %v909, 2
    %v911 = vadd.f32 %v909, %v910
    %v912 = vrot.slane %v911, 1
    %v913 = vadd.f32 %v911, %v912
    %v914 = vsel %vm859, %v894, 0.0
    %v915 = vrot.slane %v914, 4
    %v916 = vadd.f32 %v914, %v915
    %v917 = vrot.slane %v916, 2
    %v918 = vadd.f32 %v916, %v917
    %v919 = vrot.slane %v918, 1
    %v920 = vadd.f32 %v918, %v919
    %v921 = vsel %vm859, %v895, 0.0
    %v922 = vrot.slane %v921, 4
    %v923 = vadd.f32 %v921, %v922
    %v924 = vrot.slane %v923, 2
    %v925 = vadd.f32 %v923, %v924
    %v926 = vrot.slane %v925, 1
    %v927 = vadd.f32 %v925, %v926
    %v928 = vsel %vm859, %v837, 0.0
    %v929 = vrot.slane %v928, 4
    %v930 = vadd.f32 %v928, %v929
    %v931 = vrot.slane %v930, 2
    %v932 = vadd.f32 %v930, %v931
    %v933 = vrot.slane %v932, 1
    %v934 = vadd.f32 %v932, %v933
    %v935 = vsel %vm859, %v844, 0.0
    %v936 = vrot.slane %v935, 4
    %v937 = vadd.f32 %v935, %v936
    %v938 = vrot.slane %v937, 2
    %v939 = vadd.f32 %v937, %v938
    %v940 = vrot.slane %v939, 1
    %v941 = vadd.f32 %v939, %v940
    %v942 = vsel %vm859, %v851, 0.0
    %v943 = vrot.slane %v942, 4
    %v944 = vadd.f32 %v942, %v943
    %v945 = vrot.slane %v944, 2
    %v946 = vadd.f32 %v944, %v945
    %v947 = vrot.slane %v946, 1
    %v948 = vadd.f32 %v946, %v947
    %v949 = vsel %vm859, %v858, 0.0
    %v950 = vrot.slane %v949, 4
    %v951 = vadd.f32 %v949, %v950
    %v952 = vrot.slane %v951, 2
    %v953 = vadd.f32 %v951, %v952
    %v954 = vrot.slane %v953, 1
    %v955 = vadd.f32 %v953, %v954
    %v960 = vrot.slane %v837, 4
    %v961 = vrot.slane %v844, 4
    %v962 = vrot.slane %v851, 4
    %v963 = vrot.slane %v858, 4
    %v968 = vsel %vm859, %v960, 0.0
    %v969 = vrot.slane %v968, 4
    %v970 = vadd.f32 %v968, %v969
    %v971 = vrot.slane %v970, 2
    %v972 = vadd.f32 %v970, %v971
    %v973 = vrot.slane %v972, 1
    %v974 = vadd.f32 %v972, %v973
    %v975 = vsel %vm859, %v961, 0.0
    %v976 = vrot.slane %v975, 4
    %v977 = vadd.f32 %v975, %v976
    %v978 = vrot.slane %v977, 2
    %v979 = vadd.f32 %v977, %v978
    %v980 = vrot.slane %v979, 1
    %v981 = vadd.f32 %v979, %v980
    %v982 = vsel %vm859, %v962, 0.0
    %v983 = vrot.slane %v982, 4
    %v984 = vadd.f32 %v982, %v983
    %v985 = vrot.slane %v984, 2
    %v986 = vadd.f32 %v984, %v985
    %v987 = vrot.slane %v986, 1
    %v988 = vadd.f32 %v986, %v987
    %v989 = vsel %vm859, %v963, 0.0
    %v990 = vrot.slane %v989, 4
    %v991 = vadd.f32 %v989, %v990
    %v992 = vrot.slane %v991, 2
    %v993 = vadd.f32 %v991, %v992
    %v994 = vrot.slane %v993, 1
    %v995 = vadd.f32 %v993, %v994
    %v996 = vadd.f32 %v866, %v906
    %v997 = vadd.f32 %v873, %v913
    %v998 = vadd.f32 %v880, %v920
    %v999 = vadd.f32 %v887, %v927
    %v1000 = vadd.f32 %v996, %v934
    %v1001 = vadd.f32 %v997, %v941
    %v1002 = vadd.f32 %v998, %v948
    %v1003 = vadd.f32 %v999, %v955
    %v1004 = vadd.f32 %v1000, %v974
    %v1005 = vadd.f32 %v1001, %v981
    %v1006 = vadd.f32 %v1002, %v988
    %v1007 = vadd.f32 %v1003, %v995
    %v1008 = vmul.f32 %v1004, 0.0078125
    %v1009 = vmul.f32 %v1005, 0.0078125
    %v1010 = vmul.f32 %v1006, 0.0078125
    %v1011 = vmul.f32 %v1007, 0.0078125
    %v1012 = vmul.f32 %v866, 0.03125
    %v1013 = vmul.f32 %v873, 0.03125
    %v1014 = vmul.f32 %v880, 0.03125
    %v1015 = vmul.f32 %v887, 0.03125
    %v1016 = vmul.f32 %v906, 0.03125
    %v1017 = vmul.f32 %v913, 0.03125
    %v1018 = vmul.f32 %v920, 0.03125
    %v1019 = vmul.f32 %v927, 0.03125
    %v1020 = vmul.f32 %v934, 0.03125
    %v1021 = vmul.f32 %v941, 0.03125
    %v1022 = vmul.f32 %v948, 0.03125
    %v1023 = vmul.f32 %v955, 0.03125
    %v1024 = vmul.f32 %v974, 0.03125
    %v1025 = vmul.f32 %v981, 0.03125
    %v1026 = vmul.f32 %v988, 0.03125
    %v1027 = vmul.f32 %v995, 0.03125
    %v1032 = vsel %vm766, %v1010, %v1008
    %v1033 = vsel %vm766, %v1011, %v1009
    %v1040 = vsel %vm766, %v1014, %v1012
    %v1041 = vsel %vm766, %v1015, %v1013
    %v1048 = vsel %vm766, %v1018, %v1016
    %v1049 = vsel %vm766, %v1019, %v1017
    %v1056 = vsel %vm766, %v1022, %v1020
    %v1057 = vsel %vm766, %v1023, %v1021
    %v1064 = vsel %vm766, %v1026, %v1024
    %v1065 = vsel %vm766, %v1027, %v1025
    %v1068 = vadd.f32 %v378, %v380
    %v1069 = vadd.f32 %v1068, %v382
    %v1070 = vadd.f32 %v1069, %v384
    %v1071 = vadd.f32 %v379, %v381
    %v1072 = vadd.f32 %v1071, %v383
    %v1073 = vadd.f32 %v1072, %v385
    %v1074 = vadd.f32 %v418, %v420
    %v1075 = vadd.f32 %v1074, %v422
    %v1076 = vadd.f32 %v1075, %v424
    %v1077 = vadd.f32 %v419, %v421
    %v1078 = vadd.f32 %v1077, %v423
    %v1079 = vadd.f32 %v1078, %v425
    %v1080 = vadd.f32 %v386, %v388
    %v1081 = vadd.f32 %v1080, %v390
    %v1082 = vadd.f32 %v1081, %v392
    %v1083 = vadd.f32 %v387, %v389
    %v1084 = vadd.f32 %v1083, %v391
    %v1085 = vadd.f32 %v1084, %v393
    %v1086 = vadd.f32 %v426, %v428
    %v1087 = vadd.f32 %v1086, %v430
    %v1088 = vadd.f32 %v1087, %v432
    %v1089 = vadd.f32 %v427, %v429
    %v1090 = vadd.f32 %v1089, %v431
    %v1091 = vadd.f32 %v1090, %v433
    %v1092 = vsel %vm859, %v1070, 0.0
    %v1093 = vrot.slane %v1092, 4
    %v1094 = vadd.f32 %v1092, %v1093
    %v1095 = vrot.slane %v1094, 2
    %v1096 = vadd.f32 %v1094, %v1095
    %v1097 = vrot.slane %v1096, 1
    %v1098 = vadd.f32 %v1096, %v1097
    %v1099 = vsel %vm859, %v1073, 0.0
    %v1100 = vrot.slane %v1099, 4
    %v1101 = vadd.f32 %v1099, %v1100
    %v1102 = vrot.slane %v1101, 2
    %v1103 = vadd.f32 %v1101, %v1102
    %v1104 = vrot.slane %v1103, 1
    %v1105 = vadd.f32 %v1103, %v1104
    %v1106 = vsel %vm859, %v1076, 0.0
    %v1107 = vrot.slane %v1106, 4
    %v1108 = vadd.f32 %v1106, %v1107
    %v1109 = vrot.slane %v1108, 2
    %v1110 = vadd.f32 %v1108, %v1109
    %v1111 = vrot.slane %v1110, 1
    %v1112 = vadd.f32 %v1110, %v1111
    %v1113 = vsel %vm859, %v1079, 0.0
    %v1114 = vrot.slane %v1113, 4
    %v1115 = vadd.f32 %v1113, %v1114
    %v1116 = vrot.slane %v1115, 2
    %v1117 = vadd.f32 %v1115, %v1116
    %v1118 = vrot.slane %v1117, 1
    %v1119 = vadd.f32 %v1117, %v1118
    %v1124 = vrot.slane %v1070, 4
    %v1125 = vrot.slane %v1073, 4
    %v1126 = vrot.slane %v1076, 4
    %v1127 = vrot.slane %v1079, 4
    %v1132 = vsel %vm859, %v1124, 0.0
    %v1133 = vrot.slane %v1132, 4
    %v1134 = vadd.f32 %v1132, %v1133
    %v1135 = vrot.slane %v1134, 2
    %v1136 = vadd.f32 %v1134, %v1135
    %v1137 = vrot.slane %v1136, 1
    %v1138 = vadd.f32 %v1136, %v1137
    %v1139 = vsel %vm859, %v1125, 0.0
    %v1140 = vrot.slane %v1139, 4
    %v1141 = vadd.f32 %v1139, %v1140
    %v1142 = vrot.slane %v1141, 2
    %v1143 = vadd.f32 %v1141, %v1142
    %v1144 = vrot.slane %v1143, 1
    %v1145 = vadd.f32 %v1143, %v1144
    %v1146 = vsel %vm859, %v1126, 0.0
    %v1147 = vrot.slane %v1146, 4
    %v1148 = vadd.f32 %v1146, %v1147
    %v1149 = vrot.slane %v1148, 2
    %v1150 = vadd.f32 %v1148, %v1149
    %v1151 = vrot.slane %v1150, 1
    %v1152 = vadd.f32 %v1150, %v1151
    %v1153 = vsel %vm859, %v1127, 0.0
    %v1154 = vrot.slane %v1153, 4
    %v1155 = vadd.f32 %v1153, %v1154
    %v1156 = vrot.slane %v1155, 2
    %v1157 = vadd.f32 %v1155, %v1156
    %v1158 = vrot.slane %v1157, 1
    %v1159 = vadd.f32 %v1157, %v1158
    %v1160 = vsel %vm859, %v1082, 0.0
    %v1161 = vrot.slane %v1160, 4
    %v1162 = vadd.f32 %v1160, %v1161
    %v1163 = vrot.slane %v1162, 2
    %v1164 = vadd.f32 %v1162, %v1163
    %v1165 = vrot.slane %v1164, 1
    %v1166 = vadd.f32 %v1164, %v1165
    %v1167 = vsel %vm859, %v1085, 0.0
    %v1168 = vrot.slane %v1167, 4
    %v1169 = vadd.f32 %v1167, %v1168
    %v1170 = vrot.slane %v1169, 2
    %v1171 = vadd.f32 %v1169, %v1170
    %v1172 = vrot.slane %v1171, 1
    %v1173 = vadd.f32 %v1171, %v1172
    %v1174 = vsel %vm859, %v1088, 0.0
    %v1175 = vrot.slane %v1174, 4
    %v1176 = vadd.f32 %v1174, %v1175
    %v1177 = vrot.slane %v1176, 2
    %v1178 = vadd.f32 %v1176, %v1177
    %v1179 = vrot.slane %v1178, 1
    %v1180 = vadd.f32 %v1178, %v1179
    %v1181 = vsel %vm859, %v1091, 0.0
    %v1182 = vrot.slane %v1181, 4
    %v1183 = vadd.f32 %v1181, %v1182
    %v1184 = vrot.slane %v1183, 2
    %v1185 = vadd.f32 %v1183, %v1184
    %v1186 = vrot.slane %v1185, 1
    %v1187 = vadd.f32 %v1185, %v1186
    %v1192 = vrot.slane %v1082, 4
    %v1193 = vrot.slane %v1085, 4
    %v1194 = vrot.slane %v1088, 4
    %v1195 = vrot.slane %v1091, 4
    %v1200 = vsel %vm859, %v1192, 0.0
    %v1201 = vrot.slane %v1200, 4
    %v1202 = vadd.f32 %v1200, %v1201
    %v1203 = vrot.slane %v1202, 2
    %v1204 = vadd.f32 %v1202, %v1203
    %v1205 = vrot.slane %v1204, 1
    %v1206 = vadd.f32 %v1204, %v1205
    %v1207 = vsel %vm859, %v1193, 0.0
    %v1208 = vrot.slane %v1207, 4
    %v1209 = vadd.f32 %v1207, %v1208
    %v1210 = vrot.slane %v1209, 2
    %v1211 = vadd.f32 %v1209, %v1210
    %v1212 = vrot.slane %v1211, 1
    %v1213 = vadd.f32 %v1211, %v1212
    %v1214 = vsel %vm859, %v1194, 0.0
    %v1215 = vrot.slane %v1214, 4
    %v1216 = vadd.f32 %v1214, %v1215
    %v1217 = vrot.slane %v1216, 2
    %v1218 = vadd.f32 %v1216, %v1217
    %v1219 = vrot.slane %v1218, 1
    %v1220 = vadd.f32 %v1218, %v1219
    %v1221 = vsel %vm859, %v1195, 0.0
    %v1222 = vrot.slane %v1221, 4
    %v1223 = vadd.f32 %v1221, %v1222
    %v1224 = vrot.slane %v1223, 2
    %v1225 = vadd.f32 %v1223, %v1224
    %v1226 = vrot.slane %v1225, 1
    %v1227 = vadd.f32 %v1225, %v1226
    %v1228 = vadd.f32 %v1098, %v1138
    %v1229 = vadd.f32 %v1105, %v1145
    %v1230 = vadd.f32 %v1112, %v1152
    %v1231 = vadd.f32 %v1119, %v1159
    %v1232 = vadd.f32 %v1228, %v1166
    %v1233 = vadd.f32 %v1229, %v1173
    %v1234 = vadd.f32 %v1230, %v1180
    %v1235 = vadd.f32 %v1231, %v1187
    %v1236 = vadd.f32 %v1232, %v1206
    %v1237 = vadd.f32 %v1233, %v1213
    %v1238 = vadd.f32 %v1234, %v1220
    %v1239 = vadd.f32 %v1235, %v1227
    %v1240 = vmul.f32 %v1236, 0.015625
    %v1241 = vmul.f32 %v1237, 0.015625
    %v1242 = vmul.f32 %v1238, 0.015625
    %v1243 = vmul.f32 %v1239, 0.015625
    %v1244 = vmul.f32 %v1098, 0.0625
    %v1245 = vmul.f32 %v1105, 0.0625
    %v1246 = vmul.f32 %v1112, 0.0625
    %v1247 = vmul.f32 %v1119, 0.0625
    %v1248 = vmul.f32 %v1138, 0.0625
    %v1249 = vmul.f32 %v1145, 0.0625
    %v1250 = vmul.f32 %v1152, 0.0625
    %v1251 = vmul.f32 %v1159, 0.0625
    %v1252 = vmul.f32 %v1166, 0.0625
    %v1253 = vmul.f32 %v1173, 0.0625
    %v1254 = vmul.f32 %v1180, 0.0625
    %v1255 = vmul.f32 %v1187, 0.0625
    %v1256 = vmul.f32 %v1206, 0.0625
    %v1257 = vmul.f32 %v1213, 0.0625
    %v1258 = vmul.f32 %v1220, 0.0625
    %v1259 = vmul.f32 %v1227, 0.0625
    %v1264 = vsel %vm766, %v1242, %v1240
    %v1265 = vsel %vm766, %v1243, %v1241
    %v1272 = vsel %vm766, %v1246, %v1244
    %v1273 = vsel %vm766, %v1247, %v1245
    %v1280 = vsel %vm766, %v1250, %v1248
    %v1281 = vsel %vm766, %v1251, %v1249
    %v1288 = vsel %vm766, %v1254, %v1252
    %v1289 = vsel %vm766, %v1255, %v1253
    %v1296 = vsel %vm766, %v1258, %v1256
    %v1297 = vsel %vm766, %v1259, %v1257
    %v1312 = vcombine.high %v434, %v434
    %v1313 = vcombine.high %v435, %v435
    %v1314 = vcombine.high %v436, %v436
    %v1315 = vcombine.high %v437, %v437
    %v1316 = vcombine.high %v438, %v438
    %v1317 = vcombine.high %v439, %v439
    %v1318 = vcombine.high %v446, %v446
    %v1319 = vcombine.high %v447, %v447
    %v1320 = vcombine.high %v448, %v448
    %v1321 = vcombine.high %v449, %v449
    %v1322 = vcombine.high %v450, %v450
    %v1323 = vcombine.high %v451, %v451
    %v1336 = vsel %vm859, %v434, 0.0
    %v1337 = vsel %vm859, %v435, 0.0
    %v1338 = vadd.f32 %v1336, %v1337
    %v1339 = vsel %vm859, %v436, 0.0
    %v1340 = vadd.f32 %v1338, %v1339
    %v1341 = vsel %vm859, %v437, 0.0
    %v1342 = vadd.f32 %v1340, %v1341
    %v1343 = vsel %vm859, %v438, 0.0
    %v1344 = vadd.f32 %v1342, %v1343
    %v1345 = vsel %vm859, %v439, 0.0
    %v1346 = vadd.f32 %v1344, %v1345
    %v1347 = vsel %vm859, %v1312, 0.0
    %v1348 = vsel %vm859, %v1313, 0.0
    %v1349 = vadd.f32 %v1347, %v1348
    %v1350 = vsel %vm859, %v1314, 0.0
    %v1351 = vadd.f32 %v1349, %v1350
    %v1352 = vsel %vm859, %v1315, 0.0
    %v1353 = vadd.f32 %v1351, %v1352
    %v1354 = vsel %vm859, %v1316, 0.0
    %v1355 = vadd.f32 %v1353, %v1354
    %v1356 = vsel %vm859, %v1317, 0.0
    %v1357 = vadd.f32 %v1355, %v1356
    %v1358 = vsel %vm859, %v446, 0.0
    %v1359 = vsel %vm859, %v447, 0.0
    %v1360 = vadd.f32 %v1358, %v1359
    %v1361 = vsel %vm859, %v448, 0.0
    %v1362 = vadd.f32 %v1360, %v1361
    %v1363 = vsel %vm859, %v449, 0.0
    %v1364 = vadd.f32 %v1362, %v1363
    %v1365 = vsel %vm859, %v450, 0.0
    %v1366 = vadd.f32 %v1364, %v1365
    %v1367 = vsel %vm859, %v451, 0.0
    %v1368 = vadd.f32 %v1366, %v1367
    %v1369 = vsel %vm859, %v1318, 0.0
    %v1370 = vsel %vm859, %v1319, 0.0
    %v1371 = vadd.f32 %v1369, %v1370
    %v1372 = vsel %vm859, %v1320, 0.0
    %v1373 = vadd.f32 %v1371, %v1372
    %v1374 = vsel %vm859, %v1321, 0.0
    %v1375 = vadd.f32 %v1373, %v1374
    %v1376 = vsel %vm859, %v1322, 0.0
    %v1377 = vadd.f32 %v1375, %v1376
    %v1378 = vsel %vm859, %v1323, 0.0
    %v1379 = vadd.f32 %v1377, %v1378
    %v1392 = vcombine.high %v440, %v440
    %v1393 = vcombine.high %v441, %v441
    %v1394 = vcombine.high %v442, %v442
    %v1395 = vcombine.high %v443, %v443
    %v1396 = vcombine.high %v444, %v444
    %v1397 = vcombine.high %v445, %v445
    %v1398 = vcombine.high %v452, %v452
    %v1399 = vcombine.high %v453, %v453
    %v1400 = vcombine.high %v454, %v454
    %v1401 = vcombine.high %v455, %v455
    %v1402 = vcombine.high %v456, %v456
    %v1403 = vcombine.high %v457, %v457
    %v1416 = vsel %vm859, %v440, 0.0
    %v1417 = vsel %vm859, %v441, 0.0
    %v1418 = vadd.f32 %v1416, %v1417
    %v1419 = vsel %vm859, %v442, 0.0
    %v1420 = vadd.f32 %v1418, %v1419
    %v1421 = vsel %vm859, %v443, 0.0
    %v1422 = vadd.f32 %v1420, %v1421
    %v1423 = vsel %vm859, %v444, 0.0
    %v1424 = vadd.f32 %v1422, %v1423
    %v1425 = vsel %vm859, %v445, 0.0
    %v1426 = vadd.f32 %v1424, %v1425
    %v1427 = vsel %vm859, %v1392, 0.0
    %v1428 = vsel %vm859, %v1393, 0.0
    %v1429 = vadd.f32 %v1427, %v1428
    %v1430 = vsel %vm859, %v1394, 0.0
    %v1431 = vadd.f32 %v1429, %v1430
    %v1432 = vsel %vm859, %v1395, 0.0
    %v1433 = vadd.f32 %v1431, %v1432
    %v1434 = vsel %vm859, %v1396, 0.0
    %v1435 = vadd.f32 %v1433, %v1434
    %v1436 = vsel %vm859, %v1397, 0.0
    %v1437 = vadd.f32 %v1435, %v1436
    %v1438 = vsel %vm859, %v452, 0.0
    %v1439 = vsel %vm859, %v453, 0.0
    %v1440 = vadd.f32 %v1438, %v1439
    %v1441 = vsel %vm859, %v454, 0.0
    %v1442 = vadd.f32 %v1440, %v1441
    %v1443 = vsel %vm859, %v455, 0.0
    %v1444 = vadd.f32 %v1442, %v1443
    %v1445 = vsel %vm859, %v456, 0.0
    %v1446 = vadd.f32 %v1444, %v1445
    %v1447 = vsel %vm859, %v457, 0.0
    %v1448 = vadd.f32 %v1446, %v1447
    %v1449 = vsel %vm859, %v1398, 0.0
    %v1450 = vsel %vm859, %v1399, 0.0
    %v1451 = vadd.f32 %v1449, %v1450
    %v1452 = vsel %vm859, %v1400, 0.0
    %v1453 = vadd.f32 %v1451, %v1452
    %v1454 = vsel %vm859, %v1401, 0.0
    %v1455 = vadd.f32 %v1453, %v1454
    %v1456 = vsel %vm859, %v1402, 0.0
    %v1457 = vadd.f32 %v1455, %v1456
    %v1458 = vsel %vm859, %v1403, 0.0
    %v1459 = vadd.f32 %v1457, %v1458
    %vm1460 = vcmask 1041408
    %v1461 = vsel %vm1460, %v1346, 0.0
    %v1462 = vrot.slane %v1461, 4
    %v1463 = vadd.f32 %v1461, %v1462
    %v1464 = vrot.slane %v1463, 2
    %v1465 = vadd.f32 %v1463, %v1464
    %v1466 = vrot.slane %v1465, 1
    %v1467 = vadd.f32 %v1465, %v1466
    %v1468 = vsel %vm1460, %v1357, 0.0
    %v1469 = vrot.slane %v1468, 4
    %v1470 = vadd.f32 %v1468, %v1469
    %v1471 = vrot.slane %v1470, 2
    %v1472 = vadd.f32 %v1470, %v1471
    %v1473 = vrot.slane %v1472, 1
    %v1474 = vadd.f32 %v1472, %v1473
    %v1475 = vsel %vm1460, %v1368, 0.0
    %v1476 = vrot.slane %v1475, 4
    %v1477 = vadd.f32 %v1475, %v1476
    %v1478 = vrot.slane %v1477, 2
    %v1479 = vadd.f32 %v1477, %v1478
    %v1480 = vrot.slane %v1479, 1
    %v1481 = vadd.f32 %v1479, %v1480
    %v1482 = vsel %vm1460, %v1379, 0.0
    %v1483 = vrot.slane %v1482, 4
    %v1484 = vadd.f32 %v1482, %v1483
    %v1485 = vrot.slane %v1484, 2
    %v1486 = vadd.f32 %v1484, %v1485
    %v1487 = vrot.slane %v1486, 1
    %v1488 = vadd.f32 %v1486, %v1487
    %v1493 = vrot.slane %v1346, 2
    %v1494 = vrot.slane %v1357, 2
    %v1495 = vrot.slane %v1368, 2
    %v1496 = vrot.slane %v1379, 2
    %v1501 = vsel %vm1460, %v1493, 0.0
    %v1502 = vrot.slane %v1501, 4
    %v1503 = vadd.f32 %v1501, %v1502
    %v1504 = vrot.slane %v1503, 2
    %v1505 = vadd.f32 %v1503, %v1504
    %v1506 = vrot.slane %v1505, 1
    %v1507 = vadd.f32 %v1505, %v1506
    %v1508 = vsel %vm1460, %v1494, 0.0
    %v1509 = vrot.slane %v1508, 4
    %v1510 = vadd.f32 %v1508, %v1509
    %v1511 = vrot.slane %v1510, 2
    %v1512 = vadd.f32 %v1510, %v1511
    %v1513 = vrot.slane %v1512, 1
    %v1514 = vadd.f32 %v1512, %v1513
    %v1515 = vsel %vm1460, %v1495, 0.0
    %v1516 = vrot.slane %v1515, 4
    %v1517 = vadd.f32 %v1515, %v1516
    %v1518 = vrot.slane %v1517, 2
    %v1519 = vadd.f32 %v1517, %v1518
    %v1520 = vrot.slane %v1519, 1
    %v1521 = vadd.f32 %v1519, %v1520
    %v1522 = vsel %vm1460, %v1496, 0.0
    %v1523 = vrot.slane %v1522, 4
    %v1524 = vadd.f32 %v1522, %v1523
    %v1525 = vrot.slane %v1524, 2
    %v1526 = vadd.f32 %v1524, %v1525
    %v1527 = vrot.slane %v1526, 1
    %v1528 = vadd.f32 %v1526, %v1527
    %v1529 = vsel %vm1460, %v1426, 0.0
    %v1530 = vrot.slane %v1529, 4
    %v1531 = vadd.f32 %v1529, %v1530
    %v1532 = vrot.slane %v1531, 2
    %v1533 = vadd.f32 %v1531, %v1532
    %v1534 = vrot.slane %v1533, 1
    %v1535 = vadd.f32 %v1533, %v1534
    %v1536 = vsel %vm1460, %v1437, 0.0
    %v1537 = vrot.slane %v1536, 4
    %v1538 = vadd.f32 %v1536, %v1537
    %v1539 = vrot.slane %v1538, 2
    %v1540 = vadd.f32 %v1538, %v1539
    %v1541 = vrot.slane %v1540, 1
    %v1542 = vadd.f32 %v1540, %v1541
    %v1543 = vsel %vm1460, %v1448, 0.0
    %v1544 = vrot.slane %v1543, 4
    %v1545 = vadd.f32 %v1543, %v1544
    %v1546 = vrot.slane %v1545, 2
    %v1547 = vadd.f32 %v1545, %v1546
    %v1548 = vrot.slane %v1547, 1
    %v1549 = vadd.f32 %v1547, %v1548
    %v1550 = vsel %vm1460, %v1459, 0.0
    %v1551 = vrot.slane %v1550, 4
    %v1552 = vadd.f32 %v1550, %v1551
    %v1553 = vrot.slane %v1552, 2
    %v1554 = vadd.f32 %v1552, %v1553
    %v1555 = vrot.slane %v1554, 1
    %v1556 = vadd.f32 %v1554, %v1555
    %v1561 = vrot.slane %v1426, 2
    %v1562 = vrot.slane %v1437, 2
    %v1563 = vrot.slane %v1448, 2
    %v1564 = vrot.slane %v1459, 2
    %v1569 = vsel %vm1460, %v1561, 0.0
    %v1570 = vrot.slane %v1569, 4
    %v1571 = vadd.f32 %v1569, %v1570
    %v1572 = vrot.slane %v1571, 2
    %v1573 = vadd.f32 %v1571, %v1572
    %v1574 = vrot.slane %v1573, 1
    %v1575 = vadd.f32 %v1573, %v1574
    %v1576 = vsel %vm1460, %v1562, 0.0
    %v1577 = vrot.slane %v1576, 4
    %v1578 = vadd.f32 %v1576, %v1577
    %v1579 = vrot.slane %v1578, 2
    %v1580 = vadd.f32 %v1578, %v1579
    %v1581 = vrot.slane %v1580, 1
    %v1582 = vadd.f32 %v1580, %v1581
    %v1583 = vsel %vm1460, %v1563, 0.0
    %v1584 = vrot.slane %v1583, 4
    %v1585 = vadd.f32 %v1583, %v1584
    %v1586 = vrot.slane %v1585, 2
    %v1587 = vadd.f32 %v1585, %v1586
    %v1588 = vrot.slane %v1587, 1
    %v1589 = vadd.f32 %v1587, %v1588
    %v1590 = vsel %vm1460, %v1564, 0.0
    %v1591 = vrot.slane %v1590, 4
    %v1592 = vadd.f32 %v1590, %v1591
    %v1593 = vrot.slane %v1592, 2
    %v1594 = vadd.f32 %v1592, %v1593
    %v1595 = vrot.slane %v1594, 1
    %v1596 = vadd.f32 %v1594, %v1595
    %v1597 = vadd.f32 %v1467, %v1507
    %v1598 = vadd.f32 %v1474, %v1514
    %v1599 = vadd.f32 %v1481, %v1521
    %v1600 = vadd.f32 %v1488, %v1528
    %v1601 = vadd.f32 %v1597, %v1535
    %v1602 = vadd.f32 %v1598, %v1542
    %v1603 = vadd.f32 %v1599, %v1549
    %v1604 = vadd.f32 %v1600, %v1556
    %v1605 = vadd.f32 %v1601, %v1575
    %v1606 = vadd.f32 %v1602, %v1582
    %v1607 = vadd.f32 %v1603, %v1589
    %v1608 = vadd.f32 %v1604, %v1596
    %v1609 = vmul.f32 %v1605, 0.020833334
    %v1610 = vmul.f32 %v1606, 0.020833334
    %v1611 = vmul.f32 %v1607, 0.020833334
    %v1612 = vmul.f32 %v1608, 0.020833334
    %v1613 = vmul.f32 %v1467, 0.083333336
    %v1614 = vmul.f32 %v1474, 0.083333336
    %v1615 = vmul.f32 %v1481, 0.083333336
    %v1616 = vmul.f32 %v1488, 0.083333336
    %v1617 = vmul.f32 %v1507, 0.083333336
    %v1618 = vmul.f32 %v1514, 0.083333336
    %v1619 = vmul.f32 %v1521, 0.083333336
    %v1620 = vmul.f32 %v1528, 0.083333336
    %v1621 = vmul.f32 %v1535, 0.083333336
    %v1622 = vmul.f32 %v1542, 0.083333336
    %v1623 = vmul.f32 %v1549, 0.083333336
    %v1624 = vmul.f32 %v1556, 0.083333336
    %v1625 = vmul.f32 %v1575, 0.083333336
    %v1626 = vmul.f32 %v1582, 0.083333336
    %v1627 = vmul.f32 %v1589, 0.083333336
    %v1628 = vmul.f32 %v1596, 0.083333336
    %v1633 = vsel %vm766, %v1611, %v1609
    %v1634 = vsel %vm766, %v1612, %v1610
    %v1641 = vsel %vm766, %v1615, %v1613
    %v1642 = vsel %vm766, %v1616, %v1614
    %v1649 = vsel %vm766, %v1619, %v1617
    %v1650 = vsel %vm766, %v1620, %v1618
    %v1657 = vsel %vm766, %v1623, %v1621
    %v1658 = vsel %vm766, %v1624, %v1622
    %v1665 = vsel %vm766, %v1627, %v1625
    %v1666 = vsel %vm766, %v1628, %v1626
    %v1669 = vld [vmem:[#allocation8] sm:$0xff]
    %v1670 = vld [vmem:[#allocation8 + $0x8] sm:$0xff]
    %v1671 = vld [vmem:[#allocation8 + $0x10] sm:$0xff]
    %v1672 = vld [vmem:[#allocation8 + $0x18] sm:$0xff]
    %v1673 = vld [vmem:[#allocation8 + $0x20] sm:$0xff]
    %v1674 = vld [vmem:[#allocation8 + $0x28] sm:$0xff]
    %v1675 = vld [vmem:[#allocation8 + $0x30] sm:$0xff]
    %v1676 = vld [vmem:[#allocation8 + $0x38] sm:$0xff]
    %v1677 = vld [vmem:[#allocation8 + $0x40] sm:$0xff]
    %v1678 = vld [vmem:[#allocation8 + $0x48] sm:$0xff]
    %v1679 = vld [vmem:[#allocation8 + $0x50] sm:$0xff]
    %v1680 = vld [vmem:[#allocation8 + $0x58] sm:$0xff]
    %v1681 = vld [vmem:[#allocation8 + $0x60] sm:$0xff]
    %v1682 = vld [vmem:[#allocation8 + $0x68] sm:$0xff]
    %v1683 = vld [vmem:[#allocation8 + $0x70] sm:$0xff]
    %v1684 = vld [vmem:[#allocation8 + $0x78] sm:$0xff]
    %v1685 = vld [vmem:[#allocation8 + $0x80] sm:$0xff]
    %v1686 = vld [vmem:[#allocation8 + $0x88] sm:$0xff]
    %v1687 = vld [vmem:[#allocation8 + $0x90] sm:$0xff]
    %v1688 = vld [vmem:[#allocation8 + $0x98] sm:$0xff]
    %v1689 = vld [vmem:[#allocation8 + $0xa0] sm:$0xff]
    %v1690 = vld [vmem:[#allocation8 + $0xa8] sm:$0xff]
    %v1691 = vld [vmem:[#allocation8 + $0xb0] sm:$0xff]
    %v1692 = vld [vmem:[#allocation8 + $0xb8] sm:$0xff]
    %v1693 = vld [vmem:[#allocation8 + $0xc0] sm:$0xff]
    %v1694 = vld [vmem:[#allocation8 + $0xc8] sm:$0xff]
    %v1695 = vld [vmem:[#allocation8 + $0xd0] sm:$0xff]
    %v1696 = vld [vmem:[#allocation8 + $0xd8] sm:$0xff]
    %v1697 = vld [vmem:[#allocation8 + $0xe0] sm:$0xff]
    %v1698 = vld [vmem:[#allocation8 + $0xe8] sm:$0xff]
    %v1699 = vld [vmem:[#allocation8 + $0xf0] sm:$0xff]
    %v1700 = vld [vmem:[#allocation8 + $0xf8] sm:$0xff]
    %v1701 = vld [vmem:[#allocation8 + $0x100] sm:$0xff]
    %v1702 = vld [vmem:[#allocation8 + $0x108] sm:$0xff]
    %v1703 = vld [vmem:[#allocation8 + $0x110] sm:$0xff]
    %v1704 = vld [vmem:[#allocation8 + $0x118] sm:$0xff]
    %v1705 = vld [vmem:[#allocation8 + $0x120] sm:$0xff]
    %v1706 = vld [vmem:[#allocation8 + $0x128] sm:$0xff]
    %v1707 = vld [vmem:[#allocation8 + $0x130] sm:$0xff]
    %v1708 = vld [vmem:[#allocation8 + $0x138] sm:$0xff]
    %v1709 = vld [vmem:[#allocation8 + $0x140] sm:$0xff]
    %v1710 = vld [vmem:[#allocation8 + $0x148] sm:$0xff]
    %v1711 = vld [vmem:[#allocation8 + $0x150] sm:$0xff]
    %v1712 = vld [vmem:[#allocation8 + $0x158] sm:$0xff]
    %v1713 = vld [vmem:[#allocation8 + $0x160] sm:$0xff]
    %v1714 = vld [vmem:[#allocation8 + $0x168] sm:$0xff]
    %v1715 = vld [vmem:[#allocation8 + $0x170] sm:$0xff]
    %v1716 = vld [vmem:[#allocation8 + $0x178] sm:$0xff]
    %v1717 = vld [vmem:[#allocation8 + $0x180] sm:$0xff]
    %v1718 = vld [vmem:[#allocation8 + $0x188] sm:$0xff]
    %v1719 = vld [vmem:[#allocation8 + $0x190] sm:$0xff]
    %v1720 = vld [vmem:[#allocation8 + $0x198] sm:$0xff]
    %v1721 = vld [vmem:[#allocation8 + $0x1a0] sm:$0xff]
    %v1722 = vld [vmem:[#allocation8 + $0x1a8] sm:$0xff]
    %v1723 = vld [vmem:[#allocation8 + $0x1b0] sm:$0xff]
    %v1724 = vld [vmem:[#allocation8 + $0x1b8] sm:$0xff]
    %v1725 = vld [vmem:[#allocation8 + $0x1c0] sm:$0xff]
    %v1726 = vld [vmem:[#allocation8 + $0x1c8] sm:$0xff]
    %v1727 = vld [vmem:[#allocation8 + $0x1d0] sm:$0xff]
    %v1728 = vld [vmem:[#allocation8 + $0x1d8] sm:$0xff]
    %v1729 = vld [vmem:[#allocation8 + $0x1e0] sm:$0xff]
    %v1730 = vld [vmem:[#allocation8 + $0x1e8] sm:$0xff]
    %v1731 = vld [vmem:[#allocation8 + $0x1f0] sm:$0xff]
    %v1732 = vld [vmem:[#allocation8 + $0x1f8] sm:$0xff]
    %v1733 = vld [vmem:[#allocation8 + $0x200] sm:$0xff]
    %v1734 = vld [vmem:[#allocation8 + $0x208] sm:$0xff]
    %v1735 = vld [vmem:[#allocation8 + $0x210] sm:$0xff]
    %v1736 = vld [vmem:[#allocation8 + $0x218] sm:$0xff]
    %v1737 = vld [vmem:[#allocation8 + $0x220] sm:$0xff]
    %v1738 = vld [vmem:[#allocation8 + $0x228] sm:$0xff]
    %v1739 = vld [vmem:[#allocation8 + $0x230] sm:$0xff]
    %v1740 = vld [vmem:[#allocation8 + $0x238] sm:$0xff]
    %v1741 = vld [vmem:[#allocation8 + $0x240] sm:$0xff]
    %v1742 = vld [vmem:[#allocation8 + $0x248] sm:$0xff]
    %v1743 = vld [vmem:[#allocation8 + $0x250] sm:$0xff]
    %v1744 = vld [vmem:[#allocation8 + $0x258] sm:$0xff]
    %v1745 = vld [vmem:[#allocation8 + $0x260] sm:$0xff]
    %v1746 = vld [vmem:[#allocation8 + $0x268] sm:$0xff]
    %v1747 = vld [vmem:[#allocation8 + $0x270] sm:$0xff]
    %v1748 = vld [vmem:[#allocation8 + $0x278] sm:$0xff]
    %v1749 = vld [vmem:[#allocation8 + $0x280] sm:$0xff]
    %v1750 = vld [vmem:[#allocation8 + $0x288] sm:$0xff]
    %v1751 = vld [vmem:[#allocation8 + $0x290] sm:$0xff]
    %v1752 = vld [vmem:[#allocation8 + $0x298] sm:$0xff]
    %v1753 = vld [vmem:[#allocation8 + $0x2a0] sm:$0xff]
    %v1754 = vld [vmem:[#allocation8 + $0x2a8] sm:$0xff]
    %v1755 = vld [vmem:[#allocation8 + $0x2b0] sm:$0xff]
    %v1756 = vld [vmem:[#allocation8 + $0x2b8] sm:$0xff]
    %v1757 = vld [vmem:[#allocation8 + $0x2c0] sm:$0xff]
    %v1758 = vld [vmem:[#allocation8 + $0x2c8] sm:$0xff]
    %v1759 = vld [vmem:[#allocation8 + $0x2d0] sm:$0xff]
    %v1760 = vld [vmem:[#allocation8 + $0x2d8] sm:$0xff]
    %v1761 = vld [vmem:[#allocation8 + $0x2e0] sm:$0xff]
    %v1762 = vld [vmem:[#allocation8 + $0x2e8] sm:$0xff]
    %v1763 = vld [vmem:[#allocation8 + $0x2f0] sm:$0xff]
    %v1764 = vld [vmem:[#allocation8 + $0x2f8] sm:$0xff]
    %v1765 = vld [vmem:[#allocation8 + $0x300] sm:$0xff]
    %v1766 = vld [vmem:[#allocation8 + $0x308] sm:$0xff]
    %v1767 = vld [vmem:[#allocation8 + $0x310] sm:$0xff]
    %v1768 = vld [vmem:[#allocation8 + $0x318] sm:$0xff]
    %v1769 = vld [vmem:[#allocation8 + $0x320] sm:$0xff]
    %v1770 = vld [vmem:[#allocation8 + $0x328] sm:$0xff]
    %v1771 = vld [vmem:[#allocation8 + $0x330] sm:$0xff]
    %v1772 = vld [vmem:[#allocation8 + $0x338] sm:$0xff]
    %v1773 = vld [vmem:[#allocation8 + $0x340] sm:$0xff]
    %v1774 = vld [vmem:[#allocation8 + $0x348] sm:$0xff]
    %v1775 = vld [vmem:[#allocation8 + $0x350] sm:$0xff]
    %v1776 = vld [vmem:[#allocation8 + $0x358] sm:$0xff]
    %v1777 = vld [vmem:[#allocation8 + $0x360] sm:$0xff]
    %v1778 = vld [vmem:[#allocation8 + $0x368] sm:$0xff]
    %v1779 = vld [vmem:[#allocation8 + $0x370] sm:$0xff]
    %v1780 = vld [vmem:[#allocation8 + $0x378] sm:$0xff]
    %v1781 = vld [vmem:[#allocation8 + $0x380] sm:$0xff]
    %v1782 = vld [vmem:[#allocation8 + $0x388] sm:$0xff]
    %v1783 = vld [vmem:[#allocation8 + $0x390] sm:$0xff]
    %v1784 = vld [vmem:[#allocation8 + $0x398] sm:$0xff]
    %v1785 = vld [vmem:[#allocation8 + $0x3a0] sm:$0xff]
    %v1786 = vld [vmem:[#allocation8 + $0x3a8] sm:$0xff]
    %v1787 = vld [vmem:[#allocation8 + $0x3b0] sm:$0xff]
    %v1788 = vld [vmem:[#allocation8 + $0x3b8] sm:$0xff]
    %v1789 = vld [vmem:[#allocation8 + $0x3c0] sm:$0xff]
    %v1790 = vld [vmem:[#allocation8 + $0x3c8] sm:$0xff]
    %v1791 = vld [vmem:[#allocation8 + $0x3d0] sm:$0xff]
    %v1792 = vld [vmem:[#allocation8 + $0x3d8] sm:$0xff]
    %v1793 = vld [vmem:[#allocation8 + $0x3e0] sm:$0xff]
    %v1794 = vld [vmem:[#allocation8 + $0x3e8] sm:$0xff]
    %v1795 = vld [vmem:[#allocation8 + $0x3f0] sm:$0xff]
    %v1796 = vld [vmem:[#allocation8 + $0x3f8] sm:$0xff]
    %v1797 = vld [vmem:[#allocation8 + $0x400] sm:$0xff]
    %v1798 = vld [vmem:[#allocation8 + $0x408] sm:$0xff]
    %v1799 = vld [vmem:[#allocation8 + $0x410] sm:$0xff]
    %v1800 = vld [vmem:[#allocation8 + $0x418] sm:$0xff]
    %v1801 = vld [vmem:[#allocation8 + $0x420] sm:$0xff]
    %v1802 = vld [vmem:[#allocation8 + $0x428] sm:$0xff]
    %v1803 = vld [vmem:[#allocation8 + $0x430] sm:$0xff]
    %v1804 = vld [vmem:[#allocation8 + $0x438] sm:$0xff]
    %v1805 = vld [vmem:[#allocation8 + $0x440] sm:$0xff]
    %v1806 = vld [vmem:[#allocation8 + $0x448] sm:$0xff]
    %v1807 = vld [vmem:[#allocation8 + $0x450] sm:$0xff]
    %v1808 = vld [vmem:[#allocation8 + $0x458] sm:$0xff]
    %v1809 = vld [vmem:[#allocation8 + $0x460] sm:$0xff]
    %v1810 = vld [vmem:[#allocation8 + $0x468] sm:$0xff]
    %v1811 = vld [vmem:[#allocation8 + $0x470] sm:$0xff]
    %v1812 = vld [vmem:[#allocation8 + $0x478] sm:$0xff]
    %v1813 = vld [vmem:[#allocation8 + $0x480] sm:$0xff]
    %v1814 = vld [vmem:[#allocation8 + $0x488] sm:$0xff]
    %v1815 = vld [vmem:[#allocation8 + $0x490] sm:$0xff]
    %v1816 = vld [vmem:[#allocation8 + $0x498] sm:$0xff]
    %v1817 = vld [vmem:[#allocation8 + $0x4a0] sm:$0xff]
    %v1818 = vld [vmem:[#allocation8 + $0x4a8] sm:$0xff]
    %v1819 = vld [vmem:[#allocation8 + $0x4b0] sm:$0xff]
    %v1820 = vld [vmem:[#allocation8 + $0x4b8] sm:$0xff]
    %v1821 = vld [vmem:[#allocation8 + $0x4c0] sm:$0xff]
    %v1822 = vld [vmem:[#allocation8 + $0x4c8] sm:$0xff]
    %v1823 = vld [vmem:[#allocation8 + $0x4d0] sm:$0xff]
    %v1824 = vld [vmem:[#allocation8 + $0x4d8] sm:$0xff]
    %v1825 = vld [vmem:[#allocation8 + $0x4e0] sm:$0xff]
    %v1826 = vld [vmem:[#allocation8 + $0x4e8] sm:$0xff]
    %v1827 = vld [vmem:[#allocation8 + $0x4f0] sm:$0xff]
    %v1828 = vld [vmem:[#allocation8 + $0x4f8] sm:$0xff]
    %v1829 = vld [vmem:[#allocation10] sm:$0xff]
    %v1830 = vld [vmem:[#allocation10 + $0x8] sm:$0xff]
    %v1831 = vld [vmem:[#allocation10 + $0x10] sm:$0xff]
    %v1832 = vld [vmem:[#allocation10 + $0x18] sm:$0xff]
    %v1833 = vld [vmem:[#allocation10 + $0x20] sm:$0xff]
    %v1834 = vld [vmem:[#allocation10 + $0x28] sm:$0xff]
    %v1835 = vld [vmem:[#allocation10 + $0x30] sm:$0xff]
    %v1836 = vld [vmem:[#allocation10 + $0x38] sm:$0xff]
    %v1837 = vld [vmem:[#allocation10 + $0x40] sm:$0xff]
    %v1838 = vld [vmem:[#allocation10 + $0x48] sm:$0xff]
    %v1839 = vld [vmem:[#allocation10 + $0x50] sm:$0xff]
    %v1840 = vld [vmem:[#allocation10 + $0x58] sm:$0xff]
    %v1841 = vld [vmem:[#allocation10 + $0x60] sm:$0xff]
    %v1842 = vld [vmem:[#allocation10 + $0x68] sm:$0xff]
    %v1843 = vld [vmem:[#allocation10 + $0x70] sm:$0xff]
    %v1844 = vld [vmem:[#allocation10 + $0x78] sm:$0xff]
    %v1845 = vld [vmem:[#allocation10 + $0x80] sm:$0xff]
    %v1846 = vld [vmem:[#allocation10 + $0x88] sm:$0xff]
    %v1847 = vld [vmem:[#allocation10 + $0x90] sm:$0xff]
    %v1848 = vld [vmem:[#allocation10 + $0x98] sm:$0xff]
    %v1849 = vld [vmem:[#allocation10 + $0xa0] sm:$0xff]
    %v1850 = vld [vmem:[#allocation10 + $0xa8] sm:$0xff]
    %v1851 = vld [vmem:[#allocation10 + $0xb0] sm:$0xff]
    %v1852 = vld [vmem:[#allocation10 + $0xb8] sm:$0xff]
    %v1853 = vld [vmem:[#allocation10 + $0xc0] sm:$0xff]
    %v1854 = vld [vmem:[#allocation10 + $0xc8] sm:$0xff]
    %v1855 = vld [vmem:[#allocation10 + $0xd0] sm:$0xff]
    %v1856 = vld [vmem:[#allocation10 + $0xd8] sm:$0xff]
    %v1857 = vld [vmem:[#allocation10 + $0xe0] sm:$0xff]
    %v1858 = vld [vmem:[#allocation10 + $0xe8] sm:$0xff]
    %v1859 = vld [vmem:[#allocation10 + $0xf0] sm:$0xff]
    %v1860 = vld [vmem:[#allocation10 + $0xf8] sm:$0xff]
    %v1861 = vld [vmem:[#allocation10 + $0x100] sm:$0xff]
    %v1862 = vld [vmem:[#allocation10 + $0x108] sm:$0xff]
    %v1863 = vld [vmem:[#allocation10 + $0x110] sm:$0xff]
    %v1864 = vld [vmem:[#allocation10 + $0x118] sm:$0xff]
    %v1865 = vld [vmem:[#allocation10 + $0x120] sm:$0xff]
    %v1866 = vld [vmem:[#allocation10 + $0x128] sm:$0xff]
    %v1867 = vld [vmem:[#allocation10 + $0x130] sm:$0xff]
    %v1868 = vld [vmem:[#allocation10 + $0x138] sm:$0xff]
    %v1869 = vld [vmem:[#allocation10 + $0x140] sm:$0xff]
    %v1870 = vld [vmem:[#allocation10 + $0x148] sm:$0xff]
    %v1871 = vld [vmem:[#allocation10 + $0x150] sm:$0xff]
    %v1872 = vld [vmem:[#allocation10 + $0x158] sm:$0xff]
    %v1873 = vld [vmem:[#allocation10 + $0x160] sm:$0xff]
    %v1874 = vld [vmem:[#allocation10 + $0x168] sm:$0xff]
    %v1875 = vld [vmem:[#allocation10 + $0x170] sm:$0xff]
    %v1876 = vld [vmem:[#allocation10 + $0x178] sm:$0xff]
    %v1877 = vld [vmem:[#allocation10 + $0x180] sm:$0xff]
    %v1878 = vld [vmem:[#allocation10 + $0x188] sm:$0xff]
    %v1879 = vld [vmem:[#allocation10 + $0x190] sm:$0xff]
    %v1880 = vld [vmem:[#allocation10 + $0x198] sm:$0xff]
    %v1881 = vld [vmem:[#allocation10 + $0x1a0] sm:$0xff]
    %v1882 = vld [vmem:[#allocation10 + $0x1a8] sm:$0xff]
    %v1883 = vld [vmem:[#allocation10 + $0x1b0] sm:$0xff]
    %v1884 = vld [vmem:[#allocation10 + $0x1b8] sm:$0xff]
    %v1885 = vld [vmem:[#allocation10 + $0x1c0] sm:$0xff]
    %v1886 = vld [vmem:[#allocation10 + $0x1c8] sm:$0xff]
    %v1887 = vld [vmem:[#allocation10 + $0x1d0] sm:$0xff]
    %v1888 = vld [vmem:[#allocation10 + $0x1d8] sm:$0xff]
    %v1889 = vld [vmem:[#allocation10 + $0x1e0] sm:$0xff]
    %v1890 = vld [vmem:[#allocation10 + $0x1e8] sm:$0xff]
    %v1891 = vld [vmem:[#allocation10 + $0x1f0] sm:$0xff]
    %v1892 = vld [vmem:[#allocation10 + $0x1f8] sm:$0xff]
    %v1893 = vld [vmem:[#allocation10 + $0x200] sm:$0xff]
    %v1894 = vld [vmem:[#allocation10 + $0x208] sm:$0xff]
    %v1895 = vld [vmem:[#allocation10 + $0x210] sm:$0xff]
    %v1896 = vld [vmem:[#allocation10 + $0x218] sm:$0xff]
    %v1897 = vld [vmem:[#allocation10 + $0x220] sm:$0xff]
    %v1898 = vld [vmem:[#allocation10 + $0x228] sm:$0xff]
    %v1899 = vld [vmem:[#allocation10 + $0x230] sm:$0xff]
    %v1900 = vld [vmem:[#allocation10 + $0x238] sm:$0xff]
    %v1901 = vld [vmem:[#allocation10 + $0x240] sm:$0xff]
    %v1902 = vld [vmem:[#allocation10 + $0x248] sm:$0xff]
    %v1903 = vld [vmem:[#allocation10 + $0x250] sm:$0xff]
    %v1904 = vld [vmem:[#allocation10 + $0x258] sm:$0xff]
    %v1905 = vld [vmem:[#allocation10 + $0x260] sm:$0xff]
    %v1906 = vld [vmem:[#allocation10 + $0x268] sm:$0xff]
    %v1907 = vld [vmem:[#allocation10 + $0x270] sm:$0xff]
    %v1908 = vld [vmem:[#allocation10 + $0x278] sm:$0xff]
    %v1909 = vld [vmem:[#allocation10 + $0x280] sm:$0xff]
    %v1910 = vld [vmem:[#allocation10 + $0x288] sm:$0xff]
    %v1911 = vld [vmem:[#allocation10 + $0x290] sm:$0xff]
    %v1912 = vld [vmem:[#allocation10 + $0x298] sm:$0xff]
    %v1913 = vld [vmem:[#allocation10 + $0x2a0] sm:$0xff]
    %v1914 = vld [vmem:[#allocation10 + $0x2a8] sm:$0xff]
    %v1915 = vld [vmem:[#allocation10 + $0x2b0] sm:$0xff]
    %v1916 = vld [vmem:[#allocation10 + $0x2b8] sm:$0xff]
    %v1917 = vld [vmem:[#allocation10 + $0x2c0] sm:$0xff]
    %v1918 = vld [vmem:[#allocation10 + $0x2c8] sm:$0xff]
    %v1919 = vld [vmem:[#allocation10 + $0x2d0] sm:$0xff]
    %v1920 = vld [vmem:[#allocation10 + $0x2d8] sm:$0xff]
    %v1921 = vld [vmem:[#allocation10 + $0x2e0] sm:$0xff]
    %v1922 = vld [vmem:[#allocation10 + $0x2e8] sm:$0xff]
    %v1923 = vld [vmem:[#allocation10 + $0x2f0] sm:$0xff]
    %v1924 = vld [vmem:[#allocation10 + $0x2f8] sm:$0xff]
    %v1925 = vld [vmem:[#allocation10 + $0x300] sm:$0xff]
    %v1926 = vld [vmem:[#allocation10 + $0x308] sm:$0xff]
    %v1927 = vld [vmem:[#allocation10 + $0x310] sm:$0xff]
    %v1928 = vld [vmem:[#allocation10 + $0x318] sm:$0xff]
    %v1929 = vld [vmem:[#allocation10 + $0x320] sm:$0xff]
    %v1930 = vld [vmem:[#allocation10 + $0x328] sm:$0xff]
    %v1931 = vld [vmem:[#allocation10 + $0x330] sm:$0xff]
    %v1932 = vld [vmem:[#allocation10 + $0x338] sm:$0xff]
    %v1933 = vld [vmem:[#allocation10 + $0x340] sm:$0xff]
    %v1934 = vld [vmem:[#allocation10 + $0x348] sm:$0xff]
    %v1935 = vld [vmem:[#allocation10 + $0x350] sm:$0xff]
    %v1936 = vld [vmem:[#allocation10 + $0x358] sm:$0xff]
    %v1937 = vld [vmem:[#allocation10 + $0x360] sm:$0xff]
    %v1938 = vld [vmem:[#allocation10 + $0x368] sm:$0xff]
    %v1939 = vld [vmem:[#allocation10 + $0x370] sm:$0xff]
    %v1940 = vld [vmem:[#allocation10 + $0x378] sm:$0xff]
    %v1941 = vld [vmem:[#allocation10 + $0x380] sm:$0xff]
    %v1942 = vld [vmem:[#allocation10 + $0x388] sm:$0xff]
    %v1943 = vld [vmem:[#allocation10 + $0x390] sm:$0xff]
    %v1944 = vld [vmem:[#allocation10 + $0x398] sm:$0xff]
    %v1945 = vld [vmem:[#allocation10 + $0x3a0] sm:$0xff]
    %v1946 = vld [vmem:[#allocation10 + $0x3a8] sm:$0xff]
    %v1947 = vld [vmem:[#allocation10 + $0x3b0] sm:$0xff]
    %v1948 = vld [vmem:[#allocation10 + $0x3b8] sm:$0xff]
    %v1949 = vld [vmem:[#allocation10 + $0x3c0] sm:$0xff]
    %v1950 = vld [vmem:[#allocation10 + $0x3c8] sm:$0xff]
    %v1951 = vld [vmem:[#allocation10 + $0x3d0] sm:$0xff]
    %v1952 = vld [vmem:[#allocation10 + $0x3d8] sm:$0xff]
    %v1953 = vld [vmem:[#allocation10 + $0x3e0] sm:$0xff]
    %v1954 = vld [vmem:[#allocation10 + $0x3e8] sm:$0xff]
    %v1955 = vld [vmem:[#allocation10 + $0x3f0] sm:$0xff]
    %v1956 = vld [vmem:[#allocation10 + $0x3f8] sm:$0xff]
    %v1957 = vld [vmem:[#allocation10 + $0x400] sm:$0xff]
    %v1958 = vld [vmem:[#allocation10 + $0x408] sm:$0xff]
    %v1959 = vld [vmem:[#allocation10 + $0x410] sm:$0xff]
    %v1960 = vld [vmem:[#allocation10 + $0x418] sm:$0xff]
    %v1961 = vld [vmem:[#allocation10 + $0x420] sm:$0xff]
    %v1962 = vld [vmem:[#allocation10 + $0x428] sm:$0xff]
    %v1963 = vld [vmem:[#allocation10 + $0x430] sm:$0xff]
    %v1964 = vld [vmem:[#allocation10 + $0x438] sm:$0xff]
    %v1965 = vld [vmem:[#allocation10 + $0x440] sm:$0xff]
    %v1966 = vld [vmem:[#allocation10 + $0x448] sm:$0xff]
    %v1967 = vld [vmem:[#allocation10 + $0x450] sm:$0xff]
    %v1968 = vld [vmem:[#allocation10 + $0x458] sm:$0xff]
    %v1969 = vld [vmem:[#allocation10 + $0x460] sm:$0xff]
    %v1970 = vld [vmem:[#allocation10 + $0x468] sm:$0xff]
    %v1971 = vld [vmem:[#allocation10 + $0x470] sm:$0xff]
    %v1972 = vld [vmem:[#allocation10 + $0x478] sm:$0xff]
    %v1973 = vld [vmem:[#allocation10 + $0x480] sm:$0xff]
    %v1974 = vld [vmem:[#allocation10 + $0x488] sm:$0xff]
    %v1975 = vld [vmem:[#allocation10 + $0x490] sm:$0xff]
    %v1976 = vld [vmem:[#allocation10 + $0x498] sm:$0xff]
    %v1977 = vld [vmem:[#allocation10 + $0x4a0] sm:$0xff]
    %v1978 = vld [vmem:[#allocation10 + $0x4a8] sm:$0xff]
    %v1979 = vld [vmem:[#allocation10 + $0x4b0] sm:$0xff]
    %v1980 = vld [vmem:[#allocation10 + $0x4b8] sm:$0xff]
    %v1981 = vld [vmem:[#allocation10 + $0x4c0] sm:$0xff]
    %v1982 = vld [vmem:[#allocation10 + $0x4c8] sm:$0xff]
    %v1983 = vld [vmem:[#allocation10 + $0x4d0] sm:$0xff]
    %v1984 = vld [vmem:[#allocation10 + $0x4d8] sm:$0xff]
    %v1985 = vld [vmem:[#allocation10 + $0x4e0] sm:$0xff]
    %v1986 = vld [vmem:[#allocation10 + $0x4e8] sm:$0xff]
    %v1987 = vld [vmem:[#allocation10 + $0x4f0] sm:$0xff]
    %v1988 = vld [vmem:[#allocation10 + $0x4f8] sm:$0xff]
    %1989 = vmatprep.subr.mxu0 0.0
    %1990 = vmatpush1.msra.mxu0 %v1829
    %1991 = vmatprep.subr.mxu0 0.0
    %1992 = vmatpush1.msra.mxu0 %v1830
    %1993 = vmatprep.subr.mxu0 0.0
    %1994 = vmatpush1.msra.mxu0 %v1831
    %1995 = vmatprep.subr.mxu0 0.0
    %1996 = vmatpush1.msra.mxu0 %v1832
    %1997 = vmatprep.subr.mxu0 0.0
    %1998 = vmatpush1.msra.mxu0 %v1833
    %1999 = vmatprep.subr.mxu0 0.0
    %2000 = vmatpush1.msra.mxu0 %v1834
    %2001 = vmatprep.subr.mxu0 0.0
    %2002 = vmatpush1.msra.mxu0 %v1835
    %2003 = vmatprep.subr.mxu0 0.0
    %2004 = vmatpush1.msra.mxu0 %v1836
    %2005 = vmatprep.subr.mxu0 0.0
    %2006 = vmatpush1.msra.mxu0 %v1837
    %2007 = vmatprep.subr.mxu0 0.0
    %2008 = vmatpush1.msra.mxu0 %v1838
    %2009 = vmatprep.subr.mxu0 0.0
    %2010 = vmatpush1.msra.mxu0 %v1839
    %2011 = vmatprep.subr.mxu0 0.0
    %2012 = vmatpush1.msra.mxu0 %v1840
    %2013 = vmatprep.subr.mxu0 0.0
    %2014 = vmatpush1.msra.mxu0 %v1841
    %2015 = vmatprep.subr.mxu0 0.0
    %2016 = vmatpush1.msra.mxu0 %v1842
    %2017 = vmatprep.subr.mxu0 0.0
    %2018 = vmatpush1.msra.mxu0 %v1843
    %2019 = vmatprep.subr.mxu0 0.0
    %2020 = vmatpush1.msra.mxu0 %v1844
    %2021 = vmatprep.subr.mxu0 0.0
    %2022 = vmatpush1.msra.mxu0 %v1845
    %2023 = vmatprep.subr.mxu0 0.0
    %2024 = vmatpush1.msra.mxu0 %v1846
    %2025 = vmatprep.subr.mxu0 0.0
    %2026 = vmatpush1.msra.mxu0 %v1847
    %2027 = vmatprep.subr.mxu0 0.0
    %2028 = vmatpush1.msra.mxu0 %v1848
    %2029 = vmatprep.subr.mxu0 0.0
    %2030 = vmatpush1.msra.mxu0 %v1849
    %2031 = vmatprep.subr.mxu0 0.0
    %2032 = vmatpush1.msra.mxu0 %v1850
    %2033 = vmatprep.subr.mxu0 0.0
    %2034 = vmatpush1.msra.mxu0 %v1851
    %2035 = vmatprep.subr.mxu0 0.0
    %2036 = vmatpush1.msra.mxu0 %v1852
    %2037 = vmatprep.subr.mxu0 0.0
    %2038 = vmatpush1.msra.mxu0 %v1853
    %2039 = vmatprep.subr.mxu0 0.0
    %2040 = vmatpush1.msra.mxu0 %v1854
    %2041 = vmatprep.subr.mxu0 0.0
    %2042 = vmatpush1.msra.mxu0 %v1855
    %2043 = vmatprep.subr.mxu0 0.0
    %2044 = vmatpush1.msra.mxu0 %v1856
    %2045 = vmatprep.subr.mxu0 0.0
    %2046 = vmatpush1.msra.mxu0 %v1857
    %2047 = vmatprep.subr.mxu0 0.0
    %2048 = vmatpush1.msra.mxu0 %v1858
    %2049 = vmatprep.subr.mxu0 0.0
    %2050 = vmatpush1.msra.mxu0 %v1859
    %2051 = vmatprep.subr.mxu0 0.0
    %2052 = vmatpush1.msra.mxu0 %v1860
    %2053 = vmatprep.mubr.f32.mxu0 %v1033
    %2054 = vmatmul.mubr.f32.gmra.mrb[0].mxu0 %v1032
    %v2055 = vpop.f32.mrb[0].mxu0
    %v2056 = vadd.f32 0.0, %v2055
    %v2057 = vpop.f32.mrb[0].mxu0
    %2058 = vdwg.mxu0
    %2059 = vmatprep.subr.mxu0 0.0
    %2060 = vmatpush1.msra.mxu0 %v1861
    %2061 = vmatprep.subr.mxu0 0.0
    %2062 = vmatpush1.msra.mxu0 %v1862
    %2063 = vmatprep.subr.mxu0 0.0
    %2064 = vmatpush1.msra.mxu0 %v1863
    %2065 = vmatprep.subr.mxu0 0.0
    %2066 = vmatpush1.msra.mxu0 %v1864
    %2067 = vmatprep.subr.mxu0 0.0
    %2068 = vmatpush1.msra.mxu0 %v1865
    %2069 = vmatprep.subr.mxu0 0.0
    %2070 = vmatpush1.msra.mxu0 %v1866
    %2071 = vmatprep.subr.mxu0 0.0
    %2072 = vmatpush1.msra.mxu0 %v1867
    %2073 = vmatprep.subr.mxu0 0.0
    %2074 = vmatpush1.msra.mxu0 %v1868
    %2075 = vmatprep.subr.mxu0 0.0
    %2076 = vmatpush1.msra.mxu0 %v1869
    %2077 = vmatprep.subr.mxu0 0.0
    %2078 = vmatpush1.msra.mxu0 %v1870
    %2079 = vmatprep.subr.mxu0 0.0
    %2080 = vmatpush1.msra.mxu0 %v1871
    %2081 = vmatprep.subr.mxu0 0.0
    %2082 = vmatpush1.msra.mxu0 %v1872
    %2083 = vmatprep.subr.mxu0 0.0
    %2084 = vmatpush1.msra.mxu0 %v1873
    %2085 = vmatprep.subr.mxu0 0.0
    %2086 = vmatpush1.msra.mxu0 %v1874
    %2087 = vmatprep.subr.mxu0 0.0
    %2088 = vmatpush1.msra.mxu0 %v1875
    %2089 = vmatprep.subr.mxu0 0.0
    %2090 = vmatpush1.msra.mxu0 %v1876
    %2091 = vmatprep.subr.mxu0 0.0
    %2092 = vmatpush1.msra.mxu0 %v1877
    %2093 = vmatprep.subr.mxu0 0.0
    %2094 = vmatpush1.msra.mxu0 %v1878
    %2095 = vmatprep.subr.mxu0 0.0
    %2096 = vmatpush1.msra.mxu0 %v1879
    %2097 = vmatprep.subr.mxu0 0.0
    %2098 = vmatpush1.msra.mxu0 %v1880
    %2099 = vmatprep.subr.mxu0 0.0
    %2100 = vmatpush1.msra.mxu0 %v1881
    %2101 = vmatprep.subr.mxu0 0.0
    %2102 = vmatpush1.msra.mxu0 %v1882
    %2103 = vmatprep.subr.mxu0 0.0
    %2104 = vmatpush1.msra.mxu0 %v1883
    %2105 = vmatprep.subr.mxu0 0.0
    %2106 = vmatpush1.msra.mxu0 %v1884
    %2107 = vmatprep.subr.mxu0 0.0
    %2108 = vmatpush1.msra.mxu0 %v1885
    %2109 = vmatprep.subr.mxu0 0.0
    %2110 = vmatpush1.msra.mxu0 %v1886
    %2111 = vmatprep.subr.mxu0 0.0
    %2112 = vmatpush1.msra.mxu0 %v1887
    %2113 = vmatprep.subr.mxu0 0.0
    %2114 = vmatpush1.msra.mxu0 %v1888
    %2115 = vmatprep.subr.mxu0 0.0
    %2116 = vmatpush1.msra.mxu0 %v1889
    %2117 = vmatprep.subr.mxu0 0.0
    %2118 = vmatpush1.msra.mxu0 %v1890
    %2119 = vmatprep.subr.mxu0 0.0
    %2120 = vmatpush1.msra.mxu0 %v1891
    %2121 = vmatprep.subr.mxu0 0.0
    %2122 = vmatpush1.msra.mxu0 %v1892
    %2123 = vmatprep.mubr.f32.mxu0 %v1041
    %2124 = vmatmul.mubr.f32.gmra.mrb[0].mxu0 %v1040
    %v2125 = vpop.f32.mrb[0].mxu0
    %v2126 = vadd.f32 %v2056, %v2125
    %v2127 = vpop.f32.mrb[0].mxu0
    %2128 = vdwg.mxu0
    %2129 = vmatprep.subr.mxu0 0.0
    %2130 = vmatpush1.msra.mxu0 %v1893
    %2131 = vmatprep.subr.mxu0 0.0
    %2132 = vmatpush1.msra.mxu0 %v1894
    %2133 = vmatprep.subr.mxu0 0.0
    %2134 = vmatpush1.msra.mxu0 %v1895
    %2135 = vmatprep.subr.mxu0 0.0
    %2136 = vmatpush1.msra.mxu0 %v1896
    %2137 = vmatprep.subr.mxu0 0.0
    %2138 = vmatpush1.msra.mxu0 %v1897
    %2139 = vmatprep.subr.mxu0 0.0
    %2140 = vmatpush1.msra.mxu0 %v1898
    %2141 = vmatprep.subr.mxu0 0.0
    %2142 = vmatpush1.msra.mxu0 %v1899
    %2143 = vmatprep.subr.mxu0 0.0
    %2144 = vmatpush1.msra.mxu0 %v1900
    %2145 = vmatprep.subr.mxu0 0.0
    %2146 = vmatpush1.msra.mxu0 %v1901
    %2147 = vmatprep.subr.mxu0 0.0
    %2148 = vmatpush1.msra.mxu0 %v1902
    %2149 = vmatprep.subr.mxu0 0.0
    %2150 = vmatpush1.msra.mxu0 %v1903
    %2151 = vmatprep.subr.mxu0 0.0
    %2152 = vmatpush1.msra.mxu0 %v1904
    %2153 = vmatprep.subr.mxu0 0.0
    %2154 = vmatpush1.msra.mxu0 %v1905
    %2155 = vmatprep.subr.mxu0 0.0
    %2156 = vmatpush1.msra.mxu0 %v1906
    %2157 = vmatprep.subr.mxu0 0.0
    %2158 = vmatpush1.msra.mxu0 %v1907
    %2159 = vmatprep.subr.mxu0 0.0
    %2160 = vmatpush1.msra.mxu0 %v1908
    %2161 = vmatprep.subr.mxu0 0.0
    %2162 = vmatpush1.msra.mxu0 %v1909
    %2163 = vmatprep.subr.mxu0 0.0
    %2164 = vmatpush1.msra.mxu0 %v1910
    %2165 = vmatprep.subr.mxu0 0.0
    %2166 = vmatpush1.msra.mxu0 %v1911
    %2167 = vmatprep.subr.mxu0 0.0
    %2168 = vmatpush1.msra.mxu0 %v1912
    %2169 = vmatprep.subr.mxu0 0.0
    %2170 = vmatpush1.msra.mxu0 %v1913
    %2171 = vmatprep.subr.mxu0 0.0
    %2172 = vmatpush1.msra.mxu0 %v1914
    %2173 = vmatprep.subr.mxu0 0.0
    %2174 = vmatpush1.msra.mxu0 %v1915
    %2175 = vmatprep.subr.mxu0 0.0
    %2176 = vmatpush1.msra.mxu0 %v1916
    %2177 = vmatprep.subr.mxu0 0.0
    %2178 = vmatpush1.msra.mxu0 %v1917
    %2179 = vmatprep.subr.mxu0 0.0
    %2180 = vmatpush1.msra.mxu0 %v1918
    %2181 = vmatprep.subr.mxu0 0.0
    %2182 = vmatpush1.msra.mxu0 %v1919
    %2183 = vmatprep.subr.mxu0 0.0
    %2184 = vmatpush1.msra.mxu0 %v1920
    %2185 = vmatprep.subr.mxu0 0.0
    %2186 = vmatpush1.msra.mxu0 %v1921
    %2187 = vmatprep.subr.mxu0 0.0
    %2188 = vmatpush1.msra.mxu0 %v1922
    %2189 = vmatprep.subr.mxu0 0.0
    %2190 = vmatpush1.msra.mxu0 %v1923
    %2191 = vmatprep.subr.mxu0 0.0
    %2192 = vmatpush1.msra.mxu0 %v1924
    %2193 = vmatprep.mubr.f32.mxu0 %v1049
    %2194 = vmatmul.mubr.f32.gmra.mrb[0].mxu0 %v1048
    %v2195 = vpop.f32.mrb[0].mxu0
    %v2196 = vadd.f32 %v2126, %v2195
    %v2197 = vpop.f32.mrb[0].mxu0
    %2198 = vdwg.mxu0
    %2199 = vmatprep.subr.mxu0 0.0
    %2200 = vmatpush1.msra.mxu0 %v1925
    %2201 = vmatprep.subr.mxu0 0.0
    %2202 = vmatpush1.msra.mxu0 %v1926
    %2203 = vmatprep.subr.mxu0 0.0
    %2204 = vmatpush1.msra.mxu0 %v1927
    %2205 = vmatprep.subr.mxu0 0.0
    %2206 = vmatpush1.msra.mxu0 %v1928
    %2207 = vmatprep.subr.mxu0 0.0
    %2208 = vmatpush1.msra.mxu0 %v1929
    %2209 = vmatprep.subr.mxu0 0.0
    %2210 = vmatpush1.msra.mxu0 %v1930
    %2211 = vmatprep.subr.mxu0 0.0
    %2212 = vmatpush1.msra.mxu0 %v1931
    %2213 = vmatprep.subr.mxu0 0.0
    %2214 = vmatpush1.msra.mxu0 %v1932
    %2215 = vmatprep.subr.mxu0 0.0
    %2216 = vmatpush1.msra.mxu0 %v1933
    %2217 = vmatprep.subr.mxu0 0.0
    %2218 = vmatpush1.msra.mxu0 %v1934
    %2219 = vmatprep.subr.mxu0 0.0
    %2220 = vmatpush1.msra.mxu0 %v1935
    %2221 = vmatprep.subr.mxu0 0.0
    %2222 = vmatpush1.msra.mxu0 %v1936
    %2223 = vmatprep.subr.mxu0 0.0
    %2224 = vmatpush1.msra.mxu0 %v1937
    %2225 = vmatprep.subr.mxu0 0.0
    %2226 = vmatpush1.msra.mxu0 %v1938
    %2227 = vmatprep.subr.mxu0 0.0
    %2228 = vmatpush1.msra.mxu0 %v1939
    %2229 = vmatprep.subr.mxu0 0.0
    %2230 = vmatpush1.msra.mxu0 %v1940
    %2231 = vmatprep.subr.mxu0 0.0
    %2232 = vmatpush1.msra.mxu0 %v1941
    %2233 = vmatprep.subr.mxu0 0.0
    %2234 = vmatpush1.msra.mxu0 %v1942
    %2235 = vmatprep.subr.mxu0 0.0
    %2236 = vmatpush1.msra.mxu0 %v1943
    %2237 = vmatprep.subr.mxu0 0.0
    %2238 = vmatpush1.msra.mxu0 %v1944
    %2239 = vmatprep.subr.mxu0 0.0
    %2240 = vmatpush1.msra.mxu0 %v1945
    %2241 = vmatprep.subr.mxu0 0.0
    %2242 = vmatpush1.msra.mxu0 %v1946
    %2243 = vmatprep.subr.mxu0 0.0
    %2244 = vmatpush1.msra.mxu0 %v1947
    %2245 = vmatprep.subr.mxu0 0.0
    %2246 = vmatpush1.msra.mxu0 %v1948
    %2247 = vmatprep.subr.mxu0 0.0
    %2248 = vmatpush1.msra.mxu0 %v1949
    %2249 = vmatprep.subr.mxu0 0.0
    %2250 = vmatpush1.msra.mxu0 %v1950
    %2251 = vmatprep.subr.mxu0 0.0
    %2252 = vmatpush1.msra.mxu0 %v1951
    %2253 = vmatprep.subr.mxu0 0.0
    %2254 = vmatpush1.msra.mxu0 %v1952
    %2255 = vmatprep.subr.mxu0 0.0
    %2256 = vmatpush1.msra.mxu0 %v1953
    %2257 = vmatprep.subr.mxu0 0.0
    %2258 = vmatpush1.msra.mxu0 %v1954
    %2259 = vmatprep.subr.mxu0 0.0
    %2260 = vmatpush1.msra.mxu0 %v1955
    %2261 = vmatprep.subr.mxu0 0.0
    %2262 = vmatpush1.msra.mxu0 %v1956
    %2263 = vmatprep.mubr.f32.mxu0 %v1057
    %2264 = vmatmul.mubr.f32.gmra.mrb[0].mxu0 %v1056
    %v2265 = vpop.f32.mrb[0].mxu0
    %v2266 = vadd.f32 %v2196, %v2265
    %v2267 = vpop.f32.mrb[0].mxu0
    %2268 = vdwg.mxu0
    %2269 = vmatprep.subr.mxu0 0.0
    %2270 = vmatpush1.msra.mxu0 %v1957
    %2271 = vmatprep.subr.mxu0 0.0
    %2272 = vmatpush1.msra.mxu0 %v1958
    %2273 = vmatprep.subr.mxu0 0.0
    %2274 = vmatpush1.msra.mxu0 %v1959
    %2275 = vmatprep.subr.mxu0 0.0
    %2276 = vmatpush1.msra.mxu0 %v1960
    %2277 = vmatprep.subr.mxu0 0.0
    %2278 = vmatpush1.msra.mxu0 %v1961
    %2279 = vmatprep.subr.mxu0 0.0
    %2280 = vmatpush1.msra.mxu0 %v1962
    %2281 = vmatprep.subr.mxu0 0.0
    %2282 = vmatpush1.msra.mxu0 %v1963
    %2283 = vmatprep.subr.mxu0 0.0
    %2284 = vmatpush1.msra.mxu0 %v1964
    %2285 = vmatprep.subr.mxu0 0.0
    %2286 = vmatpush1.msra.mxu0 %v1965
    %2287 = vmatprep.subr.mxu0 0.0
    %2288 = vmatpush1.msra.mxu0 %v1966
    %2289 = vmatprep.subr.mxu0 0.0
    %2290 = vmatpush1.msra.mxu0 %v1967
    %2291 = vmatprep.subr.mxu0 0.0
    %2292 = vmatpush1.msra.mxu0 %v1968
    %2293 = vmatprep.subr.mxu0 0.0
    %2294 = vmatpush1.msra.mxu0 %v1969
    %2295 = vmatprep.subr.mxu0 0.0
    %2296 = vmatpush1.msra.mxu0 %v1970
    %2297 = vmatprep.subr.mxu0 0.0
    %2298 = vmatpush1.msra.mxu0 %v1971
    %2299 = vmatprep.subr.mxu0 0.0
    %2300 = vmatpush1.msra.mxu0 %v1972
    %2301 = vmatprep.subr.mxu0 0.0
    %2302 = vmatpush1.msra.mxu0 %v1973
    %2303 = vmatprep.subr.mxu0 0.0
    %2304 = vmatpush1.msra.mxu0 %v1974
    %2305 = vmatprep.subr.mxu0 0.0
    %2306 = vmatpush1.msra.mxu0 %v1975
    %2307 = vmatprep.subr.mxu0 0.0
    %2308 = vmatpush1.msra.mxu0 %v1976
    %2309 = vmatprep.subr.mxu0 0.0
    %2310 = vmatpush1.msra.mxu0 %v1977
    %2311 = vmatprep.subr.mxu0 0.0
    %2312 = vmatpush1.msra.mxu0 %v1978
    %2313 = vmatprep.subr.mxu0 0.0
    %2314 = vmatpush1.msra.mxu0 %v1979
    %2315 = vmatprep.subr.mxu0 0.0
    %2316 = vmatpush1.msra.mxu0 %v1980
    %2317 = vmatprep.subr.mxu0 0.0
    %2318 = vmatpush1.msra.mxu0 %v1981
    %2319 = vmatprep.subr.mxu0 0.0
    %2320 = vmatpush1.msra.mxu0 %v1982
    %2321 = vmatprep.subr.mxu0 0.0
    %2322 = vmatpush1.msra.mxu0 %v1983
    %2323 = vmatprep.subr.mxu0 0.0
    %2324 = vmatpush1.msra.mxu0 %v1984
    %2325 = vmatprep.subr.mxu0 0.0
    %2326 = vmatpush1.msra.mxu0 %v1985
    %2327 = vmatprep.subr.mxu0 0.0
    %2328 = vmatpush1.msra.mxu0 %v1986
    %2329 = vmatprep.subr.mxu0 0.0
    %2330 = vmatpush1.msra.mxu0 %v1987
    %2331 = vmatprep.subr.mxu0 0.0
    %2332 = vmatpush1.msra.mxu0 %v1988
    %2333 = vmatprep.mubr.f32.mxu0 %v1065
    %2334 = vmatmul.mubr.f32.gmra.mrb[0].mxu0 %v1064
    %v2335 = vpop.f32.mrb[0].mxu0
    %v2336 = vadd.f32 %v2266, %v2335
    %v2337 = vpop.f32.mrb[0].mxu0
    %2338 = vdwg.mxu0
    %2339 = vmatprep.subr.mxu0 0.0
    %2340 = vmatpush1.msra.mxu0 %v1669
    %2341 = vmatprep.subr.mxu0 0.0
    %2342 = vmatpush1.msra.mxu0 %v1670
    %2343 = vmatprep.subr.mxu0 0.0
    %2344 = vmatpush1.msra.mxu0 %v1671
    %2345 = vmatprep.subr.mxu0 0.0
    %2346 = vmatpush1.msra.mxu0 %v1672
    %2347 = vmatprep.subr.mxu0 0.0
    %2348 = vmatpush1.msra.mxu0 %v1673
    %2349 = vmatprep.subr.mxu0 0.0
    %2350 = vmatpush1.msra.mxu0 %v1674
    %2351 = vmatprep.subr.mxu0 0.0
    %2352 = vmatpush1.msra.mxu0 %v1675
    %2353 = vmatprep.subr.mxu0 0.0
    %2354 = vmatpush1.msra.mxu0 %v1676
    %2355 = vmatprep.subr.mxu0 0.0
    %2356 = vmatpush1.msra.mxu0 %v1677
    %2357 = vmatprep.subr.mxu0 0.0
    %2358 = vmatpush1.msra.mxu0 %v1678
    %2359 = vmatprep.subr.mxu0 0.0
    %2360 = vmatpush1.msra.mxu0 %v1679
    %2361 = vmatprep.subr.mxu0 0.0
    %2362 = vmatpush1.msra.mxu0 %v1680
    %2363 = vmatprep.subr.mxu0 0.0
    %2364 = vmatpush1.msra.mxu0 %v1681
    %2365 = vmatprep.subr.mxu0 0.0
    %2366 = vmatpush1.msra.mxu0 %v1682
    %2367 = vmatprep.subr.mxu0 0.0
    %2368 = vmatpush1.msra.mxu0 %v1683
    %2369 = vmatprep.subr.mxu0 0.0
    %2370 = vmatpush1.msra.mxu0 %v1684
    %2371 = vmatprep.subr.mxu0 0.0
    %2372 = vmatpush1.msra.mxu0 %v1685
    %2373 = vmatprep.subr.mxu0 0.0
    %2374 = vmatpush1.msra.mxu0 %v1686
    %2375 = vmatprep.subr.mxu0 0.0
    %2376 = vmatpush1.msra.mxu0 %v1687
    %2377 = vmatprep.subr.mxu0 0.0
    %2378 = vmatpush1.msra.mxu0 %v1688
    %2379 = vmatprep.subr.mxu0 0.0
    %2380 = vmatpush1.msra.mxu0 %v1689
    %2381 = vmatprep.subr.mxu0 0.0
    %2382 = vmatpush1.msra.mxu0 %v1690
    %2383 = vmatprep.subr.mxu0 0.0
    %2384 = vmatpush1.msra.mxu0 %v1691
    %2385 = vmatprep.subr.mxu0 0.0
    %2386 = vmatpush1.msra.mxu0 %v1692
    %2387 = vmatprep.subr.mxu0 0.0
    %2388 = vmatpush1.msra.mxu0 %v1693
    %2389 = vmatprep.subr.mxu0 0.0
    %2390 = vmatpush1.msra.mxu0 %v1694
    %2391 = vmatprep.subr.mxu0 0.0
    %2392 = vmatpush1.msra.mxu0 %v1695
    %2393 = vmatprep.subr.mxu0 0.0
    %2394 = vmatpush1.msra.mxu0 %v1696
    %2395 = vmatprep.subr.mxu0 0.0
    %2396 = vmatpush1.msra.mxu0 %v1697
    %2397 = vmatprep.subr.mxu0 0.0
    %2398 = vmatpush1.msra.mxu0 %v1698
    %2399 = vmatprep.subr.mxu0 0.0
    %2400 = vmatpush1.msra.mxu0 %v1699
    %2401 = vmatprep.subr.mxu0 0.0
    %2402 = vmatpush1.msra.mxu0 %v1700
    %2403 = vmatprep.mubr.f32.mxu0 %v768
    %2404 = vmatmul.mubr.f32.gmra.mrb[0].mxu0 %v767
    %v2405 = vpop.f32.mrb[0].mxu0
    %v2406 = vadd.f32 %v2336, %v2405
    %v2407 = vpop.f32.mrb[0].mxu0
    %2408 = vdwg.mxu0
    %2409 = vmatprep.subr.mxu0 0.0
    %2410 = vmatpush1.msra.mxu0 %v1701
    %2411 = vmatprep.subr.mxu0 0.0
    %2412 = vmatpush1.msra.mxu0 %v1702
    %2413 = vmatprep.subr.mxu0 0.0
    %2414 = vmatpush1.msra.mxu0 %v1703
    %2415 = vmatprep.subr.mxu0 0.0
    %2416 = vmatpush1.msra.mxu0 %v1704
    %2417 = vmatprep.subr.mxu0 0.0
    %2418 = vmatpush1.msra.mxu0 %v1705
    %2419 = vmatprep.subr.mxu0 0.0
    %2420 = vmatpush1.msra.mxu0 %v1706
    %2421 = vmatprep.subr.mxu0 0.0
    %2422 = vmatpush1.msra.mxu0 %v1707
    %2423 = vmatprep.subr.mxu0 0.0
    %2424 = vmatpush1.msra.mxu0 %v1708
    %2425 = vmatprep.subr.mxu0 0.0
    %2426 = vmatpush1.msra.mxu0 %v1709
    %2427 = vmatprep.subr.mxu0 0.0
    %2428 = vmatpush1.msra.mxu0 %v1710
    %2429 = vmatprep.subr.mxu0 0.0
    %2430 = vmatpush1.msra.mxu0 %v1711
    %2431 = vmatprep.subr.mxu0 0.0
    %2432 = vmatpush1.msra.mxu0 %v1712
    %2433 = vmatprep.subr.mxu0 0.0
    %2434 = vmatpush1.msra.mxu0 %v1713
    %2435 = vmatprep.subr.mxu0 0.0
    %2436 = vmatpush1.msra.mxu0 %v1714
    %2437 = vmatprep.subr.mxu0 0.0
    %2438 = vmatpush1.msra.mxu0 %v1715
    %2439 = vmatprep.subr.mxu0 0.0
    %2440 = vmatpush1.msra.mxu0 %v1716
    %2441 = vmatprep.subr.mxu0 0.0
    %2442 = vmatpush1.msra.mxu0 %v1717
    %2443 = vmatprep.subr.mxu0 0.0
    %2444 = vmatpush1.msra.mxu0 %v1718
    %2445 = vmatprep.subr.mxu0 0.0
    %2446 = vmatpush1.msra.mxu0 %v1719
    %2447 = vmatprep.subr.mxu0 0.0
    %2448 = vmatpush1.msra.mxu0 %v1720
    %2449 = vmatprep.subr.mxu0 0.0
    %2450 = vmatpush1.msra.mxu0 %v1721
    %2451 = vmatprep.subr.mxu0 0.0
    %2452 = vmatpush1.msra.mxu0 %v1722
    %2453 = vmatprep.subr.mxu0 0.0
    %2454 = vmatpush1.msra.mxu0 %v1723
    %2455 = vmatprep.subr.mxu0 0.0
    %2456 = vmatpush1.msra.mxu0 %v1724
    %2457 = vmatprep.subr.mxu0 0.0
    %2458 = vmatpush1.msra.mxu0 %v1725
    %2459 = vmatprep.subr.mxu0 0.0
    %2460 = vmatpush1.msra.mxu0 %v1726
    %2461 = vmatprep.subr.mxu0 0.0
    %2462 = vmatpush1.msra.mxu0 %v1727
    %2463 = vmatprep.subr.mxu0 0.0
    %2464 = vmatpush1.msra.mxu0 %v1728
    %2465 = vmatprep.subr.mxu0 0.0
    %2466 = vmatpush1.msra.mxu0 %v1729
    %2467 = vmatprep.subr.mxu0 0.0
    %2468 = vmatpush1.msra.mxu0 %v1730
    %2469 = vmatprep.subr.mxu0 0.0
    %2470 = vmatpush1.msra.mxu0 %v1731
    %2471 = vmatprep.subr.mxu0 0.0
    %2472 = vmatpush1.msra.mxu0 %v1732
    %2473 = vmatprep.mubr.f32.mxu0 %v776
    %2474 = vmatmul.mubr.f32.gmra.mrb[0].mxu0 %v775
    %v2475 = vpop.f32.mrb[0].mxu0
    %v2476 = vadd.f32 %v2406, %v2475
    %v2477 = vpop.f32.mrb[0].mxu0
    %2478 = vdwg.mxu0
    %2479 = vmatprep.subr.mxu0 0.0
    %2480 = vmatpush1.msra.mxu0 %v1733
    %2481 = vmatprep.subr.mxu0 0.0
    %2482 = vmatpush1.msra.mxu0 %v1734
    %2483 = vmatprep.subr.mxu0 0.0
    %2484 = vmatpush1.msra.mxu0 %v1735
    %2485 = vmatprep.subr.mxu0 0.0
    %2486 = vmatpush1.msra.mxu0 %v1736
    %2487 = vmatprep.subr.mxu0 0.0
    %2488 = vmatpush1.msra.mxu0 %v1737
    %2489 = vmatprep.subr.mxu0 0.0
    %2490 = vmatpush1.msra.mxu0 %v1738
    %2491 = vmatprep.subr.mxu0 0.0
    %2492 = vmatpush1.msra.mxu0 %v1739
    %2493 = vmatprep.subr.mxu0 0.0
    %2494 = vmatpush1.msra.mxu0 %v1740
    %2495 = vmatprep.subr.mxu0 0.0
    %2496 = vmatpush1.msra.mxu0 %v1741
    %2497 = vmatprep.subr.mxu0 0.0
    %2498 = vmatpush1.msra.mxu0 %v1742
    %2499 = vmatprep.subr.mxu0 0.0
    %2500 = vmatpush1.msra.mxu0 %v1743
    %2501 = vmatprep.subr.mxu0 0.0
    %2502 = vmatpush1.msra.mxu0 %v1744
    %2503 = vmatprep.subr.mxu0 0.0
    %2504 = vmatpush1.msra.mxu0 %v1745
    %2505 = vmatprep.subr.mxu0 0.0
    %2506 = vmatpush1.msra.mxu0 %v1746
    %2507 = vmatprep.subr.mxu0 0.0
    %2508 = vmatpush1.msra.mxu0 %v1747
    %2509 = vmatprep.subr.mxu0 0.0
    %2510 = vmatpush1.msra.mxu0 %v1748
    %2511 = vmatprep.subr.mxu0 0.0
    %2512 = vmatpush1.msra.mxu0 %v1749
    %2513 = vmatprep.subr.mxu0 0.0
    %2514 = vmatpush1.msra.mxu0 %v1750
    %2515 = vmatprep.subr.mxu0 0.0
    %2516 = vmatpush1.msra.mxu0 %v1751
    %2517 = vmatprep.subr.mxu0 0.0
    %2518 = vmatpush1.msra.mxu0 %v1752
    %2519 = vmatprep.subr.mxu0 0.0
    %2520 = vmatpush1.msra.mxu0 %v1753
    %2521 = vmatprep.subr.mxu0 0.0
    %2522 = vmatpush1.msra.mxu0 %v1754
    %2523 = vmatprep.subr.mxu0 0.0
    %2524 = vmatpush1.msra.mxu0 %v1755
    %2525 = vmatprep.subr.mxu0 0.0
    %2526 = vmatpush1.msra.mxu0 %v1756
    %2527 = vmatprep.subr.mxu0 0.0
    %2528 = vmatpush1.msra.mxu0 %v1757
    %2529 = vmatprep.subr.mxu0 0.0
    %2530 = vmatpush1.msra.mxu0 %v1758
    %2531 = vmatprep.subr.mxu0 0.0
    %2532 = vmatpush1.msra.mxu0 %v1759
    %2533 = vmatprep.subr.mxu0 0.0
    %2534 = vmatpush1.msra.mxu0 %v1760
    %2535 = vmatprep.subr.mxu0 0.0
    %2536 = vmatpush1.msra.mxu0 %v1761
    %2537 = vmatprep.subr.mxu0 0.0
    %2538 = vmatpush1.msra.mxu0 %v1762
    %2539 = vmatprep.subr.mxu0 0.0
    %2540 = vmatpush1.msra.mxu0 %v1763
    %2541 = vmatprep.subr.mxu0 0.0
    %2542 = vmatpush1.msra.mxu0 %v1764
    %2543 = vmatprep.mubr.f32.mxu0 %v784
    %2544 = vmatmul.mubr.f32.gmra.mrb[0].mxu0 %v783
    %v2545 = vpop.f32.mrb[0].mxu0
    %v2546 = vadd.f32 %v2476, %v2545
    %v2547 = vpop.f32.mrb[0].mxu0
    %2548 = vdwg.mxu0
    %2549 = vmatprep.subr.mxu0 0.0
    %2550 = vmatpush1.msra.mxu0 %v1765
    %2551 = vmatprep.subr.mxu0 0.0
    %2552 = vmatpush1.msra.mxu0 %v1766
    %2553 = vmatprep.subr.mxu0 0.0
    %2554 = vmatpush1.msra.mxu0 %v1767
    %2555 = vmatprep.subr.mxu0 0.0
    %2556 = vmatpush1.msra.mxu0 %v1768
    %2557 = vmatprep.subr.mxu0 0.0
    %2558 = vmatpush1.msra.mxu0 %v1769
    %2559 = vmatprep.subr.mxu0 0.0
    %2560 = vmatpush1.msra.mxu0 %v1770
    %2561 = vmatprep.subr.mxu0 0.0
    %2562 = vmatpush1.msra.mxu0 %v1771
    %2563 = vmatprep.subr.mxu0 0.0
    %2564 = vmatpush1.msra.mxu0 %v1772
    %2565 = vmatprep.subr.mxu0 0.0
    %2566 = vmatpush1.msra.mxu0 %v1773
    %2567 = vmatprep.subr.mxu0 0.0
    %2568 = vmatpush1.msra.mxu0 %v1774
    %2569 = vmatprep.subr.mxu0 0.0
    %2570 = vmatpush1.msra.mxu0 %v1775
    %2571 = vmatprep.subr.mxu0 0.0
    %2572 = vmatpush1.msra.mxu0 %v1776
    %2573 = vmatprep.subr.mxu0 0.0
    %2574 = vmatpush1.msra.mxu0 %v1777
    %2575 = vmatprep.subr.mxu0 0.0
    %2576 = vmatpush1.msra.mxu0 %v1778
    %2577 = vmatprep.subr.mxu0 0.0
    %2578 = vmatpush1.msra.mxu0 %v1779
    %2579 = vmatprep.subr.mxu0 0.0
    %2580 = vmatpush1.msra.mxu0 %v1780
    %2581 = vmatprep.subr.mxu0 0.0
    %2582 = vmatpush1.msra.mxu0 %v1781
    %2583 = vmatprep.subr.mxu0 0.0
    %2584 = vmatpush1.msra.mxu0 %v1782
    %2585 = vmatprep.subr.mxu0 0.0
    %2586 = vmatpush1.msra.mxu0 %v1783
    %2587 = vmatprep.subr.mxu0 0.0
    %2588 = vmatpush1.msra.mxu0 %v1784
    %2589 = vmatprep.subr.mxu0 0.0
    %2590 = vmatpush1.msra.mxu0 %v1785
    %2591 = vmatprep.subr.mxu0 0.0
    %2592 = vmatpush1.msra.mxu0 %v1786
    %2593 = vmatprep.subr.mxu0 0.0
    %2594 = vmatpush1.msra.mxu0 %v1787
    %2595 = vmatprep.subr.mxu0 0.0
    %2596 = vmatpush1.msra.mxu0 %v1788
    %2597 = vmatprep.subr.mxu0 0.0
    %2598 = vmatpush1.msra.mxu0 %v1789
    %2599 = vmatprep.subr.mxu0 0.0
    %2600 = vmatpush1.msra.mxu0 %v1790
    %2601 = vmatprep.subr.mxu0 0.0
    %2602 = vmatpush1.msra.mxu0 %v1791
    %2603 = vmatprep.subr.mxu0 0.0
    %2604 = vmatpush1.msra.mxu0 %v1792
    %2605 = vmatprep.subr.mxu0 0.0
    %2606 = vmatpush1.msra.mxu0 %v1793
    %2607 = vmatprep.subr.mxu0 0.0
    %2608 = vmatpush1.msra.mxu0 %v1794
    %2609 = vmatprep.subr.mxu0 0.0
    %2610 = vmatpush1.msra.mxu0 %v1795
    %2611 = vmatprep.subr.mxu0 0.0
    %2612 = vmatpush1.msra.mxu0 %v1796
    %2613 = vmatprep.mubr.f32.mxu0 %v792
    %2614 = vmatmul.mubr.f32.gmra.mrb[0].mxu0 %v791
    %v2615 = vpop.f32.mrb[0].mxu0
    %v2616 = vadd.f32 %v2546, %v2615
    %v2617 = vpop.f32.mrb[0].mxu0
    %2618 = vdwg.mxu0
    %2619 = vmatprep.subr.mxu0 0.0
    %2620 = vmatpush1.msra.mxu0 %v1797
    %2621 = vmatprep.subr.mxu0 0.0
    %2622 = vmatpush1.msra.mxu0 %v1798
    %2623 = vmatprep.subr.mxu0 0.0
    %2624 = vmatpush1.msra.mxu0 %v1799
    %2625 = vmatprep.subr.mxu0 0.0
    %2626 = vmatpush1.msra.mxu0 %v1800
    %2627 = vmatprep.subr.mxu0 0.0
    %2628 = vmatpush1.msra.mxu0 %v1801
    %2629 = vmatprep.subr.mxu0 0.0
    %2630 = vmatpush1.msra.mxu0 %v1802
    %2631 = vmatprep.subr.mxu0 0.0
    %2632 = vmatpush1.msra.mxu0 %v1803
    %2633 = vmatprep.subr.mxu0 0.0
    %2634 = vmatpush1.msra.mxu0 %v1804
    %2635 = vmatprep.subr.mxu0 0.0
    %2636 = vmatpush1.msra.mxu0 %v1805
    %2637 = vmatprep.subr.mxu0 0.0
    %2638 = vmatpush1.msra.mxu0 %v1806
    %2639 = vmatprep.subr.mxu0 0.0
    %2640 = vmatpush1.msra.mxu0 %v1807
    %2641 = vmatprep.subr.mxu0 0.0
    %2642 = vmatpush1.msra.mxu0 %v1808
    %2643 = vmatprep.subr.mxu0 0.0
    %2644 = vmatpush1.msra.mxu0 %v1809
    %2645 = vmatprep.subr.mxu0 0.0
    %2646 = vmatpush1.msra.mxu0 %v1810
    %2647 = vmatprep.subr.mxu0 0.0
    %2648 = vmatpush1.msra.mxu0 %v1811
    %2649 = vmatprep.subr.mxu0 0.0
    %2650 = vmatpush1.msra.mxu0 %v1812
    %2651 = vmatprep.subr.mxu0 0.0
    %2652 = vmatpush1.msra.mxu0 %v1813
    %2653 = vmatprep.subr.mxu0 0.0
    %2654 = vmatpush1.msra.mxu0 %v1814
    %2655 = vmatprep.subr.mxu0 0.0
    %2656 = vmatpush1.msra.mxu0 %v1815
    %2657 = vmatprep.subr.mxu0 0.0
    %2658 = vmatpush1.msra.mxu0 %v1816
    %2659 = vmatprep.subr.mxu0 0.0
    %2660 = vmatpush1.msra.mxu0 %v1817
    %2661 = vmatprep.subr.mxu0 0.0
    %2662 = vmatpush1.msra.mxu0 %v1818
    %2663 = vmatprep.subr.mxu0 0.0
    %2664 = vmatpush1.msra.mxu0 %v1819
    %2665 = vmatprep.subr.mxu0 0.0
    %2666 = vmatpush1.msra.mxu0 %v1820
    %2667 = vmatprep.subr.mxu0 0.0
    %2668 = vmatpush1.msra.mxu0 %v1821
    %2669 = vmatprep.subr.mxu0 0.0
    %2670 = vmatpush1.msra.mxu0 %v1822
    %2671 = vmatprep.subr.mxu0 0.0
    %2672 = vmatpush1.msra.mxu0 %v1823
    %2673 = vmatprep.subr.mxu0 0.0
    %2674 = vmatpush1.msra.mxu0 %v1824
    %2675 = vmatprep.subr.mxu0 0.0
    %2676 = vmatpush1.msra.mxu0 %v1825
    %2677 = vmatprep.subr.mxu0 0.0
    %2678 = vmatpush1.msra.mxu0 %v1826
    %2679 = vmatprep.subr.mxu0 0.0
    %2680 = vmatpush1.msra.mxu0 %v1827
    %2681 = vmatprep.subr.mxu0 0.0
    %2682 = vmatpush1.msra.mxu0 %v1828
    %2683 = vmatprep.mubr.f32.mxu0 %v800
    %2684 = vmatmul.mubr.f32.gmra.mrb[0].mxu0 %v799
    %v2685 = vpop.f32.mrb[0].mxu0
    %v2686 = vadd.f32 %v2616, %v2685
    %v2687 = vpop.f32.mrb[0].mxu0
    %2688 = vdwg.mxu0
    %v2689 = vld [vmem:[#allocation11] sm:$0xff]
    %v2690 = vld [vmem:[#allocation11 + $0x8] sm:$0xff]
    %v2691 = vld [vmem:[#allocation11 + $0x10] sm:$0xff]
    %v2692 = vld [vmem:[#allocation11 + $0x18] sm:$0xff]
    %v2693 = vld [vmem:[#allocation11 + $0x20] sm:$0xff]
    %v2694 = vld [vmem:[#allocation11 + $0x28] sm:$0xff]
    %v2695 = vld [vmem:[#allocation11 + $0x30] sm:$0xff]
    %v2696 = vld [vmem:[#allocation11 + $0x38] sm:$0xff]
    %v2697 = vld [vmem:[#allocation11 + $0x40] sm:$0xff]
    %v2698 = vld [vmem:[#allocation11 + $0x48] sm:$0xff]
    %v2699 = vld [vmem:[#allocation11 + $0x50] sm:$0xff]
    %v2700 = vld [vmem:[#allocation11 + $0x58] sm:$0xff]
    %v2701 = vld [vmem:[#allocation11 + $0x60] sm:$0xff]
    %v2702 = vld [vmem:[#allocation11 + $0x68] sm:$0xff]
    %v2703 = vld [vmem:[#allocation11 + $0x70] sm:$0xff]
    %v2704 = vld [vmem:[#allocation11 + $0x78] sm:$0xff]
    %v2705 = vld [vmem:[#allocation11 + $0x80] sm:$0xff]
    %v2706 = vld [vmem:[#allocation11 + $0x88] sm:$0xff]
    %v2707 = vld [vmem:[#allocation11 + $0x90] sm:$0xff]
    %v2708 = vld [vmem:[#allocation11 + $0x98] sm:$0xff]
    %v2709 = vld [vmem:[#allocation11 + $0xa0] sm:$0xff]
    %v2710 = vld [vmem:[#allocation11 + $0xa8] sm:$0xff]
    %v2711 = vld [vmem:[#allocation11 + $0xb0] sm:$0xff]
    %v2712 = vld [vmem:[#allocation11 + $0xb8] sm:$0xff]
    %v2713 = vld [vmem:[#allocation11 + $0xc0] sm:$0xff]
    %v2714 = vld [vmem:[#allocation11 + $0xc8] sm:$0xff]
    %v2715 = vld [vmem:[#allocation11 + $0xd0] sm:$0xff]
    %v2716 = vld [vmem:[#allocation11 + $0xd8] sm:$0xff]
    %v2717 = vld [vmem:[#allocation11 + $0xe0] sm:$0xff]
    %v2718 = vld [vmem:[#allocation11 + $0xe8] sm:$0xff]
    %v2719 = vld [vmem:[#allocation11 + $0xf0] sm:$0xff]
    %v2720 = vld [vmem:[#allocation11 + $0xf8] sm:$0xff]
    %v2721 = vld [vmem:[#allocation11 + $0x100] sm:$0xff]
    %v2722 = vld [vmem:[#allocation11 + $0x108] sm:$0xff]
    %v2723 = vld [vmem:[#allocation11 + $0x110] sm:$0xff]
    %v2724 = vld [vmem:[#allocation11 + $0x118] sm:$0xff]
    %v2725 = vld [vmem:[#allocation11 + $0x120] sm:$0xff]
    %v2726 = vld [vmem:[#allocation11 + $0x128] sm:$0xff]
    %v2727 = vld [vmem:[#allocation11 + $0x130] sm:$0xff]
    %v2728 = vld [vmem:[#allocation11 + $0x138] sm:$0xff]
    %v2729 = vld [vmem:[#allocation11 + $0x140] sm:$0xff]
    %v2730 = vld [vmem:[#allocation11 + $0x148] sm:$0xff]
    %v2731 = vld [vmem:[#allocation11 + $0x150] sm:$0xff]
    %v2732 = vld [vmem:[#allocation11 + $0x158] sm:$0xff]
    %v2733 = vld [vmem:[#allocation11 + $0x160] sm:$0xff]
    %v2734 = vld [vmem:[#allocation11 + $0x168] sm:$0xff]
    %v2735 = vld [vmem:[#allocation11 + $0x170] sm:$0xff]
    %v2736 = vld [vmem:[#allocation11 + $0x178] sm:$0xff]
    %v2737 = vld [vmem:[#allocation11 + $0x180] sm:$0xff]
    %v2738 = vld [vmem:[#allocation11 + $0x188] sm:$0xff]
    %v2739 = vld [vmem:[#allocation11 + $0x190] sm:$0xff]
    %v2740 = vld [vmem:[#allocation11 + $0x198] sm:$0xff]
    %v2741 = vld [vmem:[#allocation11 + $0x1a0] sm:$0xff]
    %v2742 = vld [vmem:[#allocation11 + $0x1a8] sm:$0xff]
    %v2743 = vld [vmem:[#allocation11 + $0x1b0] sm:$0xff]
    %v2744 = vld [vmem:[#allocation11 + $0x1b8] sm:$0xff]
    %v2745 = vld [vmem:[#allocation11 + $0x1c0] sm:$0xff]
    %v2746 = vld [vmem:[#allocation11 + $0x1c8] sm:$0xff]
    %v2747 = vld [vmem:[#allocation11 + $0x1d0] sm:$0xff]
    %v2748 = vld [vmem:[#allocation11 + $0x1d8] sm:$0xff]
    %v2749 = vld [vmem:[#allocation11 + $0x1e0] sm:$0xff]
    %v2750 = vld [vmem:[#allocation11 + $0x1e8] sm:$0xff]
    %v2751 = vld [vmem:[#allocation11 + $0x1f0] sm:$0xff]
    %v2752 = vld [vmem:[#allocation11 + $0x1f8] sm:$0xff]
    %v2753 = vld [vmem:[#allocation11 + $0x200] sm:$0xff]
    %v2754 = vld [vmem:[#allocation11 + $0x208] sm:$0xff]
    %v2755 = vld [vmem:[#allocation11 + $0x210] sm:$0xff]
    %v2756 = vld [vmem:[#allocation11 + $0x218] sm:$0xff]
    %v2757 = vld [vmem:[#allocation11 + $0x220] sm:$0xff]
    %v2758 = vld [vmem:[#allocation11 + $0x228] sm:$0xff]
    %v2759 = vld [vmem:[#allocation11 + $0x230] sm:$0xff]
    %v2760 = vld [vmem:[#allocation11 + $0x238] sm:$0xff]
    %v2761 = vld [vmem:[#allocation11 + $0x240] sm:$0xff]
    %v2762 = vld [vmem:[#allocation11 + $0x248] sm:$0xff]
    %v2763 = vld [vmem:[#allocation11 + $0x250] sm:$0xff]
    %v2764 = vld [vmem:[#allocation11 + $0x258] sm:$0xff]
    %v2765 = vld [vmem:[#allocation11 + $0x260] sm:$0xff]
    %v2766 = vld [vmem:[#allocation11 + $0x268] sm:$0xff]
    %v2767 = vld [vmem:[#allocation11 + $0x270] sm:$0xff]
    %v2768 = vld [vmem:[#allocation11 + $0x278] sm:$0xff]
    %v2769 = vld [vmem:[#allocation11 + $0x280] sm:$0xff]
    %v2770 = vld [vmem:[#allocation11 + $0x288] sm:$0xff]
    %v2771 = vld [vmem:[#allocation11 + $0x290] sm:$0xff]
    %v2772 = vld [vmem:[#allocation11 + $0x298] sm:$0xff]
    %v2773 = vld [vmem:[#allocation11 + $0x2a0] sm:$0xff]
    %v2774 = vld [vmem:[#allocation11 + $0x2a8] sm:$0xff]
    %v2775 = vld [vmem:[#allocation11 + $0x2b0] sm:$0xff]
    %v2776 = vld [vmem:[#allocation11 + $0x2b8] sm:$0xff]
    %v2777 = vld [vmem:[#allocation11 + $0x2c0] sm:$0xff]
    %v2778 = vld [vmem:[#allocation11 + $0x2c8] sm:$0xff]
    %v2779 = vld [vmem:[#allocation11 + $0x2d0] sm:$0xff]
    %v2780 = vld [vmem:[#allocation11 + $0x2d8] sm:$0xff]
    %v2781 = vld [vmem:[#allocation11 + $0x2e0] sm:$0xff]
    %v2782 = vld [vmem:[#allocation11 + $0x2e8] sm:$0xff]
    %v2783 = vld [vmem:[#allocation11 + $0x2f0] sm:$0xff]
    %v2784 = vld [vmem:[#allocation11 + $0x2f8] sm:$0xff]
    %v2785 = vld [vmem:[#allocation11 + $0x300] sm:$0xff]
    %v2786 = vld [vmem:[#allocation11 + $0x308] sm:$0xff]
    %v2787 = vld [vmem:[#allocation11 + $0x310] sm:$0xff]
    %v2788 = vld [vmem:[#allocation11 + $0x318] sm:$0xff]
    %v2789 = vld [vmem:[#allocation11 + $0x320] sm:$0xff]
    %v2790 = vld [vmem:[#allocation11 + $0x328] sm:$0xff]
    %v2791 = vld [vmem:[#allocation11 + $0x330] sm:$0xff]
    %v2792 = vld [vmem:[#allocation11 + $0x338] sm:$0xff]
    %v2793 = vld [vmem:[#allocation11 + $0x340] sm:$0xff]
    %v2794 = vld [vmem:[#allocation11 + $0x348] sm:$0xff]
    %v2795 = vld [vmem:[#allocation11 + $0x350] sm:$0xff]
    %v2796 = vld [vmem:[#allocation11 + $0x358] sm:$0xff]
    %v2797 = vld [vmem:[#allocation11 + $0x360] sm:$0xff]
    %v2798 = vld [vmem:[#allocation11 + $0x368] sm:$0xff]
    %v2799 = vld [vmem:[#allocation11 + $0x370] sm:$0xff]
    %v2800 = vld [vmem:[#allocation11 + $0x378] sm:$0xff]
    %v2801 = vld [vmem:[#allocation11 + $0x380] sm:$0xff]
    %v2802 = vld [vmem:[#allocation11 + $0x388] sm:$0xff]
    %v2803 = vld [vmem:[#allocation11 + $0x390] sm:$0xff]
    %v2804 = vld [vmem:[#allocation11 + $0x398] sm:$0xff]
    %v2805 = vld [vmem:[#allocation11 + $0x3a0] sm:$0xff]
    %v2806 = vld [vmem:[#allocation11 + $0x3a8] sm:$0xff]
    %v2807 = vld [vmem:[#allocation11 + $0x3b0] sm:$0xff]
    %v2808 = vld [vmem:[#allocation11 + $0x3b8] sm:$0xff]
    %v2809 = vld [vmem:[#allocation11 + $0x3c0] sm:$0xff]
    %v2810 = vld [vmem:[#allocation11 + $0x3c8] sm:$0xff]
    %v2811 = vld [vmem:[#allocation11 + $0x3d0] sm:$0xff]
    %v2812 = vld [vmem:[#allocation11 + $0x3d8] sm:$0xff]
    %v2813 = vld [vmem:[#allocation11 + $0x3e0] sm:$0xff]
    %v2814 = vld [vmem:[#allocation11 + $0x3e8] sm:$0xff]
    %v2815 = vld [vmem:[#allocation11 + $0x3f0] sm:$0xff]
    %v2816 = vld [vmem:[#allocation11 + $0x3f8] sm:$0xff]
    %v2817 = vld [vmem:[#allocation11 + $0x400] sm:$0xff]
    %v2818 = vld [vmem:[#allocation11 + $0x408] sm:$0xff]
    %v2819 = vld [vmem:[#allocation11 + $0x410] sm:$0xff]
    %v2820 = vld [vmem:[#allocation11 + $0x418] sm:$0xff]
    %v2821 = vld [vmem:[#allocation11 + $0x420] sm:$0xff]
    %v2822 = vld [vmem:[#allocation11 + $0x428] sm:$0xff]
    %v2823 = vld [vmem:[#allocation11 + $0x430] sm:$0xff]
    %v2824 = vld [vmem:[#allocation11 + $0x438] sm:$0xff]
    %v2825 = vld [vmem:[#allocation11 + $0x440] sm:$0xff]
    %v2826 = vld [vmem:[#allocation11 + $0x448] sm:$0xff]
    %v2827 = vld [vmem:[#allocation11 + $0x450] sm:$0xff]
    %v2828 = vld [vmem:[#allocation11 + $0x458] sm:$0xff]
    %v2829 = vld [vmem:[#allocation11 + $0x460] sm:$0xff]
    %v2830 = vld [vmem:[#allocation11 + $0x468] sm:$0xff]
    %v2831 = vld [vmem:[#allocation11 + $0x470] sm:$0xff]
    %v2832 = vld [vmem:[#allocation11 + $0x478] sm:$0xff]
    %v2833 = vld [vmem:[#allocation11 + $0x480] sm:$0xff]
    %v2834 = vld [vmem:[#allocation11 + $0x488] sm:$0xff]
    %v2835 = vld [vmem:[#allocation11 + $0x490] sm:$0xff]
    %v2836 = vld [vmem:[#allocation11 + $0x498] sm:$0xff]
    %v2837 = vld [vmem:[#allocation11 + $0x4a0] sm:$0xff]
    %v2838 = vld [vmem:[#allocation11 + $0x4a8] sm:$0xff]
    %v2839 = vld [vmem:[#allocation11 + $0x4b0] sm:$0xff]
    %v2840 = vld [vmem:[#allocation11 + $0x4b8] sm:$0xff]
    %v2841 = vld [vmem:[#allocation11 + $0x4c0] sm:$0xff]
    %v2842 = vld [vmem:[#allocation11 + $0x4c8] sm:$0xff]
    %v2843 = vld [vmem:[#allocation11 + $0x4d0] sm:$0xff]
    %v2844 = vld [vmem:[#allocation11 + $0x4d8] sm:$0xff]
    %v2845 = vld [vmem:[#allocation11 + $0x4e0] sm:$0xff]
    %v2846 = vld [vmem:[#allocation11 + $0x4e8] sm:$0xff]
    %v2847 = vld [vmem:[#allocation11 + $0x4f0] sm:$0xff]
    %v2848 = vld [vmem:[#allocation11 + $0x4f8] sm:$0xff]
    %2849 = vmatprep.subr.mxu0 0.0
    %2850 = vmatpush1.msra.mxu0 %v2689
    %2851 = vmatprep.subr.mxu0 0.0
    %2852 = vmatpush1.msra.mxu0 %v2690
    %2853 = vmatprep.subr.mxu0 0.0
    %2854 = vmatpush1.msra.mxu0 %v2691
    %2855 = vmatprep.subr.mxu0 0.0
    %2856 = vmatpush1.msra.mxu0 %v2692
    %2857 = vmatprep.subr.mxu0 0.0
    %2858 = vmatpush1.msra.mxu0 %v2693
    %2859 = vmatprep.subr.mxu0 0.0
    %2860 = vmatpush1.msra.mxu0 %v2694
    %2861 = vmatprep.subr.mxu0 0.0
    %2862 = vmatpush1.msra.mxu0 %v2695
    %2863 = vmatprep.subr.mxu0 0.0
    %2864 = vmatpush1.msra.mxu0 %v2696
    %2865 = vmatprep.subr.mxu0 0.0
    %2866 = vmatpush1.msra.mxu0 %v2697
    %2867 = vmatprep.subr.mxu0 0.0
    %2868 = vmatpush1.msra.mxu0 %v2698
    %2869 = vmatprep.subr.mxu0 0.0
    %2870 = vmatpush1.msra.mxu0 %v2699
    %2871 = vmatprep.subr.mxu0 0.0
    %2872 = vmatpush1.msra.mxu0 %v2700
    %2873 = vmatprep.subr.mxu0 0.0
    %2874 = vmatpush1.msra.mxu0 %v2701
    %2875 = vmatprep.subr.mxu0 0.0
    %2876 = vmatpush1.msra.mxu0 %v2702
    %2877 = vmatprep.subr.mxu0 0.0
    %2878 = vmatpush1.msra.mxu0 %v2703
    %2879 = vmatprep.subr.mxu0 0.0
    %2880 = vmatpush1.msra.mxu0 %v2704
    %2881 = vmatprep.subr.mxu0 0.0
    %2882 = vmatpush1.msra.mxu0 %v2705
    %2883 = vmatprep.subr.mxu0 0.0
    %2884 = vmatpush1.msra.mxu0 %v2706
    %2885 = vmatprep.subr.mxu0 0.0
    %2886 = vmatpush1.msra.mxu0 %v2707
    %2887 = vmatprep.subr.mxu0 0.0
    %2888 = vmatpush1.msra.mxu0 %v2708
    %2889 = vmatprep.subr.mxu0 0.0
    %2890 = vmatpush1.msra.mxu0 %v2709
    %2891 = vmatprep.subr.mxu0 0.0
    %2892 = vmatpush1.msra.mxu0 %v2710
    %2893 = vmatprep.subr.mxu0 0.0
    %2894 = vmatpush1.msra.mxu0 %v2711
    %2895 = vmatprep.subr.mxu0 0.0
    %2896 = vmatpush1.msra.mxu0 %v2712
    %2897 = vmatprep.subr.mxu0 0.0
    %2898 = vmatpush1.msra.mxu0 %v2713
    %2899 = vmatprep.subr.mxu0 0.0
    %2900 = vmatpush1.msra.mxu0 %v2714
    %2901 = vmatprep.subr.mxu0 0.0
    %2902 = vmatpush1.msra.mxu0 %v2715
    %2903 = vmatprep.subr.mxu0 0.0
    %2904 = vmatpush1.msra.mxu0 %v2716
    %2905 = vmatprep.subr.mxu0 0.0
    %2906 = vmatpush1.msra.mxu0 %v2717
    %2907 = vmatprep.subr.mxu0 0.0
    %2908 = vmatpush1.msra.mxu0 %v2718
    %2909 = vmatprep.subr.mxu0 0.0
    %2910 = vmatpush1.msra.mxu0 %v2719
    %2911 = vmatprep.subr.mxu0 0.0
    %2912 = vmatpush1.msra.mxu0 %v2720
    %2913 = vmatprep.mubr.f32.mxu0 %v1265
    %2914 = vmatmul.mubr.f32.gmra.mrb[0].mxu0 %v1264
    %v2915 = vpop.f32.mrb[0].mxu0
    %v2916 = vadd.f32 0.0, %v2915
    %v2917 = vpop.f32.mrb[0].mxu0
    %2918 = vdwg.mxu0
    %2919 = vmatprep.subr.mxu0 0.0
    %2920 = vmatpush1.msra.mxu0 %v2721
    %2921 = vmatprep.subr.mxu0 0.0
    %2922 = vmatpush1.msra.mxu0 %v2722
    %2923 = vmatprep.subr.mxu0 0.0
    %2924 = vmatpush1.msra.mxu0 %v2723
    %2925 = vmatprep.subr.mxu0 0.0
    %2926 = vmatpush1.msra.mxu0 %v2724
    %2927 = vmatprep.subr.mxu0 0.0
    %2928 = vmatpush1.msra.mxu0 %v2725
    %2929 = vmatprep.subr.mxu0 0.0
    %2930 = vmatpush1.msra.mxu0 %v2726
    %2931 = vmatprep.subr.mxu0 0.0
    %2932 = vmatpush1.msra.mxu0 %v2727
    %2933 = vmatprep.subr.mxu0 0.0
    %2934 = vmatpush1.msra.mxu0 %v2728
    %2935 = vmatprep.subr.mxu0 0.0
    %2936 = vmatpush1.msra.mxu0 %v2729
    %2937 = vmatprep.subr.mxu0 0.0
    %2938 = vmatpush1.msra.mxu0 %v2730
    %2939 = vmatprep.subr.mxu0 0.0
    %2940 = vmatpush1.msra.mxu0 %v2731
    %2941 = vmatprep.subr.mxu0 0.0
    %2942 = vmatpush1.msra.mxu0 %v2732
    %2943 = vmatprep.subr.mxu0 0.0
    %2944 = vmatpush1.msra.mxu0 %v2733
    %2945 = vmatprep.subr.mxu0 0.0
    %2946 = vmatpush1.msra.mxu0 %v2734
    %2947 = vmatprep.subr.mxu0 0.0
    %2948 = vmatpush1.msra.mxu0 %v2735
    %2949 = vmatprep.subr.mxu0 0.0
    %2950 = vmatpush1.msra.mxu0 %v2736
    %2951 = vmatprep.subr.mxu0 0.0
    %2952 = vmatpush1.msra.mxu0 %v2737
    %2953 = vmatprep.subr.mxu0 0.0
    %2954 = vmatpush1.msra.mxu0 %v2738
    %2955 = vmatprep.subr.mxu0 0.0
    %2956 = vmatpush1.msra.mxu0 %v2739
    %2957 = vmatprep.subr.mxu0 0.0
    %2958 = vmatpush1.msra.mxu0 %v2740
    %2959 = vmatprep.subr.mxu0 0.0
    %2960 = vmatpush1.msra.mxu0 %v2741
    %2961 = vmatprep.subr.mxu0 0.0
    %2962 = vmatpush1.msra.mxu0 %v2742
    %2963 = vmatprep.subr.mxu0 0.0
    %2964 = vmatpush1.msra.mxu0 %v2743
    %2965 = vmatprep.subr.mxu0 0.0
    %2966 = vmatpush1.msra.mxu0 %v2744
    %2967 = vmatprep.subr.mxu0 0.0
    %2968 = vmatpush1.msra.mxu0 %v2745
    %2969 = vmatprep.subr.mxu0 0.0
    %2970 = vmatpush1.msra.mxu0 %v2746
    %2971 = vmatprep.subr.mxu0 0.0
    %2972 = vmatpush1.msra.mxu0 %v2747
    %2973 = vmatprep.subr.mxu0 0.0
    %2974 = vmatpush1.msra.mxu0 %v2748
    %2975 = vmatprep.subr.mxu0 0.0
    %2976 = vmatpush1.msra.mxu0 %v2749
    %2977 = vmatprep.subr.mxu0 0.0
    %2978 = vmatpush1.msra.mxu0 %v2750
    %2979 = vmatprep.subr.mxu0 0.0
    %2980 = vmatpush1.msra.mxu0 %v2751
    %2981 = vmatprep.subr.mxu0 0.0
    %2982 = vmatpush1.msra.mxu0 %v2752
    %2983 = vmatprep.mubr.f32.mxu0 %v1273
    %2984 = vmatmul.mubr.f32.gmra.mrb[0].mxu0 %v1272
    %v2985 = vpop.f32.mrb[0].mxu0
    %v2986 = vadd.f32 %v2916, %v2985
    %v2987 = vpop.f32.mrb[0].mxu0
    %2988 = vdwg.mxu0
    %2989 = vmatprep.subr.mxu0 0.0
    %2990 = vmatpush1.msra.mxu0 %v2753
    %2991 = vmatprep.subr.mxu0 0.0
    %2992 = vmatpush1.msra.mxu0 %v2754
    %2993 = vmatprep.subr.mxu0 0.0
    %2994 = vmatpush1.msra.mxu0 %v2755
    %2995 = vmatprep.subr.mxu0 0.0
    %2996 = vmatpush1.msra.mxu0 %v2756
    %2997 = vmatprep.subr.mxu0 0.0
    %2998 = vmatpush1.msra.mxu0 %v2757
    %2999 = vmatprep.subr.mxu0 0.0
    %3000 = vmatpush1.msra.mxu0 %v2758
    %3001 = vmatprep.subr.mxu0 0.0
    %3002 = vmatpush1.msra.mxu0 %v2759
    %3003 = vmatprep.subr.mxu0 0.0
    %3004 = vmatpush1.msra.mxu0 %v2760
    %3005 = vmatprep.subr.mxu0 0.0
    %3006 = vmatpush1.msra.mxu0 %v2761
    %3007 = vmatprep.subr.mxu0 0.0
    %3008 = vmatpush1.msra.mxu0 %v2762
    %3009 = vmatprep.subr.mxu0 0.0
    %3010 = vmatpush1.msra.mxu0 %v2763
    %3011 = vmatprep.subr.mxu0 0.0
    %3012 = vmatpush1.msra.mxu0 %v2764
    %3013 = vmatprep.subr.mxu0 0.0
    %3014 = vmatpush1.msra.mxu0 %v2765
    %3015 = vmatprep.subr.mxu0 0.0
    %3016 = vmatpush1.msra.mxu0 %v2766
    %3017 = vmatprep.subr.mxu0 0.0
    %3018 = vmatpush1.msra.mxu0 %v2767
    %3019 = vmatprep.subr.mxu0 0.0
    %3020 = vmatpush1.msra.mxu0 %v2768
    %3021 = vmatprep.subr.mxu0 0.0
    %3022 = vmatpush1.msra.mxu0 %v2769
    %3023 = vmatprep.subr.mxu0 0.0
    %3024 = vmatpush1.msra.mxu0 %v2770
    %3025 = vmatprep.subr.mxu0 0.0
    %3026 = vmatpush1.msra.mxu0 %v2771
    %3027 = vmatprep.subr.mxu0 0.0
    %3028 = vmatpush1.msra.mxu0 %v2772
    %3029 = vmatprep.subr.mxu0 0.0
    %3030 = vmatpush1.msra.mxu0 %v2773
    %3031 = vmatprep.subr.mxu0 0.0
    %3032 = vmatpush1.msra.mxu0 %v2774
    %3033 = vmatprep.subr.mxu0 0.0
    %3034 = vmatpush1.msra.mxu0 %v2775
    %3035 = vmatprep.subr.mxu0 0.0
    %3036 = vmatpush1.msra.mxu0 %v2776
    %3037 = vmatprep.subr.mxu0 0.0
    %3038 = vmatpush1.msra.mxu0 %v2777
    %3039 = vmatprep.subr.mxu0 0.0
    %3040 = vmatpush1.msra.mxu0 %v2778
    %3041 = vmatprep.subr.mxu0 0.0
    %3042 = vmatpush1.msra.mxu0 %v2779
    %3043 = vmatprep.subr.mxu0 0.0
    %3044 = vmatpush1.msra.mxu0 %v2780
    %3045 = vmatprep.subr.mxu0 0.0
    %3046 = vmatpush1.msra.mxu0 %v2781
    %3047 = vmatprep.subr.mxu0 0.0
    %3048 = vmatpush1.msra.mxu0 %v2782
    %3049 = vmatprep.subr.mxu0 0.0
    %3050 = vmatpush1.msra.mxu0 %v2783
    %3051 = vmatprep.subr.mxu0 0.0
    %3052 = vmatpush1.msra.mxu0 %v2784
    %3053 = vmatprep.mubr.f32.mxu0 %v1281
    %3054 = vmatmul.mubr.f32.gmra.mrb[0].mxu0 %v1280
    %v3055 = vpop.f32.mrb[0].mxu0
    %v3056 = vadd.f32 %v2986, %v3055
    %v3057 = vpop.f32.mrb[0].mxu0
    %3058 = vdwg.mxu0
    %3059 = vmatprep.subr.mxu0 0.0
    %3060 = vmatpush1.msra.mxu0 %v2785
    %3061 = vmatprep.subr.mxu0 0.0
    %3062 = vmatpush1.msra.mxu0 %v2786
    %3063 = vmatprep.subr.mxu0 0.0
    %3064 = vmatpush1.msra.mxu0 %v2787
    %3065 = vmatprep.subr.mxu0 0.0
    %3066 = vmatpush1.msra.mxu0 %v2788
    %3067 = vmatprep.subr.mxu0 0.0
    %3068 = vmatpush1.msra.mxu0 %v2789
    %3069 = vmatprep.subr.mxu0 0.0
    %3070 = vmatpush1.msra.mxu0 %v2790
    %3071 = vmatprep.subr.mxu0 0.0
    %3072 = vmatpush1.msra.mxu0 %v2791
    %3073 = vmatprep.subr.mxu0 0.0
    %3074 = vmatpush1.msra.mxu0 %v2792
    %3075 = vmatprep.subr.mxu0 0.0
    %3076 = vmatpush1.msra.mxu0 %v2793
    %3077 = vmatprep.subr.mxu0 0.0
    %3078 = vmatpush1.msra.mxu0 %v2794
    %3079 = vmatprep.subr.mxu0 0.0
    %3080 = vmatpush1.msra.mxu0 %v2795
    %3081 = vmatprep.subr.mxu0 0.0
    %3082 = vmatpush1.msra.mxu0 %v2796
    %3083 = vmatprep.subr.mxu0 0.0
    %3084 = vmatpush1.msra.mxu0 %v2797
    %3085 = vmatprep.subr.mxu0 0.0
    %3086 = vmatpush1.msra.mxu0 %v2798
    %3087 = vmatprep.subr.mxu0 0.0
    %3088 = vmatpush1.msra.mxu0 %v2799
    %3089 = vmatprep.subr.mxu0 0.0
    %3090 = vmatpush1.msra.mxu0 %v2800
    %3091 = vmatprep.subr.mxu0 0.0
    %3092 = vmatpush1.msra.mxu0 %v2801
    %3093 = vmatprep.subr.mxu0 0.0
    %3094 = vmatpush1.msra.mxu0 %v2802
    %3095 = vmatprep.subr.mxu0 0.0
    %3096 = vmatpush1.msra.mxu0 %v2803
    %3097 = vmatprep.subr.mxu0 0.0
    %3098 = vmatpush1.msra.mxu0 %v2804
    %3099 = vmatprep.subr.mxu0 0.0
    %3100 = vmatpush1.msra.mxu0 %v2805
    %3101 = vmatprep.subr.mxu0 0.0
    %3102 = vmatpush1.msra.mxu0 %v2806
    %3103 = vmatprep.subr.mxu0 0.0
    %3104 = vmatpush1.msra.mxu0 %v2807
    %3105 = vmatprep.subr.mxu0 0.0
    %3106 = vmatpush1.msra.mxu0 %v2808
    %3107 = vmatprep.subr.mxu0 0.0
    %3108 = vmatpush1.msra.mxu0 %v2809
    %3109 = vmatprep.subr.mxu0 0.0
    %3110 = vmatpush1.msra.mxu0 %v2810
    %3111 = vmatprep.subr.mxu0 0.0
    %3112 = vmatpush1.msra.mxu0 %v2811
    %3113 = vmatprep.subr.mxu0 0.0
    %3114 = vmatpush1.msra.mxu0 %v2812
    %3115 = vmatprep.subr.mxu0 0.0
    %3116 = vmatpush1.msra.mxu0 %v2813
    %3117 = vmatprep.subr.mxu0 0.0
    %3118 = vmatpush1.msra.mxu0 %v2814
    %3119 = vmatprep.subr.mxu0 0.0
    %3120 = vmatpush1.msra.mxu0 %v2815
    %3121 = vmatprep.subr.mxu0 0.0
    %3122 = vmatpush1.msra.mxu0 %v2816
    %3123 = vmatprep.mubr.f32.mxu0 %v1289
    %3124 = vmatmul.mubr.f32.gmra.mrb[0].mxu0 %v1288
    %v3125 = vpop.f32.mrb[0].mxu0
    %v3126 = vadd.f32 %v3056, %v3125
    %v3127 = vpop.f32.mrb[0].mxu0
    %3128 = vdwg.mxu0
    %3129 = vmatprep.subr.mxu0 0.0
    %3130 = vmatpush1.msra.mxu0 %v2817
    %3131 = vmatprep.subr.mxu0 0.0
    %3132 = vmatpush1.msra.mxu0 %v2818
    %3133 = vmatprep.subr.mxu0 0.0
    %3134 = vmatpush1.msra.mxu0 %v2819
    %3135 = vmatprep.subr.mxu0 0.0
    %3136 = vmatpush1.msra.mxu0 %v2820
    %3137 = vmatprep.subr.mxu0 0.0
    %3138 = vmatpush1.msra.mxu0 %v2821
    %3139 = vmatprep.subr.mxu0 0.0
    %3140 = vmatpush1.msra.mxu0 %v2822
    %3141 = vmatprep.subr.mxu0 0.0
    %3142 = vmatpush1.msra.mxu0 %v2823
    %3143 = vmatprep.subr.mxu0 0.0
    %3144 = vmatpush1.msra.mxu0 %v2824
    %3145 = vmatprep.subr.mxu0 0.0
    %3146 = vmatpush1.msra.mxu0 %v2825
    %3147 = vmatprep.subr.mxu0 0.0
    %3148 = vmatpush1.msra.mxu0 %v2826
    %3149 = vmatprep.subr.mxu0 0.0
    %3150 = vmatpush1.msra.mxu0 %v2827
    %3151 = vmatprep.subr.mxu0 0.0
    %3152 = vmatpush1.msra.mxu0 %v2828
    %3153 = vmatprep.subr.mxu0 0.0
    %3154 = vmatpush1.msra.mxu0 %v2829
    %3155 = vmatprep.subr.mxu0 0.0
    %3156 = vmatpush1.msra.mxu0 %v2830
    %3157 = vmatprep.subr.mxu0 0.0
    %3158 = vmatpush1.msra.mxu0 %v2831
    %3159 = vmatprep.subr.mxu0 0.0
    %3160 = vmatpush1.msra.mxu0 %v2832
    %3161 = vmatprep.subr.mxu0 0.0
    %3162 = vmatpush1.msra.mxu0 %v2833
    %3163 = vmatprep.subr.mxu0 0.0
    %3164 = vmatpush1.msra.mxu0 %v2834
    %3165 = vmatprep.subr.mxu0 0.0
    %3166 = vmatpush1.msra.mxu0 %v2835
    %3167 = vmatprep.subr.mxu0 0.0
    %3168 = vmatpush1.msra.mxu0 %v2836
    %3169 = vmatprep.subr.mxu0 0.0
    %3170 = vmatpush1.msra.mxu0 %v2837
    %3171 = vmatprep.subr.mxu0 0.0
    %3172 = vmatpush1.msra.mxu0 %v2838
    %3173 = vmatprep.subr.mxu0 0.0
    %3174 = vmatpush1.msra.mxu0 %v2839
    %3175 = vmatprep.subr.mxu0 0.0
    %3176 = vmatpush1.msra.mxu0 %v2840
    %3177 = vmatprep.subr.mxu0 0.0
    %3178 = vmatpush1.msra.mxu0 %v2841
    %3179 = vmatprep.subr.mxu0 0.0
    %3180 = vmatpush1.msra.mxu0 %v2842
    %3181 = vmatprep.subr.mxu0 0.0
    %3182 = vmatpush1.msra.mxu0 %v2843
    %3183 = vmatprep.subr.mxu0 0.0
    %3184 = vmatpush1.msra.mxu0 %v2844
    %3185 = vmatprep.subr.mxu0 0.0
    %3186 = vmatpush1.msra.mxu0 %v2845
    %3187 = vmatprep.subr.mxu0 0.0
    %3188 = vmatpush1.msra.mxu0 %v2846
    %3189 = vmatprep.subr.mxu0 0.0
    %3190 = vmatpush1.msra.mxu0 %v2847
    %3191 = vmatprep.subr.mxu0 0.0
    %3192 = vmatpush1.msra.mxu0 %v2848
    %3193 = vmatprep.mubr.f32.mxu0 %v1297
    %3194 = vmatmul.mubr.f32.gmra.mrb[0].mxu0 %v1296
    %v3195 = vpop.f32.mrb[0].mxu0
    %v3196 = vadd.f32 %v3126, %v3195
    %v3197 = vpop.f32.mrb[0].mxu0
    %3198 = vdwg.mxu0
    %v3199 = vadd.f32 %v2686, %v3196
    %v3200 = vld [vmem:[#allocation13] sm:$0xff]
    %v3201 = vld [vmem:[#allocation13 + $0x8] sm:$0xff]
    %v3202 = vld [vmem:[#allocation13 + $0x10] sm:$0xff]
    %v3203 = vld [vmem:[#allocation13 + $0x18] sm:$0xff]
    %v3204 = vld [vmem:[#allocation13 + $0x20] sm:$0xff]
    %v3205 = vld [vmem:[#allocation13 + $0x28] sm:$0xff]
    %v3206 = vld [vmem:[#allocation13 + $0x30] sm:$0xff]
    %v3207 = vld [vmem:[#allocation13 + $0x38] sm:$0xff]
    %v3208 = vld [vmem:[#allocation13 + $0x40] sm:$0xff]
    %v3209 = vld [vmem:[#allocation13 + $0x48] sm:$0xff]
    %v3210 = vld [vmem:[#allocation13 + $0x50] sm:$0xff]
    %v3211 = vld [vmem:[#allocation13 + $0x58] sm:$0xff]
    %v3212 = vld [vmem:[#allocation13 + $0x60] sm:$0xff]
    %v3213 = vld [vmem:[#allocation13 + $0x68] sm:$0xff]
    %v3214 = vld [vmem:[#allocation13 + $0x70] sm:$0xff]
    %v3215 = vld [vmem:[#allocation13 + $0x78] sm:$0xff]
    %v3216 = vld [vmem:[#allocation13 + $0x80] sm:$0xff]
    %v3217 = vld [vmem:[#allocation13 + $0x88] sm:$0xff]
    %v3218 = vld [vmem:[#allocation13 + $0x90] sm:$0xff]
    %v3219 = vld [vmem:[#allocation13 + $0x98] sm:$0xff]
    %v3220 = vld [vmem:[#allocation13 + $0xa0] sm:$0xff]
    %v3221 = vld [vmem:[#allocation13 + $0xa8] sm:$0xff]
    %v3222 = vld [vmem:[#allocation13 + $0xb0] sm:$0xff]
    %v3223 = vld [vmem:[#allocation13 + $0xb8] sm:$0xff]
    %v3224 = vld [vmem:[#allocation13 + $0xc0] sm:$0xff]
    %v3225 = vld [vmem:[#allocation13 + $0xc8] sm:$0xff]
    %v3226 = vld [vmem:[#allocation13 + $0xd0] sm:$0xff]
    %v3227 = vld [vmem:[#allocation13 + $0xd8] sm:$0xff]
    %v3228 = vld [vmem:[#allocation13 + $0xe0] sm:$0xff]
    %v3229 = vld [vmem:[#allocation13 + $0xe8] sm:$0xff]
    %v3230 = vld [vmem:[#allocation13 + $0xf0] sm:$0xff]
    %v3231 = vld [vmem:[#allocation13 + $0xf8] sm:$0xff]
    %v3232 = vld [vmem:[#allocation13 + $0x100] sm:$0xff]
    %v3233 = vld [vmem:[#allocation13 + $0x108] sm:$0xff]
    %v3234 = vld [vmem:[#allocation13 + $0x110] sm:$0xff]
    %v3235 = vld [vmem:[#allocation13 + $0x118] sm:$0xff]
    %v3236 = vld [vmem:[#allocation13 + $0x120] sm:$0xff]
    %v3237 = vld [vmem:[#allocation13 + $0x128] sm:$0xff]
    %v3238 = vld [vmem:[#allocation13 + $0x130] sm:$0xff]
    %v3239 = vld [vmem:[#allocation13 + $0x138] sm:$0xff]
    %v3240 = vld [vmem:[#allocation13 + $0x140] sm:$0xff]
    %v3241 = vld [vmem:[#allocation13 + $0x148] sm:$0xff]
    %v3242 = vld [vmem:[#allocation13 + $0x150] sm:$0xff]
    %v3243 = vld [vmem:[#allocation13 + $0x158] sm:$0xff]
    %v3244 = vld [vmem:[#allocation13 + $0x160] sm:$0xff]
    %v3245 = vld [vmem:[#allocation13 + $0x168] sm:$0xff]
    %v3246 = vld [vmem:[#allocation13 + $0x170] sm:$0xff]
    %v3247 = vld [vmem:[#allocation13 + $0x178] sm:$0xff]
    %v3248 = vld [vmem:[#allocation13 + $0x180] sm:$0xff]
    %v3249 = vld [vmem:[#allocation13 + $0x188] sm:$0xff]
    %v3250 = vld [vmem:[#allocation13 + $0x190] sm:$0xff]
    %v3251 = vld [vmem:[#allocation13 + $0x198] sm:$0xff]
    %v3252 = vld [vmem:[#allocation13 + $0x1a0] sm:$0xff]
    %v3253 = vld [vmem:[#allocation13 + $0x1a8] sm:$0xff]
    %v3254 = vld [vmem:[#allocation13 + $0x1b0] sm:$0xff]
    %v3255 = vld [vmem:[#allocation13 + $0x1b8] sm:$0xff]
    %v3256 = vld [vmem:[#allocation13 + $0x1c0] sm:$0xff]
    %v3257 = vld [vmem:[#allocation13 + $0x1c8] sm:$0xff]
    %v3258 = vld [vmem:[#allocation13 + $0x1d0] sm:$0xff]
    %v3259 = vld [vmem:[#allocation13 + $0x1d8] sm:$0xff]
    %v3260 = vld [vmem:[#allocation13 + $0x1e0] sm:$0xff]
    %v3261 = vld [vmem:[#allocation13 + $0x1e8] sm:$0xff]
    %v3262 = vld [vmem:[#allocation13 + $0x1f0] sm:$0xff]
    %v3263 = vld [vmem:[#allocation13 + $0x1f8] sm:$0xff]
    %v3264 = vld [vmem:[#allocation13 + $0x200] sm:$0xff]
    %v3265 = vld [vmem:[#allocation13 + $0x208] sm:$0xff]
    %v3266 = vld [vmem:[#allocation13 + $0x210] sm:$0xff]
    %v3267 = vld [vmem:[#allocation13 + $0x218] sm:$0xff]
    %v3268 = vld [vmem:[#allocation13 + $0x220] sm:$0xff]
    %v3269 = vld [vmem:[#allocation13 + $0x228] sm:$0xff]
    %v3270 = vld [vmem:[#allocation13 + $0x230] sm:$0xff]
    %v3271 = vld [vmem:[#allocation13 + $0x238] sm:$0xff]
    %v3272 = vld [vmem:[#allocation13 + $0x240] sm:$0xff]
    %v3273 = vld [vmem:[#allocation13 + $0x248] sm:$0xff]
    %v3274 = vld [vmem:[#allocation13 + $0x250] sm:$0xff]
    %v3275 = vld [vmem:[#allocation13 + $0x258] sm:$0xff]
    %v3276 = vld [vmem:[#allocation13 + $0x260] sm:$0xff]
    %v3277 = vld [vmem:[#allocation13 + $0x268] sm:$0xff]
    %v3278 = vld [vmem:[#allocation13 + $0x270] sm:$0xff]
    %v3279 = vld [vmem:[#allocation13 + $0x278] sm:$0xff]
    %v3280 = vld [vmem:[#allocation13 + $0x280] sm:$0xff]
    %v3281 = vld [vmem:[#allocation13 + $0x288] sm:$0xff]
    %v3282 = vld [vmem:[#allocation13 + $0x290] sm:$0xff]
    %v3283 = vld [vmem:[#allocation13 + $0x298] sm:$0xff]
    %v3284 = vld [vmem:[#allocation13 + $0x2a0] sm:$0xff]
    %v3285 = vld [vmem:[#allocation13 + $0x2a8] sm:$0xff]
    %v3286 = vld [vmem:[#allocation13 + $0x2b0] sm:$0xff]
    %v3287 = vld [vmem:[#allocation13 + $0x2b8] sm:$0xff]
    %v3288 = vld [vmem:[#allocation13 + $0x2c0] sm:$0xff]
    %v3289 = vld [vmem:[#allocation13 + $0x2c8] sm:$0xff]
    %v3290 = vld [vmem:[#allocation13 + $0x2d0] sm:$0xff]
    %v3291 = vld [vmem:[#allocation13 + $0x2d8] sm:$0xff]
    %v3292 = vld [vmem:[#allocation13 + $0x2e0] sm:$0xff]
    %v3293 = vld [vmem:[#allocation13 + $0x2e8] sm:$0xff]
    %v3294 = vld [vmem:[#allocation13 + $0x2f0] sm:$0xff]
    %v3295 = vld [vmem:[#allocation13 + $0x2f8] sm:$0xff]
    %v3296 = vld [vmem:[#allocation13 + $0x300] sm:$0xff]
    %v3297 = vld [vmem:[#allocation13 + $0x308] sm:$0xff]
    %v3298 = vld [vmem:[#allocation13 + $0x310] sm:$0xff]
    %v3299 = vld [vmem:[#allocation13 + $0x318] sm:$0xff]
    %v3300 = vld [vmem:[#allocation13 + $0x320] sm:$0xff]
    %v3301 = vld [vmem:[#allocation13 + $0x328] sm:$0xff]
    %v3302 = vld [vmem:[#allocation13 + $0x330] sm:$0xff]
    %v3303 = vld [vmem:[#allocation13 + $0x338] sm:$0xff]
    %v3304 = vld [vmem:[#allocation13 + $0x340] sm:$0xff]
    %v3305 = vld [vmem:[#allocation13 + $0x348] sm:$0xff]
    %v3306 = vld [vmem:[#allocation13 + $0x350] sm:$0xff]
    %v3307 = vld [vmem:[#allocation13 + $0x358] sm:$0xff]
    %v3308 = vld [vmem:[#allocation13 + $0x360] sm:$0xff]
    %v3309 = vld [vmem:[#allocation13 + $0x368] sm:$0xff]
    %v3310 = vld [vmem:[#allocation13 + $0x370] sm:$0xff]
    %v3311 = vld [vmem:[#allocation13 + $0x378] sm:$0xff]
    %v3312 = vld [vmem:[#allocation13 + $0x380] sm:$0xff]
    %v3313 = vld [vmem:[#allocation13 + $0x388] sm:$0xff]
    %v3314 = vld [vmem:[#allocation13 + $0x390] sm:$0xff]
    %v3315 = vld [vmem:[#allocation13 + $0x398] sm:$0xff]
    %v3316 = vld [vmem:[#allocation13 + $0x3a0] sm:$0xff]
    %v3317 = vld [vmem:[#allocation13 + $0x3a8] sm:$0xff]
    %v3318 = vld [vmem:[#allocation13 + $0x3b0] sm:$0xff]
    %v3319 = vld [vmem:[#allocation13 + $0x3b8] sm:$0xff]
    %v3320 = vld [vmem:[#allocation13 + $0x3c0] sm:$0xff]
    %v3321 = vld [vmem:[#allocation13 + $0x3c8] sm:$0xff]
    %v3322 = vld [vmem:[#allocation13 + $0x3d0] sm:$0xff]
    %v3323 = vld [vmem:[#allocation13 + $0x3d8] sm:$0xff]
    %v3324 = vld [vmem:[#allocation13 + $0x3e0] sm:$0xff]
    %v3325 = vld [vmem:[#allocation13 + $0x3e8] sm:$0xff]
    %v3326 = vld [vmem:[#allocation13 + $0x3f0] sm:$0xff]
    %v3327 = vld [vmem:[#allocation13 + $0x3f8] sm:$0xff]
    %v3328 = vld [vmem:[#allocation13 + $0x400] sm:$0xff]
    %v3329 = vld [vmem:[#allocation13 + $0x408] sm:$0xff]
    %v3330 = vld [vmem:[#allocation13 + $0x410] sm:$0xff]
    %v3331 = vld [vmem:[#allocation13 + $0x418] sm:$0xff]
    %v3332 = vld [vmem:[#allocation13 + $0x420] sm:$0xff]
    %v3333 = vld [vmem:[#allocation13 + $0x428] sm:$0xff]
    %v3334 = vld [vmem:[#allocation13 + $0x430] sm:$0xff]
    %v3335 = vld [vmem:[#allocation13 + $0x438] sm:$0xff]
    %v3336 = vld [vmem:[#allocation13 + $0x440] sm:$0xff]
    %v3337 = vld [vmem:[#allocation13 + $0x448] sm:$0xff]
    %v3338 = vld [vmem:[#allocation13 + $0x450] sm:$0xff]
    %v3339 = vld [vmem:[#allocation13 + $0x458] sm:$0xff]
    %v3340 = vld [vmem:[#allocation13 + $0x460] sm:$0xff]
    %v3341 = vld [vmem:[#allocation13 + $0x468] sm:$0xff]
    %v3342 = vld [vmem:[#allocation13 + $0x470] sm:$0xff]
    %v3343 = vld [vmem:[#allocation13 + $0x478] sm:$0xff]
    %v3344 = vld [vmem:[#allocation13 + $0x480] sm:$0xff]
    %v3345 = vld [vmem:[#allocation13 + $0x488] sm:$0xff]
    %v3346 = vld [vmem:[#allocation13 + $0x490] sm:$0xff]
    %v3347 = vld [vmem:[#allocation13 + $0x498] sm:$0xff]
    %v3348 = vld [vmem:[#allocation13 + $0x4a0] sm:$0xff]
    %v3349 = vld [vmem:[#allocation13 + $0x4a8] sm:$0xff]
    %v3350 = vld [vmem:[#allocation13 + $0x4b0] sm:$0xff]
    %v3351 = vld [vmem:[#allocation13 + $0x4b8] sm:$0xff]
    %v3352 = vld [vmem:[#allocation13 + $0x4c0] sm:$0xff]
    %v3353 = vld [vmem:[#allocation13 + $0x4c8] sm:$0xff]
    %v3354 = vld [vmem:[#allocation13 + $0x4d0] sm:$0xff]
    %v3355 = vld [vmem:[#allocation13 + $0x4d8] sm:$0xff]
    %v3356 = vld [vmem:[#allocation13 + $0x4e0] sm:$0xff]
    %v3357 = vld [vmem:[#allocation13 + $0x4e8] sm:$0xff]
    %v3358 = vld [vmem:[#allocation13 + $0x4f0] sm:$0xff]
    %v3359 = vld [vmem:[#allocation13 + $0x4f8] sm:$0xff]
    %3360 = vmatprep.subr.mxu0 0.0
    %3361 = vmatpush1.msra.mxu0 %v3200
    %3362 = vmatprep.subr.mxu0 0.0
    %3363 = vmatpush1.msra.mxu0 %v3201
    %3364 = vmatprep.subr.mxu0 0.0
    %3365 = vmatpush1.msra.mxu0 %v3202
    %3366 = vmatprep.subr.mxu0 0.0
    %3367 = vmatpush1.msra.mxu0 %v3203
    %3368 = vmatprep.subr.mxu0 0.0
    %3369 = vmatpush1.msra.mxu0 %v3204
    %3370 = vmatprep.subr.mxu0 0.0
    %3371 = vmatpush1.msra.mxu0 %v3205
    %3372 = vmatprep.subr.mxu0 0.0
    %3373 = vmatpush1.msra.mxu0 %v3206
    %3374 = vmatprep.subr.mxu0 0.0
    %3375 = vmatpush1.msra.mxu0 %v3207
    %3376 = vmatprep.subr.mxu0 0.0
    %3377 = vmatpush1.msra.mxu0 %v3208
    %3378 = vmatprep.subr.mxu0 0.0
    %3379 = vmatpush1.msra.mxu0 %v3209
    %3380 = vmatprep.subr.mxu0 0.0
    %3381 = vmatpush1.msra.mxu0 %v3210
    %3382 = vmatprep.subr.mxu0 0.0
    %3383 = vmatpush1.msra.mxu0 %v3211
    %3384 = vmatprep.subr.mxu0 0.0
    %3385 = vmatpush1.msra.mxu0 %v3212
    %3386 = vmatprep.subr.mxu0 0.0
    %3387 = vmatpush1.msra.mxu0 %v3213
    %3388 = vmatprep.subr.mxu0 0.0
    %3389 = vmatpush1.msra.mxu0 %v3214
    %3390 = vmatprep.subr.mxu0 0.0
    %3391 = vmatpush1.msra.mxu0 %v3215
    %3392 = vmatprep.subr.mxu0 0.0
    %3393 = vmatpush1.msra.mxu0 %v3216
    %3394 = vmatprep.subr.mxu0 0.0
    %3395 = vmatpush1.msra.mxu0 %v3217
    %3396 = vmatprep.subr.mxu0 0.0
    %3397 = vmatpush1.msra.mxu0 %v3218
    %3398 = vmatprep.subr.mxu0 0.0
    %3399 = vmatpush1.msra.mxu0 %v3219
    %3400 = vmatprep.subr.mxu0 0.0
    %3401 = vmatpush1.msra.mxu0 %v3220
    %3402 = vmatprep.subr.mxu0 0.0
    %3403 = vmatpush1.msra.mxu0 %v3221
    %3404 = vmatprep.subr.mxu0 0.0
    %3405 = vmatpush1.msra.mxu0 %v3222
    %3406 = vmatprep.subr.mxu0 0.0
    %3407 = vmatpush1.msra.mxu0 %v3223
    %3408 = vmatprep.subr.mxu0 0.0
    %3409 = vmatpush1.msra.mxu0 %v3224
    %3410 = vmatprep.subr.mxu0 0.0
    %3411 = vmatpush1.msra.mxu0 %v3225
    %3412 = vmatprep.subr.mxu0 0.0
    %3413 = vmatpush1.msra.mxu0 %v3226
    %3414 = vmatprep.subr.mxu0 0.0
    %3415 = vmatpush1.msra.mxu0 %v3227
    %3416 = vmatprep.subr.mxu0 0.0
    %3417 = vmatpush1.msra.mxu0 %v3228
    %3418 = vmatprep.subr.mxu0 0.0
    %3419 = vmatpush1.msra.mxu0 %v3229
    %3420 = vmatprep.subr.mxu0 0.0
    %3421 = vmatpush1.msra.mxu0 %v3230
    %3422 = vmatprep.subr.mxu0 0.0
    %3423 = vmatpush1.msra.mxu0 %v3231
    %3424 = vmatprep.mubr.f32.mxu0 %v1634
    %3425 = vmatmul.mubr.f32.gmra.mrb[0].mxu0 %v1633
    %v3426 = vpop.f32.mrb[0].mxu0
    %v3427 = vadd.f32 0.0, %v3426
    %v3428 = vpop.f32.mrb[0].mxu0
    %3429 = vdwg.mxu0
    %3430 = vmatprep.subr.mxu0 0.0
    %3431 = vmatpush1.msra.mxu0 %v3232
    %3432 = vmatprep.subr.mxu0 0.0
    %3433 = vmatpush1.msra.mxu0 %v3233
    %3434 = vmatprep.subr.mxu0 0.0
    %3435 = vmatpush1.msra.mxu0 %v3234
    %3436 = vmatprep.subr.mxu0 0.0
    %3437 = vmatpush1.msra.mxu0 %v3235
    %3438 = vmatprep.subr.mxu0 0.0
    %3439 = vmatpush1.msra.mxu0 %v3236
    %3440 = vmatprep.subr.mxu0 0.0
    %3441 = vmatpush1.msra.mxu0 %v3237
    %3442 = vmatprep.subr.mxu0 0.0
    %3443 = vmatpush1.msra.mxu0 %v3238
    %3444 = vmatprep.subr.mxu0 0.0
    %3445 = vmatpush1.msra.mxu0 %v3239
    %3446 = vmatprep.subr.mxu0 0.0
    %3447 = vmatpush1.msra.mxu0 %v3240
    %3448 = vmatprep.subr.mxu0 0.0
    %3449 = vmatpush1.msra.mxu0 %v3241
    %3450 = vmatprep.subr.mxu0 0.0
    %3451 = vmatpush1.msra.mxu0 %v3242
    %3452 = vmatprep.subr.mxu0 0.0
    %3453 = vmatpush1.msra.mxu0 %v3243
    %3454 = vmatprep.subr.mxu0 0.0
    %3455 = vmatpush1.msra.mxu0 %v3244
    %3456 = vmatprep.subr.mxu0 0.0
    %3457 = vmatpush1.msra.mxu0 %v3245
    %3458 = vmatprep.subr.mxu0 0.0
    %3459 = vmatpush1.msra.mxu0 %v3246
    %3460 = vmatprep.subr.mxu0 0.0
    %3461 = vmatpush1.msra.mxu0 %v3247
    %3462 = vmatprep.subr.mxu0 0.0
    %3463 = vmatpush1.msra.mxu0 %v3248
    %3464 = vmatprep.subr.mxu0 0.0
    %3465 = vmatpush1.msra.mxu0 %v3249
    %3466 = vmatprep.subr.mxu0 0.0
    %3467 = vmatpush1.msra.mxu0 %v3250
    %3468 = vmatprep.subr.mxu0 0.0
    %3469 = vmatpush1.msra.mxu0 %v3251
    %3470 = vmatprep.subr.mxu0 0.0
    %3471 = vmatpush1.msra.mxu0 %v3252
    %3472 = vmatprep.subr.mxu0 0.0
    %3473 = vmatpush1.msra.mxu0 %v3253
    %3474 = vmatprep.subr.mxu0 0.0
    %3475 = vmatpush1.msra.mxu0 %v3254
    %3476 = vmatprep.subr.mxu0 0.0
    %3477 = vmatpush1.msra.mxu0 %v3255
    %3478 = vmatprep.subr.mxu0 0.0
    %3479 = vmatpush1.msra.mxu0 %v3256
    %3480 = vmatprep.subr.mxu0 0.0
    %3481 = vmatpush1.msra.mxu0 %v3257
    %3482 = vmatprep.subr.mxu0 0.0
    %3483 = vmatpush1.msra.mxu0 %v3258
    %3484 = vmatprep.subr.mxu0 0.0
    %3485 = vmatpush1.msra.mxu0 %v3259
    %3486 = vmatprep.subr.mxu0 0.0
    %3487 = vmatpush1.msra.mxu0 %v3260
    %3488 = vmatprep.subr.mxu0 0.0
    %3489 = vmatpush1.msra.mxu0 %v3261
    %3490 = vmatprep.subr.mxu0 0.0
    %3491 = vmatpush1.msra.mxu0 %v3262
    %3492 = vmatprep.subr.mxu0 0.0
    %3493 = vmatpush1.msra.mxu0 %v3263
    %3494 = vmatprep.mubr.f32.mxu0 %v1642
    %3495 = vmatmul.mubr.f32.gmra.mrb[0].mxu0 %v1641
    %v3496 = vpop.f32.mrb[0].mxu0
    %v3497 = vadd.f32 %v3427, %v3496
    %v3498 = vpop.f32.mrb[0].mxu0
    %3499 = vdwg.mxu0
    %3500 = vmatprep.subr.mxu0 0.0
    %3501 = vmatpush1.msra.mxu0 %v3264
    %3502 = vmatprep.subr.mxu0 0.0
    %3503 = vmatpush1.msra.mxu0 %v3265
    %3504 = vmatprep.subr.mxu0 0.0
    %3505 = vmatpush1.msra.mxu0 %v3266
    %3506 = vmatprep.subr.mxu0 0.0
    %3507 = vmatpush1.msra.mxu0 %v3267
    %3508 = vmatprep.subr.mxu0 0.0
    %3509 = vmatpush1.msra.mxu0 %v3268
    %3510 = vmatprep.subr.mxu0 0.0
    %3511 = vmatpush1.msra.mxu0 %v3269
    %3512 = vmatprep.subr.mxu0 0.0
    %3513 = vmatpush1.msra.mxu0 %v3270
    %3514 = vmatprep.subr.mxu0 0.0
    %3515 = vmatpush1.msra.mxu0 %v3271
    %3516 = vmatprep.subr.mxu0 0.0
    %3517 = vmatpush1.msra.mxu0 %v3272
    %3518 = vmatprep.subr.mxu0 0.0
    %3519 = vmatpush1.msra.mxu0 %v3273
    %3520 = vmatprep.subr.mxu0 0.0
    %3521 = vmatpush1.msra.mxu0 %v3274
    %3522 = vmatprep.subr.mxu0 0.0
    %3523 = vmatpush1.msra.mxu0 %v3275
    %3524 = vmatprep.subr.mxu0 0.0
    %3525 = vmatpush1.msra.mxu0 %v3276
    %3526 = vmatprep.subr.mxu0 0.0
    %3527 = vmatpush1.msra.mxu0 %v3277
    %3528 = vmatprep.subr.mxu0 0.0
    %3529 = vmatpush1.msra.mxu0 %v3278
    %3530 = vmatprep.subr.mxu0 0.0
    %3531 = vmatpush1.msra.mxu0 %v3279
    %3532 = vmatprep.subr.mxu0 0.0
    %3533 = vmatpush1.msra.mxu0 %v3280
    %3534 = vmatprep.subr.mxu0 0.0
    %3535 = vmatpush1.msra.mxu0 %v3281
    %3536 = vmatprep.subr.mxu0 0.0
    %3537 = vmatpush1.msra.mxu0 %v3282
    %3538 = vmatprep.subr.mxu0 0.0
    %3539 = vmatpush1.msra.mxu0 %v3283
    %3540 = vmatprep.subr.mxu0 0.0
    %3541 = vmatpush1.msra.mxu0 %v3284
    %3542 = vmatprep.subr.mxu0 0.0
    %3543 = vmatpush1.msra.mxu0 %v3285
    %3544 = vmatprep.subr.mxu0 0.0
    %3545 = vmatpush1.msra.mxu0 %v3286
    %3546 = vmatprep.subr.mxu0 0.0
    %3547 = vmatpush1.msra.mxu0 %v3287
    %3548 = vmatprep.subr.mxu0 0.0
    %3549 = vmatpush1.msra.mxu0 %v3288
    %3550 = vmatprep.subr.mxu0 0.0
    %3551 = vmatpush1.msra.mxu0 %v3289
    %3552 = vmatprep.subr.mxu0 0.0
    %3553 = vmatpush1.msra.mxu0 %v3290
    %3554 = vmatprep.subr.mxu0 0.0
    %3555 = vmatpush1.msra.mxu0 %v3291
    %3556 = vmatprep.subr.mxu0 0.0
    %3557 = vmatpush1.msra.mxu0 %v3292
    %3558 = vmatprep.subr.mxu0 0.0
    %3559 = vmatpush1.msra.mxu0 %v3293
    %3560 = vmatprep.subr.mxu0 0.0
    %3561 = vmatpush1.msra.mxu0 %v3294
    %3562 = vmatprep.subr.mxu0 0.0
    %3563 = vmatpush1.msra.mxu0 %v3295
    %3564 = vmatprep.mubr.f32.mxu0 %v1650
    %3565 = vmatmul.mubr.f32.gmra.mrb[0].mxu0 %v1649
    %v3566 = vpop.f32.mrb[0].mxu0
    %v3567 = vadd.f32 %v3497, %v3566
    %v3568 = vpop.f32.mrb[0].mxu0
    %3569 = vdwg.mxu0
    %3570 = vmatprep.subr.mxu0 0.0
    %3571 = vmatpush1.msra.mxu0 %v3296
    %3572 = vmatprep.subr.mxu0 0.0
    %3573 = vmatpush1.msra.mxu0 %v3297
    %3574 = vmatprep.subr.mxu0 0.0
    %3575 = vmatpush1.msra.mxu0 %v3298
    %3576 = vmatprep.subr.mxu0 0.0
    %3577 = vmatpush1.msra.mxu0 %v3299
    %3578 = vmatprep.subr.mxu0 0.0
    %3579 = vmatpush1.msra.mxu0 %v3300
    %3580 = vmatprep.subr.mxu0 0.0
    %3581 = vmatpush1.msra.mxu0 %v3301
    %3582 = vmatprep.subr.mxu0 0.0
    %3583 = vmatpush1.msra.mxu0 %v3302
    %3584 = vmatprep.subr.mxu0 0.0
    %3585 = vmatpush1.msra.mxu0 %v3303
    %3586 = vmatprep.subr.mxu0 0.0
    %3587 = vmatpush1.msra.mxu0 %v3304
    %3588 = vmatprep.subr.mxu0 0.0
    %3589 = vmatpush1.msra.mxu0 %v3305
    %3590 = vmatprep.subr.mxu0 0.0
    %3591 = vmatpush1.msra.mxu0 %v3306
    %3592 = vmatprep.subr.mxu0 0.0
    %3593 = vmatpush1.msra.mxu0 %v3307
    %3594 = vmatprep.subr.mxu0 0.0
    %3595 = vmatpush1.msra.mxu0 %v3308
    %3596 = vmatprep.subr.mxu0 0.0
    %3597 = vmatpush1.msra.mxu0 %v3309
    %3598 = vmatprep.subr.mxu0 0.0
    %3599 = vmatpush1.msra.mxu0 %v3310
    %3600 = vmatprep.subr.mxu0 0.0
    %3601 = vmatpush1.msra.mxu0 %v3311
    %3602 = vmatprep.subr.mxu0 0.0
    %3603 = vmatpush1.msra.mxu0 %v3312
    %3604 = vmatprep.subr.mxu0 0.0
    %3605 = vmatpush1.msra.mxu0 %v3313
    %3606 = vmatprep.subr.mxu0 0.0
    %3607 = vmatpush1.msra.mxu0 %v3314
    %3608 = vmatprep.subr.mxu0 0.0
    %3609 = vmatpush1.msra.mxu0 %v3315
    %3610 = vmatprep.subr.mxu0 0.0
    %3611 = vmatpush1.msra.mxu0 %v3316
    %3612 = vmatprep.subr.mxu0 0.0
    %3613 = vmatpush1.msra.mxu0 %v3317
    %3614 = vmatprep.subr.mxu0 0.0
    %3615 = vmatpush1.msra.mxu0 %v3318
    %3616 = vmatprep.subr.mxu0 0.0
    %3617 = vmatpush1.msra.mxu0 %v3319
    %3618 = vmatprep.subr.mxu0 0.0
    %3619 = vmatpush1.msra.mxu0 %v3320
    %3620 = vmatprep.subr.mxu0 0.0
    %3621 = vmatpush1.msra.mxu0 %v3321
    %3622 = vmatprep.subr.mxu0 0.0
    %3623 = vmatpush1.msra.mxu0 %v3322
    %3624 = vmatprep.subr.mxu0 0.0
    %3625 = vmatpush1.msra.mxu0 %v3323
    %3626 = vmatprep.subr.mxu0 0.0
    %3627 = vmatpush1.msra.mxu0 %v3324
    %3628 = vmatprep.subr.mxu0 0.0
    %3629 = vmatpush1.msra.mxu0 %v3325
    %3630 = vmatprep.subr.mxu0 0.0
    %3631 = vmatpush1.msra.mxu0 %v3326
    %3632 = vmatprep.subr.mxu0 0.0
    %3633 = vmatpush1.msra.mxu0 %v3327
    %3634 = vmatprep.mubr.f32.mxu0 %v1658
    %3635 = vmatmul.mubr.f32.gmra.mrb[0].mxu0 %v1657
    %v3636 = vpop.f32.mrb[0].mxu0
    %v3637 = vadd.f32 %v3567, %v3636
    %v3638 = vpop.f32.mrb[0].mxu0
    %3639 = vdwg.mxu0
    %3640 = vmatprep.subr.mxu0 0.0
    %3641 = vmatpush1.msra.mxu0 %v3328
    %3642 = vmatprep.subr.mxu0 0.0
    %3643 = vmatpush1.msra.mxu0 %v3329
    %3644 = vmatprep.subr.mxu0 0.0
    %3645 = vmatpush1.msra.mxu0 %v3330
    %3646 = vmatprep.subr.mxu0 0.0
    %3647 = vmatpush1.msra.mxu0 %v3331
    %3648 = vmatprep.subr.mxu0 0.0
    %3649 = vmatpush1.msra.mxu0 %v3332
    %3650 = vmatprep.subr.mxu0 0.0
    %3651 = vmatpush1.msra.mxu0 %v3333
    %3652 = vmatprep.subr.mxu0 0.0
    %3653 = vmatpush1.msra.mxu0 %v3334
    %3654 = vmatprep.subr.mxu0 0.0
    %3655 = vmatpush1.msra.mxu0 %v3335
    %3656 = vmatprep.subr.mxu0 0.0
    %3657 = vmatpush1.msra.mxu0 %v3336
    %3658 = vmatprep.subr.mxu0 0.0
    %3659 = vmatpush1.msra.mxu0 %v3337
    %3660 = vmatprep.subr.mxu0 0.0
    %3661 = vmatpush1.msra.mxu0 %v3338
    %3662 = vmatprep.subr.mxu0 0.0
    %3663 = vmatpush1.msra.mxu0 %v3339
    %3664 = vmatprep.subr.mxu0 0.0
    %3665 = vmatpush1.msra.mxu0 %v3340
    %3666 = vmatprep.subr.mxu0 0.0
    %3667 = vmatpush1.msra.mxu0 %v3341
    %3668 = vmatprep.subr.mxu0 0.0
    %3669 = vmatpush1.msra.mxu0 %v3342
    %3670 = vmatprep.subr.mxu0 0.0
    %3671 = vmatpush1.msra.mxu0 %v3343
    %3672 = vmatprep.subr.mxu0 0.0
    %3673 = vmatpush1.msra.mxu0 %v3344
    %3674 = vmatprep.subr.mxu0 0.0
    %3675 = vmatpush1.msra.mxu0 %v3345
    %3676 = vmatprep.subr.mxu0 0.0
    %3677 = vmatpush1.msra.mxu0 %v3346
    %3678 = vmatprep.subr.mxu0 0.0
    %3679 = vmatpush1.msra.mxu0 %v3347
    %3680 = vmatprep.subr.mxu0 0.0
    %3681 = vmatpush1.msra.mxu0 %v3348
    %3682 = vmatprep.subr.mxu0 0.0
    %3683 = vmatpush1.msra.mxu0 %v3349
    %3684 = vmatprep.subr.mxu0 0.0
    %3685 = vmatpush1.msra.mxu0 %v3350
    %3686 = vmatprep.subr.mxu0 0.0
    %3687 = vmatpush1.msra.mxu0 %v3351
    %3688 = vmatprep.subr.mxu0 0.0
    %3689 = vmatpush1.msra.mxu0 %v3352
    %3690 = vmatprep.subr.mxu0 0.0
    %3691 = vmatpush1.msra.mxu0 %v3353
    %3692 = vmatprep.subr.mxu0 0.0
    %3693 = vmatpush1.msra.mxu0 %v3354
    %3694 = vmatprep.subr.mxu0 0.0
    %3695 = vmatpush1.msra.mxu0 %v3355
    %3696 = vmatprep.subr.mxu0 0.0
    %3697 = vmatpush1.msra.mxu0 %v3356
    %3698 = vmatprep.subr.mxu0 0.0
    %3699 = vmatpush1.msra.mxu0 %v3357
    %3700 = vmatprep.subr.mxu0 0.0
    %3701 = vmatpush1.msra.mxu0 %v3358
    %3702 = vmatprep.subr.mxu0 0.0
    %3703 = vmatpush1.msra.mxu0 %v3359
    %3704 = vmatprep.mubr.f32.mxu0 %v1666
    %3705 = vmatmul.mubr.f32.gmra.mrb[0].mxu0 %v1665
    %v3706 = vpop.f32.mrb[0].mxu0
    %v3707 = vadd.f32 %v3637, %v3706
    %v3708 = vpop.f32.mrb[0].mxu0
    %3709 = vdwg.mxu0
    %v3710 = vadd.f32 %v3199, %v3707
    %v3711 = vld [vmem:[#allocation14] sm:$0x1]
    %v3713 = vlaneseq
    %v3714 = vshrl.u32 %v3713, 7
    %v3715 = vsub.s32 0, %v3714
    %v3716 = vrot.slane %v3711, %v3715
    %v3718 = vadd.f32 %v3710, %v3716
    %3719 = vst [vmem:[#allocation16] sm:$0x3] %v3718
    // Predicated region
    $region66: #{_fused_forward.1} parent=1 // pred_check
      _
    $region67: #{_fused_forward.1} parent=1 // pred_check_branch
      %3721 = sbr.rel (0) target = $region69
    $region68: #{_fused_forward.1} parent=1 // pred_region
      %s3723 = ssub.s32 32, 32
      %3724 = vsyncadd [#allocation4], %s3723
      %s3726 = sshll.u32 [#allocation16], 4
      %s3727 = int_to_ptr.vmem [resolvable:$true] %s3726
      %3729 = dma.vmem_to_hbm [thread:$0]  %s3727, 32, %s8, [#allocation4]
    $region69: #{_fused_forward.1} parent=1 // pred_fallthru
      _
    // Predicated region
    $region70: #{_fused_forward.1} parent=1 // pred_check
      _
    $region71: #{_fused_forward.1} parent=1 // pred_check_branch
      %3731 = sbr.rel (0) target = $region73
    $region72: #{_fused_forward.1} parent=1 // pred_region
      %3732 = dma.done [#allocation4], 32
    $region73: #{_fused_forward.1} parent=1 // pred_fallthru
      _
    %3733 = vsyncpa [#allocation3], 1
    %3734 = vsyncpa [#allocation6], 1
    %3735 = vsyncpa [#allocation9], 1
    %3736 = vsyncpa [#allocation12], 1
    %3737 = vsyncpa [#allocation15], 1
    %3738 = vsyncpa [#allocation4], 1

</llo_original>
